<compile_context>
chip_gen: v5e
topology: v5e:2x2
jax: 0.10.0
libtpu: 0.0.40
codegen_flags: <defaults>
</compile_context>

<pallas_src>
import functools

import jax
import jax.numpy as jnp
from jax.experimental import pallas as pl
from jax.experimental.pallas import tpu as pltpu

EPS = 1e-5
LANE = 128                        # TPU lane width: channel dims padded to multiples of this
_TILE_M_CAP = 256                 # row-tile cap for the 1x1-conv / epilogue kernels
_VMEM_LIMIT = 32 * 1024 * 1024    # explicit scoped-VMEM limit (fits v5e / v6e / v7x)


def _round_up(x, m):
    return (x + m - 1) // m * m


def _pick_tile(m, cap=_TILE_M_CAP, mult=8):
    """Largest divisor of m that is a multiple of `mult` and <= cap."""
    assert m % mult == 0, "N*H*W must be a multiple of 8"
    best, d = mult, mult
    while d <= min(m, cap):
        if m % d == 0:
            best = d
        d += mult
    return best


# --------------------------------------------------------------------------------------
# Kernel A: (optional fused BN-affine + ReLU on the input) -> 1x1-conv channel matmul
#           + per-tile partial BN stats (sum, sum of squares) for the produced tensor.
# --------------------------------------------------------------------------------------
def _conv1x1_stats_kernel(x_ref, scale_ref, shift_ref, w_ref, y_ref, stats_ref,
                          *, apply_bn_relu, mxu_dtype):
    x = x_ref[...]
    if apply_bn_relu:  # fused BatchNorm (batch affine) + ReLU of the producing layer
        x = jnp.maximum(x * scale_ref[...] + shift_ref[...], 0.0)
    y = jnp.dot(x.astype(mxu_dtype), w_ref[...], preferred_element_type=jnp.float32)
    y_ref[...] = y
    stats = jnp.concatenate([jnp.sum(y, axis=0, keepdims=True),
                             jnp.sum(y * y, axis=0, keepdims=True)], axis=0)
    stats_ref[...] = stats[None]                       # (1, 2, C) partial stats per tile


def _conv1x1_stats(x, w, scale, shift, *, apply_bn_relu, mxu_dtype):
    M, Cin = x.shape
    Cout = w.shape[1]
    tm = _pick_tile(M)
    n_t = M // tm
    kernel = functools.partial(_conv1x1_stats_kernel,
                               apply_bn_relu=apply_bn_relu, mxu_dtype=mxu_dtype)
    return pl.pallas_call(
        kernel,
        out_shape=(jax.ShapeDtypeStruct((M, Cout), jnp.float32),
                   jax.ShapeDtypeStruct((n_t, 2, Cout), jnp.float32)),
        grid=(n_t,),
        in_specs=[pl.BlockSpec((tm, Cin), lambda i: (i, 0)),
                  pl.BlockSpec((1, Cin), lambda i: (0, 0)),
                  pl.BlockSpec((1, Cin), lambda i: (0, 0)),
                  pl.BlockSpec((Cin, Cout), lambda i: (0, 0))],
        out_specs=(pl.BlockSpec((tm, Cout), lambda i: (i, 0)),
                   pl.BlockSpec((1, 2, Cout), lambda i: (i, 0, 0))),
        compiler_params=pltpu.CompilerParams(
            dimension_semantics=("parallel",), vmem_limit_bytes=_VMEM_LIMIT),
    )(x, scale, shift, w)


# --------------------------------------------------------------------------------------
# Kernel B: fused BN1-affine + ReLU -> 3x3 deconv (stride 1, pad 1) via im2col, one
#           (HW, 9C) x (9C, C) matmul per image, + partial BN2 stats. Grid over batch.
# --------------------------------------------------------------------------------------
def _conv3x3_stats_kernel(y1_ref, scale_ref, shift_ref, w_ref, y2_ref, stats_ref,
                          pad_ref, col_ref, *, H, W, mxu_dtype):
    HW = H * W
    C = y1_ref.shape[1]

    # bn1 (batch affine) + ReLU in f32.
    a = jnp.maximum(y1_ref[...] * scale_ref[...] + shift_ref[...], 0.0)

    # Zero ONLY the 1-pixel halo (no full-buffer memset), then write the interior.
    zrow = jnp.zeros((1, W + 2, C), pad_ref.dtype)
    zcol = jnp.zeros((H + 2, 1, C), pad_ref.dtype)
    pad_ref[0:1] = zrow
    pad_ref[H + 1:H + 2] = zrow
    pad_ref[:, 0:1, :] = zcol
    pad_ref[:, W + 1:W + 2, :] = zcol
    pad_ref[1:H + 1, 1:W + 1, :] = a.reshape(H, W, C)

    # im2col: lane offsets are multiples of 128 (unmasked stores); then ONE matmul
    # with K = 9*C instead of nine K=C matmuls + a serial accumulate chain.
    for j, (kh, kw) in enumerate((kh, kw) for kh in range(3) for kw in range(3)):
        col_ref[:, j * C:(j + 1) * C] = pad_ref[kh:kh + H, kw:kw + W, :].reshape(HW, C)

    y2 = jnp.dot(col_ref[...].astype(mxu_dtype), w_ref[...],
                 preferred_element_type=jnp.float32)
    y2_ref[...] = y2
    stats = jnp.concatenate([jnp.sum(y2, axis=0, keepdims=True),
                             jnp.sum(y2 * y2, axis=0, keepdims=True)], axis=0)
    stats_ref[...] = stats[None]


def _conv3x3_stats(y1, w2, scale, shift, *, N, H, W, mxu_dtype):
    HW = H * W
    C = y1.shape[1]
    kernel = functools.partial(_conv3x3_stats_kernel, H=H, W=W, mxu_dtype=mxu_dtype)
    return pl.pallas_call(
        kernel,
        out_shape=(jax.ShapeDtypeStruct((N * HW, C), jnp.float32),
                   jax.ShapeDtypeStruct((N, 2, C), jnp.float32)),
        grid=(N,),
        in_specs=[pl.BlockSpec((HW, C), lambda n: (n, 0)),
                  pl.BlockSpec((1, C), lambda n: (0, 0)),
                  pl.BlockSpec((1, C), lambda n: (0, 0)),
                  pl.BlockSpec((9 * C, C), lambda n: (0, 0))],
        out_specs=(pl.BlockSpec((HW, C), lambda n: (n, 0)),
                   pl.BlockSpec((1, 2, C), lambda n: (n, 0, 0))),
        scratch_shapes=[pltpu.VMEM((H + 2, W + 2, C), jnp.float32),   # halo-padded image
                        pltpu.VMEM((HW, 9 * C), jnp.float32)],        # im2col buffer
        compiler_params=pltpu.CompilerParams(
            dimension_semantics=("parallel",), vmem_limit_bytes=_VMEM_LIMIT),
    )(y1, scale, shift, w2)


# --------------------------------------------------------------------------------------
# Kernel C: bn3 (batch affine) + residual add + ReLU, tiled over rows ("parallel").
# --------------------------------------------------------------------------------------
def _bn_add_relu_kernel(y3_ref, x_ref, scale_ref, shift_ref, o_ref):
    o_ref[...] = jnp.maximum(
        y3_ref[...] * scale_ref[...] + shift_ref[...] + x_ref[...], 0.0)


def _bn_add_relu(y3, x, scale, shift):
    M, C = y3.shape
    tm = _pick_tile(M)
    return pl.pallas_call(
        _bn_add_relu_kernel,
        out_shape=jax.ShapeDtypeStruct((M, C), jnp.float32),
        grid=(M // tm,),
        in_specs=[pl.BlockSpec((tm, C), lambda i: (i, 0)),
                  pl.BlockSpec((tm, C), lambda i: (i, 0)),
                  pl.BlockSpec((1, C), lambda i: (0, 0)),
                  pl.BlockSpec((1, C), lambda i: (0, 0))],
        out_specs=pl.BlockSpec((tm, C), lambda i: (i, 0)),
        compiler_params=pltpu.CompilerParams(
            dimension_semantics=("parallel",), vmem_limit_bytes=_VMEM_LIMIT),
    )(y3, x, scale, shift)


def _bn_affine(partial_stats, gamma, beta, count):
    """Finalize training-mode BN: partial (sum, sumsq) tiles -> per-channel scale/shift."""
    s = jnp.sum(partial_stats, axis=0)          # (2, C)
    mean = s[0] / count
    var = s[1] / count - mean * mean            # one-pass (biased) variance
    scale = gamma * jax.lax.rsqrt(var + EPS)
    shift = beta - mean * scale
    return scale[None, :], shift[None, :]


@functools.partial(jax.jit, static_argnames=("mxu_dtype",))
def debottleneck_forward(x_nchw, params, *, mxu_dtype=jnp.bfloat16):
    """x_nchw: (N, 4*planes, H, W) float32, params: PyTorch-shaped ConvTranspose2d/BN weights."""
    N, Cin, H, W = x_nchw.shape
    P = params["w1"].shape[1]
    assert Cin == 4 * P, "residual add requires inplanes == planes * expansion"
    assert (H * W) % 8 == 0  # TODO(synk): odd spatial sizes (e.g. 7x7) need row padding

    M = N * H * W
    Cp = _round_up(Cin, LANE)     # lane-dense padded channel counts
    Pp = _round_up(P, LANE)

    # ---- lane-dense activation layout: NCHW -> (M, Cp), channels zero-padded ----
    x_flat = jnp.transpose(x_nchw, (0, 2, 3, 1)).astype(jnp.float32).reshape(M, Cin)
    x_p = jnp.pad(x_flat, ((0, 0), (0, Cp - Cin)))

    # ---- weights: ConvTranspose2d layout is (in, out, kh, kw); channel-pad + pre-cast ----
    w1 = jnp.pad(params["w1"][:, :, 0, 0],
                 ((0, Cp - Cin), (0, Pp - P))).astype(mxu_dtype)              # (Cp, Pp)
    # deconv3x3(stride=1,pad=1) == conv3x3(pad=1) with flipped kernel, (kh,kw,in,out) layout
    w2 = jnp.flip(params["w2"], axis=(2, 3)).transpose(2, 3, 0, 1)            # (3,3,P,P)
    w2 = jnp.pad(w2, ((0, 0), (0, 0), (0, Pp - P), (0, Pp - P)))
    w2 = w2.reshape(9 * Pp, Pp).astype(mxu_dtype)                             # im2col weight
    w3 = jnp.pad(params["w3"][:, :, 0, 0],
                 ((0, Pp - P), (0, Cp - Cin))).astype(mxu_dtype)              # (Pp, Cp)

    pad_p = lambda v: jnp.pad(v.astype(jnp.float32), (0, Pp - P))
    pad_c = lambda v: jnp.pad(v.astype(jnp.float32), (0, Cp - Cin))
    g1, b1 = pad_p(params["g1"]), pad_p(params["b1"])
    g2, b2 = pad_p(params["g2"]), pad_p(params["b2"])
    g3, b3 = pad_c(params["g3"]), pad_c(params["b3"])

    ones_c = jnp.ones((1, Cp), jnp.float32)
    zeros_c = jnp.zeros((1, Cp), jnp.float32)

    # conv1 (1x1 deconv == channel matmul) + partial bn1 stats
    y1, st1 = _conv1x1_stats(x_p, w1, ones_c, zeros_c,
                             apply_bn_relu=False, mxu_dtype=mxu_dtype)
    s1, t1 = _bn_affine(st1, g1, b1, M)

    # bn1+relu fused into conv2 (3x3 deconv via im2col) + partial bn2 stats
    y2, st2 = _conv3x3_stats(y1, w2, s1, t1, N=N, H=H, W=W, mxu_dtype=mxu_dtype)
    s2, t2 = _bn_affine(st2, g2, b2, M)

    # bn2+relu fused into conv3 (1x1 deconv == channel matmul) + partial bn3 stats
    y3, st3 = _conv1x1_stats(y2, w3, s2, t2,
                             apply_bn_relu=True, mxu_dtype=mxu_dtype)
    s3, t3 = _bn_affine(st3, g3, b3, M)

    # bn3 + residual add + relu
    out_p = _bn_add_relu(y3, x_p, s3, t3)

    out = out_p[:, :Cin].reshape(N, H, W, Cin)
    return jnp.transpose(out, (0, 3, 1, 2))      # NHWC -> NCHW


# ---------------- pure-JAX reference (NCHW, uses XLA convs) ----------------
def reference(x, p):
    def bn(y, g, b):
        mean = y.mean(axis=(0, 2, 3), keepdims=True)
        var = ((y - mean) ** 2).mean(axis=(0, 2, 3), keepdims=True)
        return ((y - mean) * jax.lax.rsqrt(var + EPS) * g[None, :, None, None]
                + b[None, :, None, None])

    def deconv1x1(x, wt):  # wt: (I, O, 1, 1)
        return jax.lax.conv_general_dilated(
            x, wt.transpose(1, 0, 2, 3), (1, 1), ((0, 0), (0, 0)),
            dimension_numbers=("NCHW", "OIHW", "NCHW"))

    def deconv3x3(x, wt):  # wt: (I, O, 3, 3); ConvTranspose stride=1 pad=1
        w = jnp.flip(wt, axis=(2, 3)).transpose(1, 0, 2, 3)
        return jax.lax.conv_general_dilated(
            x, w, (1, 1), ((1, 1), (1, 1)),
            dimension_numbers=("NCHW", "OIHW", "NCHW"))

    out = jax.nn.relu(bn(deconv1x1(x, p["w1"]), p["g1"], p["b1"]))
    out = jax.nn.relu(bn(deconv3x3(out, p["w2"]), p["g2"], p["b2"]))
    out = bn(deconv1x1(out, p["w3"]), p["g3"], p["b3"])
    return jax.nn.relu(out + x)


if __name__ == "__main__":
    planes = 4
    inplanes = planes * 4          # expansion = 4; residual add requires this
    N, H, W = 2, 16, 16

    key = jax.random.PRNGKey(0)
    ks = jax.random.split(key, 10)
    params = {
        "w1": 0.1 * jax.random.normal(ks[0], (inplanes, planes, 1, 1), jnp.float32),
        "w2": 0.1 * jax.random.normal(ks[1], (planes, planes, 3, 3), jnp.float32),
        "w3": 0.1 * jax.random.normal(ks[2], (planes, inplanes, 1, 1), jnp.float32),
        "g1": 1.0 + 0.1 * jax.random.normal(ks[3], (planes,), jnp.float32),
        "b1": 0.1 * jax.random.normal(ks[4], (planes,), jnp.float32),
        "g2": 1.0 + 0.1 * jax.random.normal(ks[5], (planes,), jnp.float32),
        "b2": 0.1 * jax.random.normal(ks[6], (planes,), jnp.float32),
        "g3": 1.0 + 0.1 * jax.random.normal(ks[7], (inplanes,), jnp.float32),
        "b3": 0.1 * jax.random.normal(ks[8], (inplanes,), jnp.float32),
    }
    x = jax.random.normal(ks[9], (N, inplanes, H, W), jnp.float32)

    ref = jax.block_until_ready(reference(x, params))

    # Exact-semantics check with f32 MXU operands.
    out_f32 = jax.block_until_ready(debottleneck_forward(x, params, mxu_dtype=jnp.float32))
    assert out_f32.shape == (N, inplanes, H, W)
    err32 = float(jnp.max(jnp.abs(out_f32 - ref)))
    assert jnp.allclose(out_f32, ref, rtol=1e-4, atol=1e-4), err32

    # Fast path: bf16 MXU operands (f32 accumulation); looser tolerance from bf16 rounding.
    out_bf16 = jax.block_until_ready(debottleneck_forward(x, params, mxu_dtype=jnp.bfloat16))
    err16 = float(jnp.max(jnp.abs(out_bf16 - ref)))
    assert jnp.allclose(out_bf16, ref, rtol=1e-1, atol=1e-1), err16

    print("KERNEL_OK")
</pallas_src>

<mosaic_0001>
module attributes {stable_mosaic.version = 11 : i64} {
  func.func @_conv1x1_stats_kernel(%arg0: i32, %arg1: memref<256x128xf32, #tpu.memory_space<vmem>>, %arg2: memref<1x128xf32, #tpu.memory_space<vmem>>, %arg3: memref<1x128xf32, #tpu.memory_space<vmem>>, %arg4: memref<128x128xf32, #tpu.memory_space<vmem>>, %arg5: memref<256x128xf32, #tpu.memory_space<vmem>>, %arg6: memref<1x2x128xf32, #tpu.memory_space<vmem>>) attributes {dimension_semantics = [#tpu.dimension_semantics<parallel>], iteration_bounds = array<i64: 2>, scalar_prefetch = 0 : i64, scratch_operands = 0 : i64, tpu.core_type = #tpu.core_type<tc>, window_params = [{transform_indices = @transform_0, window_bounds = array<i64: 256, 128>}, {pipeline_mode = #tpu.pipeline_mode<synchronous>, transform_indices = @transform_1, window_bounds = array<i64: 1, 128>}, {pipeline_mode = #tpu.pipeline_mode<synchronous>, transform_indices = @transform_2, window_bounds = array<i64: 1, 128>}, {pipeline_mode = #tpu.pipeline_mode<synchronous>, transform_indices = @transform_3, window_bounds = array<i64: 128, 128>}, {transform_indices = @transform_4, window_bounds = array<i64: 256, 128>}, {transform_indices = @transform_5, window_bounds = array<i64: 1, 2, 128>}]} {
    %c0 = arith.constant 0 : index
    %c0_0 = arith.constant 0 : index
    %0 = vector.load %arg1[%c0, %c0_0] : memref<256x128xf32, #tpu.memory_space<vmem>>, vector<256x128xf32>
    %c0_1 = arith.constant 0 : index
    %c0_2 = arith.constant 0 : index
    %1 = vector.load %arg4[%c0_1, %c0_2] : memref<128x128xf32, #tpu.memory_space<vmem>>, vector<128x128xf32>
    %cst = arith.constant dense<0.000000e+00> : vector<256x128xf32>
    %2 = tpu.matmul %0, %1, %cst {dimension_numbers = #tpu.dot_dimension_numbers<[1], [0], [0], [1], [0, 0, 1, 1], [], []>} : vector<256x128xf32>, vector<128x128xf32>, vector<256x128xf32> -> vector<256x128xf32>
    %c0_3 = arith.constant 0 : index
    %c0_4 = arith.constant 0 : index
    %3 = vector.load %arg5[%c0_3, %c0_4] : memref<256x128xf32, #tpu.memory_space<vmem>>, vector<256x128xf32>
    tpu.vector_store %arg5[%c0_3, %c0_4], %2 {strides = array<i32>} : memref<256x128xf32, #tpu.memory_space<vmem>>, vector<256x128xf32>,
    %cst_5 = arith.constant dense<0.000000e+00> : vector<128xf32>
    %4 = vector.multi_reduction <add>, %2, %cst_5 [0] : vector<256x128xf32> to vector<128xf32>
    %5 = vector.shape_cast %4 : vector<128xf32> to vector<1x128xf32>
    %6 = arith.mulf %2, %2 : vector<256x128xf32>
    %cst_6 = arith.constant dense<0.000000e+00> : vector<128xf32>
    %7 = vector.multi_reduction <add>, %6, %cst_6 [0] : vector<256x128xf32> to vector<128xf32>
    %8 = vector.shape_cast %7 : vector<128xf32> to vector<1x128xf32>
    %9 = tpu.concatenate %5, %8 in 0 : vector<1x128xf32>, vector<1x128xf32> -> vector<2x128xf32>
    %10 = vector.shape_cast %9 : vector<2x128xf32> to vector<1x2x128xf32>
    %c0_7 = arith.constant 0 : index
    %c0_8 = arith.constant 0 : index
    %c0_9 = arith.constant 0 : index
    %11 = vector.load %arg6[%c0_7, %c0_8, %c0_9] : memref<1x2x128xf32, #tpu.memory_space<vmem>>, vector<1x2x128xf32>
    tpu.vector_store %arg6[%c0_7, %c0_8, %c0_9], %10 {strides = array<i32>} : memref<1x2x128xf32, #tpu.memory_space<vmem>>, vector<1x2x128xf32>,
    return
  }
  func.func @transform_0(%arg0: i32) -> (i32, i32) {
    %c0_i32 = arith.constant 0 : i32
    %c0_i32_0 = arith.constant 0 : i32
    return %arg0, %c0_i32 : i32, i32
  }
  func.func @transform_1(%arg0: i32) -> (i32, i32) {
    %c0_i32 = arith.constant 0 : i32
    %c0_i32_0 = arith.constant 0 : i32
    %c0_i32_1 = arith.constant 0 : i32
    return %c0_i32, %c0_i32_0 : i32, i32
  }
  func.func @transform_2(%arg0: i32) -> (i32, i32) {
    %c0_i32 = arith.constant 0 : i32
    %c0_i32_0 = arith.constant 0 : i32
    %c0_i32_1 = arith.constant 0 : i32
    return %c0_i32, %c0_i32_0 : i32, i32
  }
  func.func @transform_3(%arg0: i32) -> (i32, i32) {
    %c0_i32 = arith.constant 0 : i32
    %c0_i32_0 = arith.constant 0 : i32
    %c0_i32_1 = arith.constant 0 : i32
    return %c0_i32, %c0_i32_0 : i32, i32
  }
  func.func @transform_4(%arg0: i32) -> (i32, i32) {
    %c0_i32 = arith.constant 0 : i32
    %c0_i32_0 = arith.constant 0 : i32
    return %arg0, %c0_i32 : i32, i32
  }
  func.func @transform_5(%arg0: i32) -> (i32, i32, i32) {
    %c0_i32 = arith.constant 0 : i32
    %c0_i32_0 = arith.constant 0 : i32
    %c0_i32_1 = arith.constant 0 : i32
    return %arg0, %c0_i32, %c0_i32_0 : i32, i32, i32
  }
}

module attributes {stable_mosaic.version = 11 : i64} {
  func.func @_bn_add_relu_kernel(%arg0: i32, %arg1: memref<256x128xf32, #tpu.memory_space<vmem>>, %arg2: memref<256x128xf32, #tpu.memory_space<vmem>>, %arg3: memref<1x128xf32, #tpu.memory_space<vmem>>, %arg4: memref<1x128xf32, #tpu.memory_space<vmem>>, %arg5: memref<256x128xf32, #tpu.memory_space<vmem>>) attributes {dimension_semantics = [#tpu.dimension_semantics<parallel>], iteration_bounds = array<i64: 2>, scalar_prefetch = 0 : i64, scratch_operands = 0 : i64, tpu.core_type = #tpu.core_type<tc>, window_params = [{transform_indices = @transform_0, window_bounds = array<i64: 256, 128>}, {transform_indices = @transform_1, window_bounds = array<i64: 256, 128>}, {pipeline_mode = #tpu.pipeline_mode<synchronous>, transform_indices = @transform_2, window_bounds = array<i64: 1, 128>}, {pipeline_mode = #tpu.pipeline_mode<synchronous>, transform_indices = @transform_3, window_bounds = array<i64: 1, 128>}, {transform_indices = @transform_4, window_bounds = array<i64: 256, 128>}]} {
    %c0 = arith.constant 0 : index
    %c0_0 = arith.constant 0 : index
    %0 = vector.load %arg1[%c0, %c0_0] : memref<256x128xf32, #tpu.memory_space<vmem>>, vector<256x128xf32>
    %c0_1 = arith.constant 0 : index
    %c0_2 = arith.constant 0 : index
    %1 = vector.load %arg3[%c0_1, %c0_2] : memref<1x128xf32, #tpu.memory_space<vmem>>, vector<1x128xf32>
    %2 = vector.broadcast %1 : vector<1x128xf32> to vector<256x128xf32>
    %3 = arith.mulf %0, %2 : vector<256x128xf32>
    %c0_3 = arith.constant 0 : index
    %c0_4 = arith.constant 0 : index
    %4 = vector.load %arg4[%c0_3, %c0_4] : memref<1x128xf32, #tpu.memory_space<vmem>>, vector<1x128xf32>
    %5 = vector.broadcast %4 : vector<1x128xf32> to vector<256x128xf32>
    %6 = arith.addf %3, %5 : vector<256x128xf32>
    %c0_5 = arith.constant 0 : index
    %c0_6 = arith.constant 0 : index
    %7 = vector.load %arg2[%c0_5, %c0_6] : memref<256x128xf32, #tpu.memory_space<vmem>>, vector<256x128xf32>
    %8 = arith.addf %6, %7 : vector<256x128xf32>
    %cst = arith.constant 0.000000e+00 : f32
    %9 = vector.broadcast %cst : f32 to vector<256x128xf32>
    %10 = arith.maximumf %8, %9 : vector<256x128xf32>
    %c0_7 = arith.constant 0 : index
    %c0_8 = arith.constant 0 : index
    %11 = vector.load %arg5[%c0_7, %c0_8] : memref<256x128xf32, #tpu.memory_space<vmem>>, vector<256x128xf32>
    tpu.vector_store %arg5[%c0_7, %c0_8], %10 {strides = array<i32>} : memref<256x128xf32, #tpu.memory_space<vmem>>, vector<256x128xf32>,
    return
  }
  func.func @transform_0(%arg0: i32) -> (i32, i32) {
    %c0_i32 = arith.constant 0 : i32
    %c0_i32_0 = arith.constant 0 : i32
    return %arg0, %c0_i32 : i32, i32
  }
  func.func @transform_1(%arg0: i32) -> (i32, i32) {
    %c0_i32 = arith.constant 0 : i32
    %c0_i32_0 = arith.constant 0 : i32
    return %arg0, %c0_i32 : i32, i32
  }
  func.func @transform_2(%arg0: i32) -> (i32, i32) {
    %c0_i32 = arith.constant 0 : i32
    %c0_i32_0 = arith.constant 0 : i32
    %c0_i32_1 = arith.constant 0 : i32
    return %c0_i32, %c0_i32_0 : i32, i32
  }
  func.func @transform_3(%arg0: i32) -> (i32, i32) {
    %c0_i32 = arith.constant 0 : i32
    %c0_i32_0 = arith.constant 0 : i32
    %c0_i32_1 = arith.constant 0 : i32
    return %c0_i32, %c0_i32_0 : i32, i32
  }
  func.func @transform_4(%arg0: i32) -> (i32, i32) {
    %c0_i32 = arith.constant 0 : i32
    %c0_i32_0 = arith.constant 0 : i32
    return %arg0, %c0_i32 : i32, i32
  }
}

module attributes {stable_mosaic.version = 11 : i64} {
  func.func @_conv3x3_stats_kernel(%arg0: i32, %arg1: memref<256x128xf32, #tpu.memory_space<vmem>>, %arg2: memref<1x128xf32, #tpu.memory_space<vmem>>, %arg3: memref<1x128xf32, #tpu.memory_space<vmem>>, %arg4: memref<1152x128xf32, #tpu.memory_space<vmem>>, %arg5: memref<256x128xf32, #tpu.memory_space<vmem>>, %arg6: memref<1x2x128xf32, #tpu.memory_space<vmem>>, %arg7: memref<18x18x128xf32, #tpu.memory_space<vmem>>, %arg8: memref<256x1152xf32, #tpu.memory_space<vmem>>) attributes {dimension_semantics = [#tpu.dimension_semantics<parallel>], iteration_bounds = array<i64: 2>, scalar_prefetch = 0 : i64, scratch_operands = 2 : i64, tpu.core_type = #tpu.core_type<tc>, window_params = [{transform_indices = @transform_0, window_bounds = array<i64: 256, 128>}, {pipeline_mode = #tpu.pipeline_mode<synchronous>, transform_indices = @transform_1, window_bounds = array<i64: 1, 128>}, {pipeline_mode = #tpu.pipeline_mode<synchronous>, transform_indices = @transform_2, window_bounds = array<i64: 1, 128>}, {pipeline_mode = #tpu.pipeline_mode<synchronous>, transform_indices = @transform_3, window_bounds = array<i64: 1152, 128>}, {transform_indices = @transform_4, window_bounds = array<i64: 256, 128>}, {transform_indices = @transform_5, window_bounds = array<i64: 1, 2, 128>}]} {
    %c0 = arith.constant 0 : index
    %c0_0 = arith.constant 0 : index
    %0 = vector.load %arg1[%c0, %c0_0] : memref<256x128xf32, #tpu.memory_space<vmem>>, vector<256x128xf32>
    %c0_1 = arith.constant 0 : index
    %c0_2 = arith.constant 0 : index
    %1 = vector.load %arg2[%c0_1, %c0_2] : memref<1x128xf32, #tpu.memory_space<vmem>>, vector<1x128xf32>
    %2 = vector.broadcast %1 : vector<1x128xf32> to vector<256x128xf32>
    %3 = arith.mulf %0, %2 : vector<256x128xf32>
    %c0_3 = arith.constant 0 : index
    %c0_4 = arith.constant 0 : index
    %4 = vector.load %arg3[%c0_3, %c0_4] : memref<1x128xf32, #tpu.memory_space<vmem>>, vector<1x128xf32>
    %5 = vector.broadcast %4 : vector<1x128xf32> to vector<256x128xf32>
    %6 = arith.addf %3, %5 : vector<256x128xf32>
    %cst = arith.constant 0.000000e+00 : f32
    %7 = vector.broadcast %cst : f32 to vector<256x128xf32>
    %8 = arith.maximumf %6, %7 : vector<256x128xf32>
    %cst_5 = arith.constant 0.000000e+00 : f32
    %9 = vector.broadcast %cst_5 : f32 to vector<1x18x128xf32>
    %cst_6 = arith.constant 0.000000e+00 : f32
    %10 = vector.broadcast %cst_6 : f32 to vector<18x1x128xf32>
    %c0_7 = arith.constant 0 : index
    %c0_8 = arith.constant 0 : index
    %c0_9 = arith.constant 0 : index
    %11 = vector.load %arg7[%c0_7, %c0_8, %c0_9] : memref<18x18x128xf32, #tpu.memory_space<vmem>>, vector<1x18x128xf32>
    tpu.vector_store %arg7[%c0_7, %c0_8, %c0_9], %9 {strides = array<i32>} : memref<18x18x128xf32, #tpu.memory_space<vmem>>, vector<1x18x128xf32>,
    %c17 = arith.constant 17 : index
    %c0_10 = arith.constant 0 : index
    %c0_11 = arith.constant 0 : index
    %12 = vector.load %arg7[%c17, %c0_10, %c0_11] : memref<18x18x128xf32, #tpu.memory_space<vmem>>, vector<1x18x128xf32>
    tpu.vector_store %arg7[%c17, %c0_10, %c0_11], %9 {strides = array<i32>} : memref<18x18x128xf32, #tpu.memory_space<vmem>>, vector<1x18x128xf32>,
    %c0_12 = arith.constant 0 : index
    %c0_13 = arith.constant 0 : index
    %c0_14 = arith.constant 0 : index
    %13 = vector.load %arg7[%c0_12, %c0_13, %c0_14] : memref<18x18x128xf32, #tpu.memory_space<vmem>>, vector<18x1x128xf32>
    tpu.vector_store %arg7[%c0_12, %c0_13, %c0_14], %10 {strides = array<i32>} : memref<18x18x128xf32, #tpu.memory_space<vmem>>, vector<18x1x128xf32>,
    %c0_15 = arith.constant 0 : index
    %c17_16 = arith.constant 17 : index
    %c0_17 = arith.constant 0 : index
    %14 = vector.load %arg7[%c0_15, %c17_16, %c0_17] : memref<18x18x128xf32, #tpu.memory_space<vmem>>, vector<18x1x128xf32>
    tpu.vector_store %arg7[%c0_15, %c17_16, %c0_17], %10 {strides = array<i32>} : memref<18x18x128xf32, #tpu.memory_space<vmem>>, vector<18x1x128xf32>,
    %15 = vector.shape_cast %8 : vector<256x128xf32> to vector<16x16x128xf32>
    %c1 = arith.constant 1 : index
    %c1_18 = arith.constant 1 : index
    %c0_19 = arith.constant 0 : index
    %16 = vector.load %arg7[%c1, %c1_18, %c0_19] : memref<18x18x128xf32, #tpu.memory_space<vmem>>, vector<16x16x128xf32>
    tpu.vector_store %arg7[%c1, %c1_18, %c0_19], %15 {strides = array<i32>} : memref<18x18x128xf32, #tpu.memory_space<vmem>>, vector<16x16x128xf32>,
    %c0_20 = arith.constant 0 : index
    %c0_21 = arith.constant 0 : index
    %c0_22 = arith.constant 0 : index
    %17 = vector.load %arg7[%c0_20, %c0_21, %c0_22] : memref<18x18x128xf32, #tpu.memory_space<vmem>>, vector<16x16x128xf32>
    %18 = vector.shape_cast %17 : vector<16x16x128xf32> to vector<256x128xf32>
    %c0_23 = arith.constant 0 : index
    %c0_24 = arith.constant 0 : index
    %19 = vector.load %arg8[%c0_23, %c0_24] : memref<256x1152xf32, #tpu.memory_space<vmem>>, vector<256x128xf32>
    tpu.vector_store %arg8[%c0_23, %c0_24], %18 {strides = array<i32>} : memref<256x1152xf32, #tpu.memory_space<vmem>>, vector<256x128xf32>,
    %c0_25 = arith.constant 0 : index
    %c1_26 = arith.constant 1 : index
    %c0_27 = arith.constant 0 : index
    %20 = vector.load %arg7[%c0_25, %c1_26, %c0_27] : memref<18x18x128xf32, #tpu.memory_space<vmem>>, vector<16x16x128xf32>
    %21 = vector.shape_cast %20 : vector<16x16x128xf32> to vector<256x128xf32>
    %c0_28 = arith.constant 0 : index
    %c128 = arith.constant 128 : index
    %22 = vector.load %arg8[%c0_28, %c128] : memref<256x1152xf32, #tpu.memory_space<vmem>>, vector<256x128xf32>
    tpu.vector_store %arg8[%c0_28, %c128], %21 {strides = array<i32>} : memref<256x1152xf32, #tpu.memory_space<vmem>>, vector<256x128xf32>,
    %c0_29 = arith.constant 0 : index
    %c2 = arith.constant 2 : index
    %c0_30 = arith.constant 0 : index
    %23 = vector.load %arg7[%c0_29, %c2, %c0_30] : memref<18x18x128xf32, #tpu.memory_space<vmem>>, vector<16x16x128xf32>
    %24 = vector.shape_cast %23 : vector<16x16x128xf32> to vector<256x128xf32>
    %c0_31 = arith.constant 0 : index
    %c256 = arith.constant 256 : index
    %25 = vector.load %arg8[%c0_31, %c256] : memref<256x1152xf32, #tpu.memory_space<vmem>>, vector<256x128xf32>
    tpu.vector_store %arg8[%c0_31, %c256], %24 {strides = array<i32>} : memref<256x1152xf32, #tpu.memory_space<vmem>>, vector<256x128xf32>,
    %c1_32 = arith.constant 1 : index
    %c0_33 = arith.constant 0 : index
    %c0_34 = arith.constant 0 : index
    %26 = vector.load %arg7[%c1_32, %c0_33, %c0_34] : memref<18x18x128xf32, #tpu.memory_space<vmem>>, vector<16x16x128xf32>
    %27 = vector.shape_cast %26 : vector<16x16x128xf32> to vector<256x128xf32>
    %c0_35 = arith.constant 0 : index
    %c384 = arith.constant 384 : index
    %28 = vector.load %arg8[%c0_35, %c384] : memref<256x1152xf32, #tpu.memory_space<vmem>>, vector<256x128xf32>
    tpu.vector_store %arg8[%c0_35, %c384], %27 {strides = array<i32>} : memref<256x1152xf32, #tpu.memory_space<vmem>>, vector<256x128xf32>,
    %c1_36 = arith.constant 1 : index
    %c1_37 = arith.constant 1 : index
    %c0_38 = arith.constant 0 : index
    %29 = vector.load %arg7[%c1_36, %c1_37, %c0_38] : memref<18x18x128xf32, #tpu.memory_space<vmem>>, vector<16x16x128xf32>
    %30 = vector.shape_cast %29 : vector<16x16x128xf32> to vector<256x128xf32>
    %c0_39 = arith.constant 0 : index
    %c512 = arith.constant 512 : index
    %31 = vector.load %arg8[%c0_39, %c512] : memref<256x1152xf32, #tpu.memory_space<vmem>>, vector<256x128xf32>
    tpu.vector_store %arg8[%c0_39, %c512], %30 {strides = array<i32>} : memref<256x1152xf32, #tpu.memory_space<vmem>>, vector<256x128xf32>,
    %c1_40 = arith.constant 1 : index
    %c2_41 = arith.constant 2 : index
    %c0_42 = arith.constant 0 : index
    %32 = vector.load %arg7[%c1_40, %c2_41, %c0_42] : memref<18x18x128xf32, #tpu.memory_space<vmem>>, vector<16x16x128xf32>
    %33 = vector.shape_cast %32 : vector<16x16x128xf32> to vector<256x128xf32>
    %c0_43 = arith.constant 0 : index
    %c640 = arith.constant 640 : index
    %34 = vector.load %arg8[%c0_43, %c640] : memref<256x1152xf32, #tpu.memory_space<vmem>>, vector<256x128xf32>
    tpu.vector_store %arg8[%c0_43, %c640], %33 {strides = array<i32>} : memref<256x1152xf32, #tpu.memory_space<vmem>>, vector<256x128xf32>,
    %c2_44 = arith.constant 2 : index
    %c0_45 = arith.constant 0 : index
    %c0_46 = arith.constant 0 : index
    %35 = vector.load %arg7[%c2_44, %c0_45, %c0_46] : memref<18x18x128xf32, #tpu.memory_space<vmem>>, vector<16x16x128xf32>
    %36 = vector.shape_cast %35 : vector<16x16x128xf32> to vector<256x128xf32>
    %c0_47 = arith.constant 0 : index
    %c768 = arith.constant 768 : index
    %37 = vector.load %arg8[%c0_47, %c768] : memref<256x1152xf32, #tpu.memory_space<vmem>>, vector<256x128xf32>
    tpu.vector_store %arg8[%c0_47, %c768], %36 {strides = array<i32>} : memref<256x1152xf32, #tpu.memory_space<vmem>>, vector<256x128xf32>,
    %c2_48 = arith.constant 2 : index
    %c1_49 = arith.constant 1 : index
    %c0_50 = arith.constant 0 : index
    %38 = vector.load %arg7[%c2_48, %c1_49, %c0_50] : memref<18x18x128xf32, #tpu.memory_space<vmem>>, vector<16x16x128xf32>
    %39 = vector.shape_cast %38 : vector<16x16x128xf32> to vector<256x128xf32>
    %c0_51 = arith.constant 0 : index
    %c896 = arith.constant 896 : index
    %40 = vector.load %arg8[%c0_51, %c896] : memref<256x1152xf32, #tpu.memory_space<vmem>>, vector<256x128xf32>
    tpu.vector_store %arg8[%c0_51, %c896], %39 {strides = array<i32>} : memref<256x1152xf32, #tpu.memory_space<vmem>>, vector<256x128xf32>,
    %c2_52 = arith.constant 2 : index
    %c2_53 = arith.constant 2 : index
    %c0_54 = arith.constant 0 : index
    %41 = vector.load %arg7[%c2_52, %c2_53, %c0_54] : memref<18x18x128xf32, #tpu.memory_space<vmem>>, vector<16x16x128xf32>
    %42 = vector.shape_cast %41 : vector<16x16x128xf32> to vector<256x128xf32>
    %c0_55 = arith.constant 0 : index
    %c1024 = arith.constant 1024 : index
    %43 = vector.load %arg8[%c0_55, %c1024] : memref<256x1152xf32, #tpu.memory_space<vmem>>, vector<256x128xf32>
    tpu.vector_store %arg8[%c0_55, %c1024], %42 {strides = array<i32>} : memref<256x1152xf32, #tpu.memory_space<vmem>>, vector<256x128xf32>,
    %c0_56 = arith.constant 0 : index
    %c0_57 = arith.constant 0 : index
    %44 = vector.load %arg8[%c0_56, %c0_57] : memref<256x1152xf32, #tpu.memory_space<vmem>>, vector<256x1152xf32>
    %c0_58 = arith.constant 0 : index
    %c0_59 = arith.constant 0 : index
    %45 = vector.load %arg4[%c0_58, %c0_59] : memref<1152x128xf32, #tpu.memory_space<vmem>>, vector<1152x128xf32>
    %cst_60 = arith.constant dense<0.000000e+00> : vector<256x128xf32>
    %46 = tpu.matmul %44, %45, %cst_60 {dimension_numbers = #tpu.dot_dimension_numbers<[1], [0], [0], [1], [0, 0, 1, 1], [], []>} : vector<256x1152xf32>, vector<1152x128xf32>, vector<256x128xf32> -> vector<256x128xf32>
    %c0_61 = arith.constant 0 : index
    %c0_62 = arith.constant 0 : index
    %47 = vector.load %arg5[%c0_61, %c0_62] : memref<256x128xf32, #tpu.memory_space<vmem>>, vector<256x128xf32>
    tpu.vector_store %arg5[%c0_61, %c0_62], %46 {strides = array<i32>} : memref<256x128xf32, #tpu.memory_space<vmem>>, vector<256x128xf32>,
    %cst_63 = arith.constant dense<0.000000e+00> : vector<128xf32>
    %48 = vector.multi_reduction <add>, %46, %cst_63 [0] : vector<256x128xf32> to vector<128xf32>
    %49 = vector.shape_cast %48 : vector<128xf32> to vector<1x128xf32>
    %50 = arith.mulf %46, %46 : vector<256x128xf32>
    %cst_64 = arith.constant dense<0.000000e+00> : vector<128xf32>
    %51 = vector.multi_reduction <add>, %50, %cst_64 [0] : vector<256x128xf32> to vector<128xf32>
    %52 = vector.shape_cast %51 : vector<128xf32> to vector<1x128xf32>
    %53 = tpu.concatenate %49, %52 in 0 : vector<1x128xf32>, vector<1x128xf32> -> vector<2x128xf32>
    %54 = vector.shape_cast %53 : vector<2x128xf32> to vector<1x2x128xf32>
    %c0_65 = arith.constant 0 : index
    %c0_66 = arith.constant 0 : index
    %c0_67 = arith.constant 0 : index
    %55 = vector.load %arg6[%c0_65, %c0_66, %c0_67] : memref<1x2x128xf32, #tpu.memory_space<vmem>>, vector<1x2x128xf32>
    tpu.vector_store %arg6[%c0_65, %c0_66, %c0_67], %54 {strides = array<i32>} : memref<1x2x128xf32, #tpu.memory_space<vmem>>, vector<1x2x128xf32>,
    return
  }
  func.func @transform_0(%arg0: i32) -> (i32, i32) {
    %c0_i32 = arith.constant 0 : i32
    %c0_i32_0 = arith.constant 0 : i32
    return %arg0, %c0_i32 : i32, i32
  }
  func.func @transform_1(%arg0: i32) -> (i32, i32) {
    %c0_i32 = arith.constant 0 : i32
    %c0_i32_0 = arith.constant 0 : i32
    %c0_i32_1 = arith.constant 0 : i32
    return %c0_i32, %c0_i32_0 : i32, i32
  }
  func.func @transform_2(%arg0: i32) -> (i32, i32) {
    %c0_i32 = arith.constant 0 : i32
    %c0_i32_0 = arith.constant 0 : i32
    %c0_i32_1 = arith.constant 0 : i32
    return %c0_i32, %c0_i32_0 : i32, i32
  }
  func.func @transform_3(%arg0: i32) -> (i32, i32) {
    %c0_i32 = arith.constant 0 : i32
    %c0_i32_0 = arith.constant 0 : i32
    %c0_i32_1 = arith.constant 0 : i32
    return %c0_i32, %c0_i32_0 : i32, i32
  }
  func.func @transform_4(%arg0: i32) -> (i32, i32) {
    %c0_i32 = arith.constant 0 : i32
    %c0_i32_0 = arith.constant 0 : i32
    return %arg0, %c0_i32 : i32, i32
  }
  func.func @transform_5(%arg0: i32) -> (i32, i32, i32) {
    %c0_i32 = arith.constant 0 : i32
    %c0_i32_0 = arith.constant 0 : i32
    %c0_i32_1 = arith.constant 0 : i32
    return %arg0, %c0_i32, %c0_i32_0 : i32, i32, i32
  }
}

module attributes {stable_mosaic.version = 11 : i64} {
  func.func @_conv1x1_stats_kernel(%arg0: i32, %arg1: memref<256x128xf32, #tpu.memory_space<vmem>>, %arg2: memref<1x128xf32, #tpu.memory_space<vmem>>, %arg3: memref<1x128xf32, #tpu.memory_space<vmem>>, %arg4: memref<128x128xf32, #tpu.memory_space<vmem>>, %arg5: memref<256x128xf32, #tpu.memory_space<vmem>>, %arg6: memref<1x2x128xf32, #tpu.memory_space<vmem>>) attributes {dimension_semantics = [#tpu.dimension_semantics<parallel>], iteration_bounds = array<i64: 2>, scalar_prefetch = 0 : i64, scratch_operands = 0 : i64, tpu.core_type = #tpu.core_type<tc>, window_params = [{transform_indices = @transform_0, window_bounds = array<i64: 256, 128>}, {pipeline_mode = #tpu.pipeline_mode<synchronous>, transform_indices = @transform_1, window_bounds = array<i64: 1, 128>}, {pipeline_mode = #tpu.pipeline_mode<synchronous>, transform_indices = @transform_2, window_bounds = array<i64: 1, 128>}, {pipeline_mode = #tpu.pipeline_mode<synchronous>, transform_indices = @transform_3, window_bounds = array<i64: 128, 128>}, {transform_indices = @transform_4, window_bounds = array<i64: 256, 128>}, {transform_indices = @transform_5, window_bounds = array<i64: 1, 2, 128>}]} {
    %c0 = arith.constant 0 : index
    %c0_0 = arith.constant 0 : index
    %0 = vector.load %arg1[%c0, %c0_0] : memref<256x128xf32, #tpu.memory_space<vmem>>, vector<256x128xf32>
    %c0_1 = arith.constant 0 : index
    %c0_2 = arith.constant 0 : index
    %1 = vector.load %arg2[%c0_1, %c0_2] : memref<1x128xf32, #tpu.memory_space<vmem>>, vector<1x128xf32>
    %2 = vector.broadcast %1 : vector<1x128xf32> to vector<256x128xf32>
    %3 = arith.mulf %0, %2 : vector<256x128xf32>
    %c0_3 = arith.constant 0 : index
    %c0_4 = arith.constant 0 : index
    %4 = vector.load %arg3[%c0_3, %c0_4] : memref<1x128xf32, #tpu.memory_space<vmem>>, vector<1x128xf32>
    %5 = vector.broadcast %4 : vector<1x128xf32> to vector<256x128xf32>
    %6 = arith.addf %3, %5 : vector<256x128xf32>
    %cst = arith.constant 0.000000e+00 : f32
    %7 = vector.broadcast %cst : f32 to vector<256x128xf32>
    %8 = arith.maximumf %6, %7 : vector<256x128xf32>
    %c0_5 = arith.constant 0 : index
    %c0_6 = arith.constant 0 : index
    %9 = vector.load %arg4[%c0_5, %c0_6] : memref<128x128xf32, #tpu.memory_space<vmem>>, vector<128x128xf32>
    %cst_7 = arith.constant dense<0.000000e+00> : vector<256x128xf32>
    %10 = tpu.matmul %8, %9, %cst_7 {dimension_numbers = #tpu.dot_dimension_numbers<[1], [0], [0], [1], [0, 0, 1, 1], [], []>} : vector<256x128xf32>, vector<128x128xf32>, vector<256x128xf32> -> vector<256x128xf32>
    %c0_8 = arith.constant 0 : index
    %c0_9 = arith.constant 0 : index
    %11 = vector.load %arg5[%c0_8, %c0_9] : memref<256x128xf32, #tpu.memory_space<vmem>>, vector<256x128xf32>
    tpu.vector_store %arg5[%c0_8, %c0_9], %10 {strides = array<i32>} : memref<256x128xf32, #tpu.memory_space<vmem>>, vector<256x128xf32>,
    %cst_10 = arith.constant dense<0.000000e+00> : vector<128xf32>
    %12 = vector.multi_reduction <add>, %10, %cst_10 [0] : vector<256x128xf32> to vector<128xf32>
    %13 = vector.shape_cast %12 : vector<128xf32> to vector<1x128xf32>
    %14 = arith.mulf %10, %10 : vector<256x128xf32>
    %cst_11 = arith.constant dense<0.000000e+00> : vector<128xf32>
    %15 = vector.multi_reduction <add>, %14, %cst_11 [0] : vector<256x128xf32> to vector<128xf32>
    %16 = vector.shape_cast %15 : vector<128xf32> to vector<1x128xf32>
    %17 = tpu.concatenate %13, %16 in 0 : vector<1x128xf32>, vector<1x128xf32> -> vector<2x128xf32>
    %18 = vector.shape_cast %17 : vector<2x128xf32> to vector<1x2x128xf32>
    %c0_12 = arith.constant 0 : index
    %c0_13 = arith.constant 0 : index
    %c0_14 = arith.constant 0 : index
    %19 = vector.load %arg6[%c0_12, %c0_13, %c0_14] : memref<1x2x128xf32, #tpu.memory_space<vmem>>, vector<1x2x128xf32>
    tpu.vector_store %arg6[%c0_12, %c0_13, %c0_14], %18 {strides = array<i32>} : memref<1x2x128xf32, #tpu.memory_space<vmem>>, vector<1x2x128xf32>,
    return
  }
  func.func @transform_0(%arg0: i32) -> (i32, i32) {
    %c0_i32 = arith.constant 0 : i32
    %c0_i32_0 = arith.constant 0 : i32
    return %arg0, %c0_i32 : i32, i32
  }
  func.func @transform_1(%arg0: i32) -> (i32, i32) {
    %c0_i32 = arith.constant 0 : i32
    %c0_i32_0 = arith.constant 0 : i32
    %c0_i32_1 = arith.constant 0 : i32
    return %c0_i32, %c0_i32_0 : i32, i32
  }
  func.func @transform_2(%arg0: i32) -> (i32, i32) {
    %c0_i32 = arith.constant 0 : i32
    %c0_i32_0 = arith.constant 0 : i32
    %c0_i32_1 = arith.constant 0 : i32
    return %c0_i32, %c0_i32_0 : i32, i32
  }
  func.func @transform_3(%arg0: i32) -> (i32, i32) {
    %c0_i32 = arith.constant 0 : i32
    %c0_i32_0 = arith.constant 0 : i32
    %c0_i32_1 = arith.constant 0 : i32
    return %c0_i32, %c0_i32_0 : i32, i32
  }
  func.func @transform_4(%arg0: i32) -> (i32, i32) {
    %c0_i32 = arith.constant 0 : i32
    %c0_i32_0 = arith.constant 0 : i32
    return %arg0, %c0_i32 : i32, i32
  }
  func.func @transform_5(%arg0: i32) -> (i32, i32, i32) {
    %c0_i32 = arith.constant 0 : i32
    %c0_i32_0 = arith.constant 0 : i32
    %c0_i32_1 = arith.constant 0 : i32
    return %arg0, %c0_i32, %c0_i32_0 : i32, i32, i32
  }
}

</mosaic_0001>

<llo_original>
// kernel: debottleneck_forward.4
$region0: #{debottleneck_forward.4}
  #allocation0 [shape = 'u32[]', space=smem, size = 0x4, offset = 0x4, fixed_abs, tag = 'smem constant byte address 0x4 - core index']
  #allocation1 [shape = 'u32[72,128]{1,0:T(1,128)}', space=vmem, size = 0x9000, scoped, tag = 'internal scratch']
  %s0 = inlined_call_operand.vmem [shape: f32[512,128], index: 0, kind: input, shape index: {}]
  %s1 = inlined_call_operand.vmem [shape: f32[1,128], index: 1, kind: input, shape index: {}]
  %s2 = inlined_call_operand.vmem [shape: f32[1,128], index: 2, kind: input, shape index: {}]
  %s3 = inlined_call_operand.vmem [shape: f32[128,128], index: 3, kind: input, shape index: {}]
  %s4 = inlined_call_operand.vmem [shape: f32[512,128], index: 4, kind: output, shape index: {0}]
  %s5 = inlined_call_operand.vmem [shape: f32[2,2,128], index: 5, kind: output, shape index: {1}]
  %6 = xla_tuple %s4, %s5
  %s7 = sld [smem:[#allocation0]]
  $region57: #{debottleneck_forward.4} parent=0
    _
  %s9 = ssub.s32 1, %s7
  %s10 = scalar_select 0, %s9, %s7
  loop: start=0, step=1, limit=4
  $region2: #{debottleneck_forward.4} parent=0 // loop_pre_header
    _
  $region3: #{debottleneck_forward.4} parent=0 // loop_header
    %s12 = sphi 0, %s16
    %p13 = scmp.ge.s32.totalorder %s12, 4
    %s22 = sphi 0, %s24
    %s25 = sphi 0, %s22
    %s26 = sphi 0, %s25
    %s42 = sphi 0, %s26
    %s46 = sphi 0, %s46
    %s48 = sphi 0, %s46
    %s49 = sphi 0, %s48
    %s63 = sphi 0, %s49
    %s67 = sphi 0, %s67
    %s69 = sphi 0, %s67
    %s70 = sphi 0, %s69
    %s84 = sphi 0, %s70
    %s88 = sphi 0, %s88
    %s90 = sphi 0, %s88
    %s91 = sphi 0, %s90
    %s105 = sphi 0, %s91
    %s111 = sphi 0, %s113
    %s114 = sphi 0, %s111
    %s115 = sphi 0, %s114
    %s131 = sphi 0, %s115
    %s137 = sphi 0, %s139
    %s140 = sphi 0, %s137
    %s141 = sphi 0, %s140
    %s157 = sphi 0, %s141
  $region4: #{debottleneck_forward.4} parent=0 // loop_header_branch
    %15 = sbr.rel (%p13) target = $region8
  $region5: #{debottleneck_forward.4} parent=0 // loop_body
    %s17 = ssub.s32 %s12, 1
    %s18 = ssub.s32 %s12, 2
    %s19 = sadd.s32 %s12, 1
    %s20 = ssub.s32 %s12, %s19
    %p21 = scmp.eq.s32.totalorder %s20, 0
    %s23 = sadd.s32 %s22, 1
    %s24 = scalar_select %p21, %s22, %s23
    %p27 = pneg %p21
    %p28 = scmp.eq.s32.totalorder %s12, 1
    %p29 = por %p27, %p28
    %p30 = scmp.ne.s32.totalorder %s22, %s25
    %p31 = scmp.eq.s32.totalorder %s12, 0
    %p32 = por %p30, %p31
    %p33 = scmp.ne.s32.totalorder %s22, %s25
    %p34 = scmp.eq.s32.totalorder %s17, 1
    %p35 = por %p33, %p34
    %p36 = scmp.ne.s32.totalorder %s25, %s26
    %p37 = scmp.eq.s32.totalorder %s17, 0
    %p38 = por %p36, %p37
    %p39 = scmp.ne.s32.totalorder %s25, %s26
    %p40 = scmp.eq.s32.totalorder %s18, 1
    %p41 = por %p39, %p40
    %p43 = scmp.ne.s32.totalorder %s26, %s42
    %p44 = scmp.eq.s32.totalorder %s18, 0
    %p45 = por %p43, %p44
    %s47 = sadd.s32 %s46, 1
    %p50 = scmp.eq.s32.totalorder %s12, 1
    %p51 = scmp.ne.s32.totalorder %s46, %s48
    %p52 = scmp.eq.s32.totalorder %s12, 0
    %p53 = por %p51, %p52
    %p54 = scmp.ne.s32.totalorder %s46, %s48
    %p55 = scmp.eq.s32.totalorder %s17, 1
    %p56 = por %p54, %p55
    %p57 = scmp.ne.s32.totalorder %s48, %s49
    %p58 = scmp.eq.s32.totalorder %s17, 0
    %p59 = por %p57, %p58
    %p60 = scmp.ne.s32.totalorder %s48, %s49
    %p61 = scmp.eq.s32.totalorder %s18, 1
    %p62 = por %p60, %p61
    %p64 = scmp.ne.s32.totalorder %s49, %s63
    %p65 = scmp.eq.s32.totalorder %s18, 0
    %p66 = por %p64, %p65
    %s68 = sadd.s32 %s67, 1
    %p71 = scmp.eq.s32.totalorder %s12, 1
    %p72 = scmp.ne.s32.totalorder %s67, %s69
    %p73 = scmp.eq.s32.totalorder %s12, 0
    %p74 = por %p72, %p73
    %p75 = scmp.ne.s32.totalorder %s67, %s69
    %p76 = scmp.eq.s32.totalorder %s17, 1
    %p77 = por %p75, %p76
    %p78 = scmp.ne.s32.totalorder %s69, %s70
    %p79 = scmp.eq.s32.totalorder %s17, 0
    %p80 = por %p78, %p79
    %p81 = scmp.ne.s32.totalorder %s69, %s70
    %p82 = scmp.eq.s32.totalorder %s18, 1
    %p83 = por %p81, %p82
    %p85 = scmp.ne.s32.totalorder %s70, %s84
    %p86 = scmp.eq.s32.totalorder %s18, 0
    %p87 = por %p85, %p86
    %s89 = sadd.s32 %s88, 1
    %p92 = scmp.eq.s32.totalorder %s12, 1
    %p93 = scmp.ne.s32.totalorder %s88, %s90
    %p94 = scmp.eq.s32.totalorder %s12, 0
    %p95 = por %p93, %p94
    %p96 = scmp.ne.s32.totalorder %s88, %s90
    %p97 = scmp.eq.s32.totalorder %s17, 1
    %p98 = por %p96, %p97
    %p99 = scmp.ne.s32.totalorder %s90, %s91
    %p100 = scmp.eq.s32.totalorder %s17, 0
    %p101 = por %p99, %p100
    %p102 = scmp.ne.s32.totalorder %s90, %s91
    %p103 = scmp.eq.s32.totalorder %s18, 1
    %p104 = por %p102, %p103
    %p106 = scmp.ne.s32.totalorder %s91, %s105
    %p107 = scmp.eq.s32.totalorder %s18, 0
    %p108 = por %p106, %p107
    %s109 = ssub.s32 %s12, %s19
    %p110 = scmp.eq.s32.totalorder %s109, 0
    %s112 = sadd.s32 %s111, 1
    %s113 = scalar_select %p110, %s111, %s112
    %p116 = pneg %p110
    %p117 = scmp.eq.s32.totalorder %s12, 1
    %p118 = por %p116, %p117
    %p119 = scmp.ne.s32.totalorder %s111, %s114
    %p120 = scmp.eq.s32.totalorder %s12, 0
    %p121 = por %p119, %p120
    %p122 = scmp.ne.s32.totalorder %s111, %s114
    %p123 = scmp.eq.s32.totalorder %s17, 1
    %p124 = por %p122, %p123
    %p125 = scmp.ne.s32.totalorder %s114, %s115
    %p126 = scmp.eq.s32.totalorder %s17, 0
    %p127 = por %p125, %p126
    %p128 = scmp.ne.s32.totalorder %s114, %s115
    %p129 = scmp.eq.s32.totalorder %s18, 1
    %p130 = por %p128, %p129
    %p132 = scmp.ne.s32.totalorder %s115, %s131
    %p133 = scmp.eq.s32.totalorder %s18, 0
    %p134 = por %p132, %p133
    %s135 = ssub.s32 %s12, %s19
    %p136 = scmp.eq.s32.totalorder %s135, 0
    %s138 = sadd.s32 %s137, 1
    %s139 = scalar_select %p136, %s137, %s138
    %p142 = pneg %p136
    %p143 = scmp.eq.s32.totalorder %s12, 1
    %p144 = por %p142, %p143
    %p145 = scmp.ne.s32.totalorder %s137, %s140
    %p146 = scmp.eq.s32.totalorder %s12, 0
    %p147 = por %p145, %p146
    %p148 = scmp.ne.s32.totalorder %s137, %s140
    %p149 = scmp.eq.s32.totalorder %s17, 1
    %p150 = por %p148, %p149
    %p151 = scmp.ne.s32.totalorder %s140, %s141
    %p152 = scmp.eq.s32.totalorder %s17, 0
    %p153 = por %p151, %p152
    %p154 = scmp.ne.s32.totalorder %s140, %s141
    %p155 = scmp.eq.s32.totalorder %s18, 1
    %p156 = por %p154, %p155
    %p158 = scmp.ne.s32.totalorder %s141, %s157
    %p159 = scmp.eq.s32.totalorder %s18, 0
    %p160 = por %p158, %p159
    %p161 = scmp.le.s32.totalorder 1, %s12
    %p162 = scmp.lt.s32.totalorder %s12, 3
    %p163 = pnand %p161, %p162
    %p164 = pneg %p163
    // Predicated region
    $region9: #{debottleneck_forward.4} parent=5 // pred_check
      _
    $region10: #{debottleneck_forward.4} parent=5 // pred_check_branch
      %166 = sbr.rel (%p163) target = $region12
    $region11: #{debottleneck_forward.4} parent=5 // pred_region
      %s167 = ssub.s32 %s12, 1
      // Predicated region
      $region13: #{debottleneck_forward.4} parent=11 // pred_check
        %p168 = pneg %p59
      $region14: #{debottleneck_forward.4} parent=11 // pred_check_branch
        %170 = sbr.rel (%p168) target = $region16
      $region15: #{debottleneck_forward.4} parent=11 // pred_region
        _
      $region16: #{debottleneck_forward.4} parent=11 // pred_fallthru
        _
      // Predicated region
      $region17: #{debottleneck_forward.4} parent=11 // pred_check
        %p171 = pneg %p80
      $region18: #{debottleneck_forward.4} parent=11 // pred_check_branch
        %173 = sbr.rel (%p171) target = $region20
      $region19: #{debottleneck_forward.4} parent=11 // pred_region
        _
      $region20: #{debottleneck_forward.4} parent=11 // pred_fallthru
        _
      // Predicated region
      $region21: #{debottleneck_forward.4} parent=11 // pred_check
        %p174 = pneg %p101
      $region22: #{debottleneck_forward.4} parent=11 // pred_check_branch
        %176 = sbr.rel (%p174) target = $region24
      $region23: #{debottleneck_forward.4} parent=11 // pred_region
        _
      $region24: #{debottleneck_forward.4} parent=11 // pred_fallthru
        _
    $region12: #{debottleneck_forward.4} parent=5 // pred_fallthru
      _
    %p177 = scmp.lt.s32.totalorder %s12, 2
    // Predicated region
    $region25: #{debottleneck_forward.4} parent=5 // pred_check
      %p178 = pneg %p177
    $region26: #{debottleneck_forward.4} parent=5 // pred_check_branch
      %180 = sbr.rel (%p178) target = $region28
    $region27: #{debottleneck_forward.4} parent=5 // pred_region
      // Predicated region
      $region29: #{debottleneck_forward.4} parent=27 // pred_check
        %p181 = pneg %p32
      $region30: #{debottleneck_forward.4} parent=27 // pred_check_branch
        %183 = sbr.rel (%p181) target = $region32
      $region31: #{debottleneck_forward.4} parent=27 // pred_region
        %s184 = smul.u32 32, %s12
        %p185 = scmp.lt.s32.totalorder %s184, 63
        %s186 = scalar_select %p185, %s184, 63
        %s187 = smul.addr %s186, 8
        %s188 = scalar_lea.vmem %s0, %s187
        %s189 = smul.u32 32, %s12
      $region32: #{debottleneck_forward.4} parent=27 // pred_fallthru
        _
    $region28: #{debottleneck_forward.4} parent=5 // pred_fallthru
      _
    %p190 = scmp.le.s32.totalorder 1, %s12
    %p191 = scmp.lt.s32.totalorder %s12, 3
    %p192 = pnand %p190, %p191
    %p193 = pneg %p192
    // Predicated region
    $region33: #{debottleneck_forward.4} parent=5 // pred_check
      _
    $region34: #{debottleneck_forward.4} parent=5 // pred_check_branch
      %195 = sbr.rel (%p192) target = $region36
    $region35: #{debottleneck_forward.4} parent=5 // pred_region
      %s196 = ssub.s32 %s12, 1
      %s197 = smul.u32 32, %s17
      %p198 = scmp.lt.s32.totalorder %s197, 63
      %s199 = scalar_select %p198, %s197, 63
      %s200 = smul.addr %s199, 8
      %s201 = scalar_lea.vmem %s0, %s200
      %p202 = pneg %p38
      %p203 = pneg %p35
      %p204 = pneg %p59
      %p205 = pneg %p56
      %p206 = pneg %p80
      %p207 = pneg %p77
      %p208 = pneg %p101
      %p209 = pneg %p98
      %p210 = pneg %p127
      %p211 = pneg %p124
      %s212 = smul.u32 32, %s17
      %p213 = scmp.lt.s32.totalorder %s212, 63
      %s214 = scalar_select %p213, %s212, 63
      %s215 = smul.addr %s214, 8
      %s216 = scalar_lea.vmem %s4, %s215
      %p217 = pneg %p153
      %p218 = pneg %p150
      %p219 = scmp.lt.s32.totalorder %s17, 1
      %s220 = scalar_select %p219, %s17, 1
      %s221 = smul.addr %s220, 2
      %s222 = scalar_lea.vmem %s5, %s221
      %s223 = smul.u32 32, %s17
      %p224 = scmp.lt.s32.totalorder %s223, 63
      %s225 = scalar_select %p224, %s223, 63
      %s226 = smul.addr %s225, 8
      %s227 = scalar_lea.vmem %s0, %s226
      %s228 = smul.u32 32, %s17
      %s229 = smul.u32 32, %s17
      %p230 = scmp.lt.s32.totalorder %s229, 63
      %s231 = scalar_select %p230, %s229, 63
      %s232 = smul.addr %s231, 8
      %s233 = scalar_lea.vmem %s4, %s232
      %s234 = smul.u32 32, %s17
      %p235 = scmp.lt.s32.totalorder %s17, 1
      %s236 = scalar_select %p235, %s17, 1
      %s237 = smul.addr %s236, 2
      %s238 = scalar_lea.vmem %s5, %s237
      %v239 = vld [vmem:[%s227] sm:$0xff]
      %v240 = vld [vmem:[%s227 + $0x8] sm:$0xff]
      %v241 = vld [vmem:[%s227 + $0x10] sm:$0xff]
      %v242 = vld [vmem:[%s227 + $0x18] sm:$0xff]
      %v243 = vld [vmem:[%s227 + $0x20] sm:$0xff]
      %v244 = vld [vmem:[%s227 + $0x28] sm:$0xff]
      %v245 = vld [vmem:[%s227 + $0x30] sm:$0xff]
      %v246 = vld [vmem:[%s227 + $0x38] sm:$0xff]
      %v247 = vld [vmem:[%s227 + $0x40] sm:$0xff]
      %v248 = vld [vmem:[%s227 + $0x48] sm:$0xff]
      %v249 = vld [vmem:[%s227 + $0x50] sm:$0xff]
      %v250 = vld [vmem:[%s227 + $0x58] sm:$0xff]
      %v251 = vld [vmem:[%s227 + $0x60] sm:$0xff]
      %v252 = vld [vmem:[%s227 + $0x68] sm:$0xff]
      %v253 = vld [vmem:[%s227 + $0x70] sm:$0xff]
      %v254 = vld [vmem:[%s227 + $0x78] sm:$0xff]
      %v255 = vld [vmem:[%s227 + $0x80] sm:$0xff]
      %v256 = vld [vmem:[%s227 + $0x88] sm:$0xff]
      %v257 = vld [vmem:[%s227 + $0x90] sm:$0xff]
      %v258 = vld [vmem:[%s227 + $0x98] sm:$0xff]
      %v259 = vld [vmem:[%s227 + $0xa0] sm:$0xff]
      %v260 = vld [vmem:[%s227 + $0xa8] sm:$0xff]
      %v261 = vld [vmem:[%s227 + $0xb0] sm:$0xff]
      %v262 = vld [vmem:[%s227 + $0xb8] sm:$0xff]
      %v263 = vld [vmem:[%s227 + $0xc0] sm:$0xff]
      %v264 = vld [vmem:[%s227 + $0xc8] sm:$0xff]
      %v265 = vld [vmem:[%s227 + $0xd0] sm:$0xff]
      %v266 = vld [vmem:[%s227 + $0xd8] sm:$0xff]
      %v267 = vld [vmem:[%s227 + $0xe0] sm:$0xff]
      %v268 = vld [vmem:[%s227 + $0xe8] sm:$0xff]
      %v269 = vld [vmem:[%s227 + $0xf0] sm:$0xff]
      %v270 = vld [vmem:[%s227 + $0xf8] sm:$0xff]
      %v271 = vld [vmem:[%s3] sm:$0xff]
      %v272 = vld [vmem:[%s3 + $0x8] sm:$0xff]
      %v273 = vld [vmem:[%s3 + $0x10] sm:$0xff]
      %v274 = vld [vmem:[%s3 + $0x18] sm:$0xff]
      %v275 = vld [vmem:[%s3 + $0x20] sm:$0xff]
      %v276 = vld [vmem:[%s3 + $0x28] sm:$0xff]
      %v277 = vld [vmem:[%s3 + $0x30] sm:$0xff]
      %v278 = vld [vmem:[%s3 + $0x38] sm:$0xff]
      %v279 = vld [vmem:[%s3 + $0x40] sm:$0xff]
      %v280 = vld [vmem:[%s3 + $0x48] sm:$0xff]
      %v281 = vld [vmem:[%s3 + $0x50] sm:$0xff]
      %v282 = vld [vmem:[%s3 + $0x58] sm:$0xff]
      %v283 = vld [vmem:[%s3 + $0x60] sm:$0xff]
      %v284 = vld [vmem:[%s3 + $0x68] sm:$0xff]
      %v285 = vld [vmem:[%s3 + $0x70] sm:$0xff]
      %v286 = vld [vmem:[%s3 + $0x78] sm:$0xff]
      %287 = vmatpush.msra.mxu0 %v286
      %288 = vmatpush.msra.mxu0 %v285
      %289 = vmatpush.msra.mxu0 %v284
      %290 = vmatpush.msra.mxu0 %v283
      %291 = vmatpush.msra.mxu0 %v282
      %292 = vmatpush.msra.mxu0 %v281
      %293 = vmatpush.msra.mxu0 %v280
      %294 = vmatpush.msra.mxu0 %v279
      %295 = vmatpush.msra.mxu0 %v278
      %296 = vmatpush.msra.mxu0 %v277
      %297 = vmatpush.msra.mxu0 %v276
      %298 = vmatpush.msra.mxu0 %v275
      %299 = vmatpush.msra.mxu0 %v274
      %300 = vmatpush.msra.mxu0 %v273
      %301 = vmatpush.msra.mxu0 %v272
      %302 = vmatpush.msra.mxu0 %v271
      %303 = vmatmul.f32.gmra.mxu0 %v239
      %v304 = vpop.f32.mrf.mxu0
      %v305 = vadd.f32 0.0, %v304
      %306 = vmatmul.f32.gmra.mxu0 %v240
      %v307 = vpop.f32.mrf.mxu0
      %v308 = vadd.f32 0.0, %v307
      %309 = vmatmul.f32.gmra.mxu0 %v241
      %v310 = vpop.f32.mrf.mxu0
      %v311 = vadd.f32 0.0, %v310
      %312 = vmatmul.f32.gmra.mxu0 %v242
      %v313 = vpop.f32.mrf.mxu0
      %v314 = vadd.f32 0.0, %v313
      %315 = vmatmul.f32.gmra.mxu0 %v243
      %v316 = vpop.f32.mrf.mxu0
      %v317 = vadd.f32 0.0, %v316
      %318 = vmatmul.f32.gmra.mxu0 %v244
      %v319 = vpop.f32.mrf.mxu0
      %v320 = vadd.f32 0.0, %v319
      %321 = vmatmul.f32.gmra.mxu0 %v245
      %v322 = vpop.f32.mrf.mxu0
      %v323 = vadd.f32 0.0, %v322
      %324 = vmatmul.f32.gmra.mxu0 %v246
      %v325 = vpop.f32.mrf.mxu0
      %v326 = vadd.f32 0.0, %v325
      %327 = vmatmul.f32.gmra.mxu0 %v247
      %v328 = vpop.f32.mrf.mxu0
      %v329 = vadd.f32 0.0, %v328
      %330 = vmatmul.f32.gmra.mxu0 %v248
      %v331 = vpop.f32.mrf.mxu0
      %v332 = vadd.f32 0.0, %v331
      %333 = vmatmul.f32.gmra.mxu0 %v249
      %v334 = vpop.f32.mrf.mxu0
      %v335 = vadd.f32 0.0, %v334
      %336 = vmatmul.f32.gmra.mxu0 %v250
      %v337 = vpop.f32.mrf.mxu0
      %v338 = vadd.f32 0.0, %v337
      %339 = vmatmul.f32.gmra.mxu0 %v251
      %v340 = vpop.f32.mrf.mxu0
      %v341 = vadd.f32 0.0, %v340
      %342 = vmatmul.f32.gmra.mxu0 %v252
      %v343 = vpop.f32.mrf.mxu0
      %v344 = vadd.f32 0.0, %v343
      %345 = vmatmul.f32.gmra.mxu0 %v253
      %v346 = vpop.f32.mrf.mxu0
      %v347 = vadd.f32 0.0, %v346
      %348 = vmatmul.f32.gmra.mxu0 %v254
      %v349 = vpop.f32.mrf.mxu0
      %v350 = vadd.f32 0.0, %v349
      %351 = vmatmul.f32.gmra.mxu0 %v255
      %v352 = vpop.f32.mrf.mxu0
      %v353 = vadd.f32 0.0, %v352
      %354 = vmatmul.f32.gmra.mxu0 %v256
      %v355 = vpop.f32.mrf.mxu0
      %v356 = vadd.f32 0.0, %v355
      %357 = vmatmul.f32.gmra.mxu0 %v257
      %v358 = vpop.f32.mrf.mxu0
      %v359 = vadd.f32 0.0, %v358
      %360 = vmatmul.f32.gmra.mxu0 %v258
      %v361 = vpop.f32.mrf.mxu0
      %v362 = vadd.f32 0.0, %v361
      %363 = vmatmul.f32.gmra.mxu0 %v259
      %v364 = vpop.f32.mrf.mxu0
      %v365 = vadd.f32 0.0, %v364
      %366 = vmatmul.f32.gmra.mxu0 %v260
      %v367 = vpop.f32.mrf.mxu0
      %v368 = vadd.f32 0.0, %v367
      %369 = vmatmul.f32.gmra.mxu0 %v261
      %v370 = vpop.f32.mrf.mxu0
      %v371 = vadd.f32 0.0, %v370
      %372 = vmatmul.f32.gmra.mxu0 %v262
      %v373 = vpop.f32.mrf.mxu0
      %v374 = vadd.f32 0.0, %v373
      %375 = vmatmul.f32.gmra.mxu0 %v263
      %v376 = vpop.f32.mrf.mxu0
      %v377 = vadd.f32 0.0, %v376
      %378 = vmatmul.f32.gmra.mxu0 %v264
      %v379 = vpop.f32.mrf.mxu0
      %v380 = vadd.f32 0.0, %v379
      %381 = vmatmul.f32.gmra.mxu0 %v265
      %v382 = vpop.f32.mrf.mxu0
      %v383 = vadd.f32 0.0, %v382
      %384 = vmatmul.f32.gmra.mxu0 %v266
      %v385 = vpop.f32.mrf.mxu0
      %v386 = vadd.f32 0.0, %v385
      %387 = vmatmul.f32.gmra.mxu0 %v267
      %v388 = vpop.f32.mrf.mxu0
      %v389 = vadd.f32 0.0, %v388
      %390 = vmatmul.f32.gmra.mxu0 %v268
      %v391 = vpop.f32.mrf.mxu0
      %v392 = vadd.f32 0.0, %v391
      %393 = vmatmul.f32.gmra.mxu0 %v269
      %v394 = vpop.f32.mrf.mxu0
      %v395 = vadd.f32 0.0, %v394
      %396 = vmatmul.f32.gmra.mxu0 %v270
      %v397 = vpop.f32.mrf.mxu0
      %v398 = vadd.f32 0.0, %v397
      %399 = vdwg.mxu0
      %400 = vst [vmem:[%s233] sm:$0xff] %v305
      %401 = vst [vmem:[%s233 + $0x8] sm:$0xff] %v308
      %402 = vst [vmem:[%s233 + $0x10] sm:$0xff] %v311
      %403 = vst [vmem:[%s233 + $0x18] sm:$0xff] %v314
      %404 = vst [vmem:[%s233 + $0x20] sm:$0xff] %v317
      %405 = vst [vmem:[%s233 + $0x28] sm:$0xff] %v320
      %406 = vst [vmem:[%s233 + $0x30] sm:$0xff] %v323
      %407 = vst [vmem:[%s233 + $0x38] sm:$0xff] %v326
      %408 = vst [vmem:[%s233 + $0x40] sm:$0xff] %v329
      %409 = vst [vmem:[%s233 + $0x48] sm:$0xff] %v332
      %410 = vst [vmem:[%s233 + $0x50] sm:$0xff] %v335
      %411 = vst [vmem:[%s233 + $0x58] sm:$0xff] %v338
      %412 = vst [vmem:[%s233 + $0x60] sm:$0xff] %v341
      %413 = vst [vmem:[%s233 + $0x68] sm:$0xff] %v344
      %414 = vst [vmem:[%s233 + $0x70] sm:$0xff] %v347
      %415 = vst [vmem:[%s233 + $0x78] sm:$0xff] %v350
      %416 = vst [vmem:[%s233 + $0x80] sm:$0xff] %v353
      %417 = vst [vmem:[%s233 + $0x88] sm:$0xff] %v356
      %418 = vst [vmem:[%s233 + $0x90] sm:$0xff] %v359
      %419 = vst [vmem:[%s233 + $0x98] sm:$0xff] %v362
      %420 = vst [vmem:[%s233 + $0xa0] sm:$0xff] %v365
      %421 = vst [vmem:[%s233 + $0xa8] sm:$0xff] %v368
      %422 = vst [vmem:[%s233 + $0xb0] sm:$0xff] %v371
      %423 = vst [vmem:[%s233 + $0xb8] sm:$0xff] %v374
      %424 = vst [vmem:[%s233 + $0xc0] sm:$0xff] %v377
      %425 = vst [vmem:[%s233 + $0xc8] sm:$0xff] %v380
      %426 = vst [vmem:[%s233 + $0xd0] sm:$0xff] %v383
      %427 = vst [vmem:[%s233 + $0xd8] sm:$0xff] %v386
      %428 = vst [vmem:[%s233 + $0xe0] sm:$0xff] %v389
      %429 = vst [vmem:[%s233 + $0xe8] sm:$0xff] %v392
      %430 = vst [vmem:[%s233 + $0xf0] sm:$0xff] %v395
      %431 = vst [vmem:[%s233 + $0xf8] sm:$0xff] %v398
      %v432 = vadd.f32 %v305, %v308
      %v433 = vadd.f32 %v432, %v311
      %v434 = vadd.f32 %v433, %v314
      %v435 = vadd.f32 %v434, %v317
      %v436 = vadd.f32 %v435, %v320
      %v437 = vadd.f32 %v436, %v323
      %v438 = vadd.f32 %v437, %v326
      %v439 = vadd.f32 %v438, %v329
      %v440 = vadd.f32 %v439, %v332
      %v441 = vadd.f32 %v440, %v335
      %v442 = vadd.f32 %v441, %v338
      %v443 = vadd.f32 %v442, %v341
      %v444 = vadd.f32 %v443, %v344
      %v445 = vadd.f32 %v444, %v347
      %v446 = vadd.f32 %v445, %v350
      %v447 = vadd.f32 %v446, %v353
      %v448 = vadd.f32 %v447, %v356
      %v449 = vadd.f32 %v448, %v359
      %v450 = vadd.f32 %v449, %v362
      %v451 = vadd.f32 %v450, %v365
      %v452 = vadd.f32 %v451, %v368
      %v453 = vadd.f32 %v452, %v371
      %v454 = vadd.f32 %v453, %v374
      %v455 = vadd.f32 %v454, %v377
      %v456 = vadd.f32 %v455, %v380
      %v457 = vadd.f32 %v456, %v383
      %v458 = vadd.f32 %v457, %v386
      %v459 = vadd.f32 %v458, %v389
      %v460 = vadd.f32 %v459, %v392
      %v461 = vadd.f32 %v460, %v395
      %v462 = vadd.f32 %v461, %v398
      %v463 = vrot.slane %v462, 4
      %v464 = vadd.f32 %v462, %v463
      %v465 = vrot.slane %v464, 2
      %v466 = vadd.f32 %v464, %v465
      %v467 = vrot.slane %v466, 1
      %v468 = vadd.f32 %v466, %v467
      %v469 = vmul.f32 %v305, %v305
      %v470 = vmul.f32 %v308, %v308
      %v471 = vmul.f32 %v311, %v311
      %v472 = vmul.f32 %v314, %v314
      %v473 = vmul.f32 %v317, %v317
      %v474 = vmul.f32 %v320, %v320
      %v475 = vmul.f32 %v323, %v323
      %v476 = vmul.f32 %v326, %v326
      %v477 = vmul.f32 %v329, %v329
      %v478 = vmul.f32 %v332, %v332
      %v479 = vmul.f32 %v335, %v335
      %v480 = vmul.f32 %v338, %v338
      %v481 = vmul.f32 %v341, %v341
      %v482 = vmul.f32 %v344, %v344
      %v483 = vmul.f32 %v347, %v347
      %v484 = vmul.f32 %v350, %v350
      %v485 = vmul.f32 %v353, %v353
      %v486 = vmul.f32 %v356, %v356
      %v487 = vmul.f32 %v359, %v359
      %v488 = vmul.f32 %v362, %v362
      %v489 = vmul.f32 %v365, %v365
      %v490 = vmul.f32 %v368, %v368
      %v491 = vmul.f32 %v371, %v371
      %v492 = vmul.f32 %v374, %v374
      %v493 = vmul.f32 %v377, %v377
      %v494 = vmul.f32 %v380, %v380
      %v495 = vmul.f32 %v383, %v383
      %v496 = vmul.f32 %v386, %v386
      %v497 = vmul.f32 %v389, %v389
      %v498 = vmul.f32 %v392, %v392
      %v499 = vmul.f32 %v395, %v395
      %v500 = vmul.f32 %v398, %v398
      %v501 = vadd.f32 %v469, %v470
      %v502 = vadd.f32 %v501, %v471
      %v503 = vadd.f32 %v502, %v472
      %v504 = vadd.f32 %v503, %v473
      %v505 = vadd.f32 %v504, %v474
      %v506 = vadd.f32 %v505, %v475
      %v507 = vadd.f32 %v506, %v476
      %v508 = vadd.f32 %v507, %v477
      %v509 = vadd.f32 %v508, %v478
      %v510 = vadd.f32 %v509, %v479
      %v511 = vadd.f32 %v510, %v480
      %v512 = vadd.f32 %v511, %v481
      %v513 = vadd.f32 %v512, %v482
      %v514 = vadd.f32 %v513, %v483
      %v515 = vadd.f32 %v514, %v484
      %v516 = vadd.f32 %v515, %v485
      %v517 = vadd.f32 %v516, %v486
      %v518 = vadd.f32 %v517, %v487
      %v519 = vadd.f32 %v518, %v488
      %v520 = vadd.f32 %v519, %v489
      %v521 = vadd.f32 %v520, %v490
      %v522 = vadd.f32 %v521, %v491
      %v523 = vadd.f32 %v522, %v492
      %v524 = vadd.f32 %v523, %v493
      %v525 = vadd.f32 %v524, %v494
      %v526 = vadd.f32 %v525, %v495
      %v527 = vadd.f32 %v526, %v496
      %v528 = vadd.f32 %v527, %v497
      %v529 = vadd.f32 %v528, %v498
      %v530 = vadd.f32 %v529, %v499
      %v531 = vadd.f32 %v530, %v500
      %v532 = vrot.slane %v531, 4
      %v533 = vadd.f32 %v531, %v532
      %v534 = vrot.slane %v533, 2
      %v535 = vadd.f32 %v533, %v534
      %v536 = vrot.slane %v535, 1
      %v537 = vadd.f32 %v535, %v536
      %vm538 = vcmask 1040384
      %v539 = vsel %vm538, %v468, %v537
      %540 = vst [vmem:[%s238] sm:$0x3] %v539
      %s541 = smul.u32 32, %s17
      %p542 = scmp.lt.s32.totalorder %s541, 63
      %s543 = scalar_select %p542, %s541, 63
      %s544 = smul.addr %s543, 8
      %s545 = scalar_lea.vmem %s4, %s544
      %p546 = scmp.lt.s32.totalorder %s17, 1
      %s547 = scalar_select %p546, %s17, 1
      %s548 = smul.addr %s547, 2
      %s549 = scalar_lea.vmem %s5, %s548
      // Predicated region
      $region37: #{debottleneck_forward.4} parent=35 // pred_check
        %p550 = pneg %p124
      $region38: #{debottleneck_forward.4} parent=35 // pred_check_branch
        %552 = sbr.rel (%p550) target = $region40
      $region39: #{debottleneck_forward.4} parent=35 // pred_region
        %s553 = smul.u32 32, %s17
      $region40: #{debottleneck_forward.4} parent=35 // pred_fallthru
        _
      // Predicated region
      $region41: #{debottleneck_forward.4} parent=35 // pred_check
        %p554 = pneg %p150
      $region42: #{debottleneck_forward.4} parent=35 // pred_check_branch
        %556 = sbr.rel (%p554) target = $region44
      $region43: #{debottleneck_forward.4} parent=35 // pred_region
        _
      $region44: #{debottleneck_forward.4} parent=35 // pred_fallthru
        _
    $region36: #{debottleneck_forward.4} parent=5 // pred_fallthru
      _
    %p557 = scmp.le.s32.totalorder 2, %s12
    // Predicated region
    $region45: #{debottleneck_forward.4} parent=5 // pred_check
      %p558 = pneg %p557
    $region46: #{debottleneck_forward.4} parent=5 // pred_check_branch
      %560 = sbr.rel (%p558) target = $region48
    $region47: #{debottleneck_forward.4} parent=5 // pred_region
      %s561 = ssub.s32 %s12, 2
      // Predicated region
      $region49: #{debottleneck_forward.4} parent=47 // pred_check
        %p562 = pneg %p130
      $region50: #{debottleneck_forward.4} parent=47 // pred_check_branch
        %564 = sbr.rel (%p562) target = $region52
      $region51: #{debottleneck_forward.4} parent=47 // pred_region
        %s565 = smul.u32 32, %s18
        %p566 = scmp.lt.s32.totalorder %s565, 63
        %s567 = scalar_select %p566, %s565, 63
        %s568 = smul.addr %s567, 8
        %s569 = scalar_lea.vmem %s4, %s568
      $region52: #{debottleneck_forward.4} parent=47 // pred_fallthru
        _
      // Predicated region
      $region53: #{debottleneck_forward.4} parent=47 // pred_check
        %p570 = pneg %p156
      $region54: #{debottleneck_forward.4} parent=47 // pred_check_branch
        %572 = sbr.rel (%p570) target = $region56
      $region55: #{debottleneck_forward.4} parent=47 // pred_region
        %p573 = scmp.lt.s32.totalorder %s18, 1
        %s574 = scalar_select %p573, %s18, 1
        %s575 = smul.addr %s574, 2
        %s576 = scalar_lea.vmem %s5, %s575
      $region56: #{debottleneck_forward.4} parent=47 // pred_fallthru
        _
    $region48: #{debottleneck_forward.4} parent=5 // pred_fallthru
      _
  $region6: #{debottleneck_forward.4} parent=0 // loop_footer
    %s16 = sadd.s32 1, %s12
  $region7: #{debottleneck_forward.4} parent=0 // loop_footer_branch
    %11 = sbr.rel target = $region3
  $region8: #{debottleneck_forward.4} parent=0 // loop_exit
    _

// kernel: debottleneck_forward.7
$region0: #{debottleneck_forward.7}
  #allocation0 [shape = 'u32[]', space=smem, size = 0x4, offset = 0x4, fixed_abs, tag = 'smem constant byte address 0x4 - core index']
  #allocation1 [shape = 'u32[72,128]{1,0:T(1,128)}', space=vmem, size = 0x9000, scoped, tag = 'internal scratch']
  %s0 = inlined_call_operand.vmem [shape: f32[512,128], index: 0, kind: input, shape index: {}]
  %s1 = inlined_call_operand.vmem [shape: f32[512,128], index: 1, kind: input, shape index: {}]
  %s2 = inlined_call_operand.vmem [shape: f32[1,128], index: 2, kind: input, shape index: {}]
  %s3 = inlined_call_operand.vmem [shape: f32[1,128], index: 3, kind: input, shape index: {}]
  %s4 = inlined_call_operand.vmem [shape: f32[512,128], index: 4, kind: output, shape index: {}]
  %s5 = sld [smem:[#allocation0]]
  $region49: #{debottleneck_forward.7} parent=0
    _
  %s7 = ssub.s32 1, %s5
  %s8 = scalar_select 0, %s7, %s5
  loop: start=0, step=1, limit=4
  $region2: #{debottleneck_forward.7} parent=0 // loop_pre_header
    _
  $region3: #{debottleneck_forward.7} parent=0 // loop_header
    %s10 = sphi 0, %s14
    %p11 = scmp.ge.s32.totalorder %s10, 4
    %s20 = sphi 0, %s22
    %s23 = sphi 0, %s20
    %s24 = sphi 0, %s23
    %s40 = sphi 0, %s24
    %s46 = sphi 0, %s48
    %s49 = sphi 0, %s46
    %s50 = sphi 0, %s49
    %s66 = sphi 0, %s50
    %s70 = sphi 0, %s70
    %s72 = sphi 0, %s70
    %s73 = sphi 0, %s72
    %s87 = sphi 0, %s73
    %s91 = sphi 0, %s91
    %s93 = sphi 0, %s91
    %s94 = sphi 0, %s93
    %s108 = sphi 0, %s94
    %s114 = sphi 0, %s116
    %s117 = sphi 0, %s114
    %s118 = sphi 0, %s117
    %s134 = sphi 0, %s118
  $region4: #{debottleneck_forward.7} parent=0 // loop_header_branch
    %13 = sbr.rel (%p11) target = $region8
  $region5: #{debottleneck_forward.7} parent=0 // loop_body
    %s15 = ssub.s32 %s10, 1
    %s16 = ssub.s32 %s10, 2
    %s17 = sadd.s32 %s10, 1
    %s18 = ssub.s32 %s10, %s17
    %p19 = scmp.eq.s32.totalorder %s18, 0
    %s21 = sadd.s32 %s20, 1
    %s22 = scalar_select %p19, %s20, %s21
    %p25 = pneg %p19
    %p26 = scmp.eq.s32.totalorder %s10, 1
    %p27 = por %p25, %p26
    %p28 = scmp.ne.s32.totalorder %s20, %s23
    %p29 = scmp.eq.s32.totalorder %s10, 0
    %p30 = por %p28, %p29
    %p31 = scmp.ne.s32.totalorder %s20, %s23
    %p32 = scmp.eq.s32.totalorder %s15, 1
    %p33 = por %p31, %p32
    %p34 = scmp.ne.s32.totalorder %s23, %s24
    %p35 = scmp.eq.s32.totalorder %s15, 0
    %p36 = por %p34, %p35
    %p37 = scmp.ne.s32.totalorder %s23, %s24
    %p38 = scmp.eq.s32.totalorder %s16, 1
    %p39 = por %p37, %p38
    %p41 = scmp.ne.s32.totalorder %s24, %s40
    %p42 = scmp.eq.s32.totalorder %s16, 0
    %p43 = por %p41, %p42
    %s44 = ssub.s32 %s10, %s17
    %p45 = scmp.eq.s32.totalorder %s44, 0
    %s47 = sadd.s32 %s46, 1
    %s48 = scalar_select %p45, %s46, %s47
    %p51 = pneg %p45
    %p52 = scmp.eq.s32.totalorder %s10, 1
    %p53 = por %p51, %p52
    %p54 = scmp.ne.s32.totalorder %s46, %s49
    %p55 = scmp.eq.s32.totalorder %s10, 0
    %p56 = por %p54, %p55
    %p57 = scmp.ne.s32.totalorder %s46, %s49
    %p58 = scmp.eq.s32.totalorder %s15, 1
    %p59 = por %p57, %p58
    %p60 = scmp.ne.s32.totalorder %s49, %s50
    %p61 = scmp.eq.s32.totalorder %s15, 0
    %p62 = por %p60, %p61
    %p63 = scmp.ne.s32.totalorder %s49, %s50
    %p64 = scmp.eq.s32.totalorder %s16, 1
    %p65 = por %p63, %p64
    %p67 = scmp.ne.s32.totalorder %s50, %s66
    %p68 = scmp.eq.s32.totalorder %s16, 0
    %p69 = por %p67, %p68
    %s71 = sadd.s32 %s70, 1
    %p74 = scmp.eq.s32.totalorder %s10, 1
    %p75 = scmp.ne.s32.totalorder %s70, %s72
    %p76 = scmp.eq.s32.totalorder %s10, 0
    %p77 = por %p75, %p76
    %p78 = scmp.ne.s32.totalorder %s70, %s72
    %p79 = scmp.eq.s32.totalorder %s15, 1
    %p80 = por %p78, %p79
    %p81 = scmp.ne.s32.totalorder %s72, %s73
    %p82 = scmp.eq.s32.totalorder %s15, 0
    %p83 = por %p81, %p82
    %p84 = scmp.ne.s32.totalorder %s72, %s73
    %p85 = scmp.eq.s32.totalorder %s16, 1
    %p86 = por %p84, %p85
    %p88 = scmp.ne.s32.totalorder %s73, %s87
    %p89 = scmp.eq.s32.totalorder %s16, 0
    %p90 = por %p88, %p89
    %s92 = sadd.s32 %s91, 1
    %p95 = scmp.eq.s32.totalorder %s10, 1
    %p96 = scmp.ne.s32.totalorder %s91, %s93
    %p97 = scmp.eq.s32.totalorder %s10, 0
    %p98 = por %p96, %p97
    %p99 = scmp.ne.s32.totalorder %s91, %s93
    %p100 = scmp.eq.s32.totalorder %s15, 1
    %p101 = por %p99, %p100
    %p102 = scmp.ne.s32.totalorder %s93, %s94
    %p103 = scmp.eq.s32.totalorder %s15, 0
    %p104 = por %p102, %p103
    %p105 = scmp.ne.s32.totalorder %s93, %s94
    %p106 = scmp.eq.s32.totalorder %s16, 1
    %p107 = por %p105, %p106
    %p109 = scmp.ne.s32.totalorder %s94, %s108
    %p110 = scmp.eq.s32.totalorder %s16, 0
    %p111 = por %p109, %p110
    %s112 = ssub.s32 %s10, %s17
    %p113 = scmp.eq.s32.totalorder %s112, 0
    %s115 = sadd.s32 %s114, 1
    %s116 = scalar_select %p113, %s114, %s115
    %p119 = pneg %p113
    %p120 = scmp.eq.s32.totalorder %s10, 1
    %p121 = por %p119, %p120
    %p122 = scmp.ne.s32.totalorder %s114, %s117
    %p123 = scmp.eq.s32.totalorder %s10, 0
    %p124 = por %p122, %p123
    %p125 = scmp.ne.s32.totalorder %s114, %s117
    %p126 = scmp.eq.s32.totalorder %s15, 1
    %p127 = por %p125, %p126
    %p128 = scmp.ne.s32.totalorder %s117, %s118
    %p129 = scmp.eq.s32.totalorder %s15, 0
    %p130 = por %p128, %p129
    %p131 = scmp.ne.s32.totalorder %s117, %s118
    %p132 = scmp.eq.s32.totalorder %s16, 1
    %p133 = por %p131, %p132
    %p135 = scmp.ne.s32.totalorder %s118, %s134
    %p136 = scmp.eq.s32.totalorder %s16, 0
    %p137 = por %p135, %p136
    %p138 = scmp.le.s32.totalorder 1, %s10
    %p139 = scmp.lt.s32.totalorder %s10, 3
    %p140 = pnand %p138, %p139
    %p141 = pneg %p140
    // Predicated region
    $region9: #{debottleneck_forward.7} parent=5 // pred_check
      _
    $region10: #{debottleneck_forward.7} parent=5 // pred_check_branch
      %143 = sbr.rel (%p140) target = $region12
    $region11: #{debottleneck_forward.7} parent=5 // pred_region
      %s144 = ssub.s32 %s10, 1
      // Predicated region
      $region13: #{debottleneck_forward.7} parent=11 // pred_check
        %p145 = pneg %p83
      $region14: #{debottleneck_forward.7} parent=11 // pred_check_branch
        %147 = sbr.rel (%p145) target = $region16
      $region15: #{debottleneck_forward.7} parent=11 // pred_region
        _
      $region16: #{debottleneck_forward.7} parent=11 // pred_fallthru
        _
      // Predicated region
      $region17: #{debottleneck_forward.7} parent=11 // pred_check
        %p148 = pneg %p104
      $region18: #{debottleneck_forward.7} parent=11 // pred_check_branch
        %150 = sbr.rel (%p148) target = $region20
      $region19: #{debottleneck_forward.7} parent=11 // pred_region
        _
      $region20: #{debottleneck_forward.7} parent=11 // pred_fallthru
        _
    $region12: #{debottleneck_forward.7} parent=5 // pred_fallthru
      _
    %p151 = scmp.lt.s32.totalorder %s10, 2
    // Predicated region
    $region21: #{debottleneck_forward.7} parent=5 // pred_check
      %p152 = pneg %p151
    $region22: #{debottleneck_forward.7} parent=5 // pred_check_branch
      %154 = sbr.rel (%p152) target = $region24
    $region23: #{debottleneck_forward.7} parent=5 // pred_region
      // Predicated region
      $region25: #{debottleneck_forward.7} parent=23 // pred_check
        %p155 = pneg %p30
      $region26: #{debottleneck_forward.7} parent=23 // pred_check_branch
        %157 = sbr.rel (%p155) target = $region28
      $region27: #{debottleneck_forward.7} parent=23 // pred_region
        %s158 = smul.u32 32, %s10
        %p159 = scmp.lt.s32.totalorder %s158, 63
        %s160 = scalar_select %p159, %s158, 63
        %s161 = smul.addr %s160, 8
        %s162 = scalar_lea.vmem %s0, %s161
        %s163 = smul.u32 32, %s10
      $region28: #{debottleneck_forward.7} parent=23 // pred_fallthru
        _
      // Predicated region
      $region29: #{debottleneck_forward.7} parent=23 // pred_check
        %p164 = pneg %p56
      $region30: #{debottleneck_forward.7} parent=23 // pred_check_branch
        %166 = sbr.rel (%p164) target = $region32
      $region31: #{debottleneck_forward.7} parent=23 // pred_region
        %s167 = smul.u32 32, %s10
        %p168 = scmp.lt.s32.totalorder %s167, 63
        %s169 = scalar_select %p168, %s167, 63
        %s170 = smul.addr %s169, 8
        %s171 = scalar_lea.vmem %s1, %s170
        %s172 = smul.u32 32, %s10
      $region32: #{debottleneck_forward.7} parent=23 // pred_fallthru
        _
    $region24: #{debottleneck_forward.7} parent=5 // pred_fallthru
      _
    %p173 = scmp.le.s32.totalorder 1, %s10
    %p174 = scmp.lt.s32.totalorder %s10, 3
    %p175 = pnand %p173, %p174
    %p176 = pneg %p175
    // Predicated region
    $region33: #{debottleneck_forward.7} parent=5 // pred_check
      _
    $region34: #{debottleneck_forward.7} parent=5 // pred_check_branch
      %178 = sbr.rel (%p175) target = $region36
    $region35: #{debottleneck_forward.7} parent=5 // pred_region
      %s179 = ssub.s32 %s10, 1
      %s180 = smul.u32 32, %s15
      %p181 = scmp.lt.s32.totalorder %s180, 63
      %s182 = scalar_select %p181, %s180, 63
      %s183 = smul.addr %s182, 8
      %s184 = scalar_lea.vmem %s0, %s183
      %p185 = pneg %p36
      %p186 = pneg %p33
      %s187 = smul.u32 32, %s15
      %p188 = scmp.lt.s32.totalorder %s187, 63
      %s189 = scalar_select %p188, %s187, 63
      %s190 = smul.addr %s189, 8
      %s191 = scalar_lea.vmem %s1, %s190
      %p192 = pneg %p62
      %p193 = pneg %p59
      %p194 = pneg %p83
      %p195 = pneg %p80
      %p196 = pneg %p104
      %p197 = pneg %p101
      %p198 = pneg %p130
      %p199 = pneg %p127
      %s200 = smul.u32 32, %s15
      %p201 = scmp.lt.s32.totalorder %s200, 63
      %s202 = scalar_select %p201, %s200, 63
      %s203 = smul.addr %s202, 8
      %s204 = scalar_lea.vmem %s4, %s203
      %s205 = smul.u32 32, %s15
      %p206 = scmp.lt.s32.totalorder %s205, 63
      %s207 = scalar_select %p206, %s205, 63
      %s208 = smul.addr %s207, 8
      %s209 = scalar_lea.vmem %s0, %s208
      %s210 = smul.u32 32, %s15
      %s211 = smul.u32 32, %s15
      %p212 = scmp.lt.s32.totalorder %s211, 63
      %s213 = scalar_select %p212, %s211, 63
      %s214 = smul.addr %s213, 8
      %s215 = scalar_lea.vmem %s1, %s214
      %s216 = smul.u32 32, %s15
      %s217 = smul.u32 32, %s15
      %p218 = scmp.lt.s32.totalorder %s217, 63
      %s219 = scalar_select %p218, %s217, 63
      %s220 = smul.addr %s219, 8
      %s221 = scalar_lea.vmem %s4, %s220
      %s222 = smul.u32 32, %s15
      %v223 = vld [vmem:[%s209] sm:$0xff]
      %v224 = vld [vmem:[%s209 + $0x8] sm:$0xff]
      %v225 = vld [vmem:[%s209 + $0x10] sm:$0xff]
      %v226 = vld [vmem:[%s209 + $0x18] sm:$0xff]
      %v227 = vld [vmem:[%s209 + $0x20] sm:$0xff]
      %v228 = vld [vmem:[%s209 + $0x28] sm:$0xff]
      %v229 = vld [vmem:[%s209 + $0x30] sm:$0xff]
      %v230 = vld [vmem:[%s209 + $0x38] sm:$0xff]
      %v231 = vld [vmem:[%s209 + $0x40] sm:$0xff]
      %v232 = vld [vmem:[%s209 + $0x48] sm:$0xff]
      %v233 = vld [vmem:[%s209 + $0x50] sm:$0xff]
      %v234 = vld [vmem:[%s209 + $0x58] sm:$0xff]
      %v235 = vld [vmem:[%s209 + $0x60] sm:$0xff]
      %v236 = vld [vmem:[%s209 + $0x68] sm:$0xff]
      %v237 = vld [vmem:[%s209 + $0x70] sm:$0xff]
      %v238 = vld [vmem:[%s209 + $0x78] sm:$0xff]
      %v239 = vld [vmem:[%s209 + $0x80] sm:$0xff]
      %v240 = vld [vmem:[%s209 + $0x88] sm:$0xff]
      %v241 = vld [vmem:[%s209 + $0x90] sm:$0xff]
      %v242 = vld [vmem:[%s209 + $0x98] sm:$0xff]
      %v243 = vld [vmem:[%s209 + $0xa0] sm:$0xff]
      %v244 = vld [vmem:[%s209 + $0xa8] sm:$0xff]
      %v245 = vld [vmem:[%s209 + $0xb0] sm:$0xff]
      %v246 = vld [vmem:[%s209 + $0xb8] sm:$0xff]
      %v247 = vld [vmem:[%s209 + $0xc0] sm:$0xff]
      %v248 = vld [vmem:[%s209 + $0xc8] sm:$0xff]
      %v249 = vld [vmem:[%s209 + $0xd0] sm:$0xff]
      %v250 = vld [vmem:[%s209 + $0xd8] sm:$0xff]
      %v251 = vld [vmem:[%s209 + $0xe0] sm:$0xff]
      %v252 = vld [vmem:[%s209 + $0xe8] sm:$0xff]
      %v253 = vld [vmem:[%s209 + $0xf0] sm:$0xff]
      %v254 = vld [vmem:[%s209 + $0xf8] sm:$0xff]
      %v255 = vld [vmem:[%s2] sm:$0x1]
      %v257 = vperm.slane %v255, 0
      %v259 = vmul.f32 %v223, %v257
      %v260 = vmul.f32 %v224, %v257
      %v261 = vmul.f32 %v225, %v257
      %v262 = vmul.f32 %v226, %v257
      %v263 = vmul.f32 %v227, %v257
      %v264 = vmul.f32 %v228, %v257
      %v265 = vmul.f32 %v229, %v257
      %v266 = vmul.f32 %v230, %v257
      %v267 = vmul.f32 %v231, %v257
      %v268 = vmul.f32 %v232, %v257
      %v269 = vmul.f32 %v233, %v257
      %v270 = vmul.f32 %v234, %v257
      %v271 = vmul.f32 %v235, %v257
      %v272 = vmul.f32 %v236, %v257
      %v273 = vmul.f32 %v237, %v257
      %v274 = vmul.f32 %v238, %v257
      %v275 = vmul.f32 %v239, %v257
      %v276 = vmul.f32 %v240, %v257
      %v277 = vmul.f32 %v241, %v257
      %v278 = vmul.f32 %v242, %v257
      %v279 = vmul.f32 %v243, %v257
      %v280 = vmul.f32 %v244, %v257
      %v281 = vmul.f32 %v245, %v257
      %v282 = vmul.f32 %v246, %v257
      %v283 = vmul.f32 %v247, %v257
      %v284 = vmul.f32 %v248, %v257
      %v285 = vmul.f32 %v249, %v257
      %v286 = vmul.f32 %v250, %v257
      %v287 = vmul.f32 %v251, %v257
      %v288 = vmul.f32 %v252, %v257
      %v289 = vmul.f32 %v253, %v257
      %v290 = vmul.f32 %v254, %v257
      %v291 = vld [vmem:[%s3] sm:$0x1]
      %v293 = vperm.slane %v291, 0
      %v295 = vadd.f32 %v259, %v293
      %v296 = vadd.f32 %v260, %v293
      %v297 = vadd.f32 %v261, %v293
      %v298 = vadd.f32 %v262, %v293
      %v299 = vadd.f32 %v263, %v293
      %v300 = vadd.f32 %v264, %v293
      %v301 = vadd.f32 %v265, %v293
      %v302 = vadd.f32 %v266, %v293
      %v303 = vadd.f32 %v267, %v293
      %v304 = vadd.f32 %v268, %v293
      %v305 = vadd.f32 %v269, %v293
      %v306 = vadd.f32 %v270, %v293
      %v307 = vadd.f32 %v271, %v293
      %v308 = vadd.f32 %v272, %v293
      %v309 = vadd.f32 %v273, %v293
      %v310 = vadd.f32 %v274, %v293
      %v311 = vadd.f32 %v275, %v293
      %v312 = vadd.f32 %v276, %v293
      %v313 = vadd.f32 %v277, %v293
      %v314 = vadd.f32 %v278, %v293
      %v315 = vadd.f32 %v279, %v293
      %v316 = vadd.f32 %v280, %v293
      %v317 = vadd.f32 %v281, %v293
      %v318 = vadd.f32 %v282, %v293
      %v319 = vadd.f32 %v283, %v293
      %v320 = vadd.f32 %v284, %v293
      %v321 = vadd.f32 %v285, %v293
      %v322 = vadd.f32 %v286, %v293
      %v323 = vadd.f32 %v287, %v293
      %v324 = vadd.f32 %v288, %v293
      %v325 = vadd.f32 %v289, %v293
      %v326 = vadd.f32 %v290, %v293
      %v327 = vld [vmem:[%s215] sm:$0xff]
      %v328 = vld [vmem:[%s215 + $0x8] sm:$0xff]
      %v329 = vld [vmem:[%s215 + $0x10] sm:$0xff]
      %v330 = vld [vmem:[%s215 + $0x18] sm:$0xff]
      %v331 = vld [vmem:[%s215 + $0x20] sm:$0xff]
      %v332 = vld [vmem:[%s215 + $0x28] sm:$0xff]
      %v333 = vld [vmem:[%s215 + $0x30] sm:$0xff]
      %v334 = vld [vmem:[%s215 + $0x38] sm:$0xff]
      %v335 = vld [vmem:[%s215 + $0x40] sm:$0xff]
      %v336 = vld [vmem:[%s215 + $0x48] sm:$0xff]
      %v337 = vld [vmem:[%s215 + $0x50] sm:$0xff]
      %v338 = vld [vmem:[%s215 + $0x58] sm:$0xff]
      %v339 = vld [vmem:[%s215 + $0x60] sm:$0xff]
      %v340 = vld [vmem:[%s215 + $0x68] sm:$0xff]
      %v341 = vld [vmem:[%s215 + $0x70] sm:$0xff]
      %v342 = vld [vmem:[%s215 + $0x78] sm:$0xff]
      %v343 = vld [vmem:[%s215 + $0x80] sm:$0xff]
      %v344 = vld [vmem:[%s215 + $0x88] sm:$0xff]
      %v345 = vld [vmem:[%s215 + $0x90] sm:$0xff]
      %v346 = vld [vmem:[%s215 + $0x98] sm:$0xff]
      %v347 = vld [vmem:[%s215 + $0xa0] sm:$0xff]
      %v348 = vld [vmem:[%s215 + $0xa8] sm:$0xff]
      %v349 = vld [vmem:[%s215 + $0xb0] sm:$0xff]
      %v350 = vld [vmem:[%s215 + $0xb8] sm:$0xff]
      %v351 = vld [vmem:[%s215 + $0xc0] sm:$0xff]
      %v352 = vld [vmem:[%s215 + $0xc8] sm:$0xff]
      %v353 = vld [vmem:[%s215 + $0xd0] sm:$0xff]
      %v354 = vld [vmem:[%s215 + $0xd8] sm:$0xff]
      %v355 = vld [vmem:[%s215 + $0xe0] sm:$0xff]
      %v356 = vld [vmem:[%s215 + $0xe8] sm:$0xff]
      %v357 = vld [vmem:[%s215 + $0xf0] sm:$0xff]
      %v358 = vld [vmem:[%s215 + $0xf8] sm:$0xff]
      %v359 = vadd.f32 %v295, %v327
      %v360 = vadd.f32 %v296, %v328
      %v361 = vadd.f32 %v297, %v329
      %v362 = vadd.f32 %v298, %v330
      %v363 = vadd.f32 %v299, %v331
      %v364 = vadd.f32 %v300, %v332
      %v365 = vadd.f32 %v301, %v333
      %v366 = vadd.f32 %v302, %v334
      %v367 = vadd.f32 %v303, %v335
      %v368 = vadd.f32 %v304, %v336
      %v369 = vadd.f32 %v305, %v337
      %v370 = vadd.f32 %v306, %v338
      %v371 = vadd.f32 %v307, %v339
      %v372 = vadd.f32 %v308, %v340
      %v373 = vadd.f32 %v309, %v341
      %v374 = vadd.f32 %v310, %v342
      %v375 = vadd.f32 %v311, %v343
      %v376 = vadd.f32 %v312, %v344
      %v377 = vadd.f32 %v313, %v345
      %v378 = vadd.f32 %v314, %v346
      %v379 = vadd.f32 %v315, %v347
      %v380 = vadd.f32 %v316, %v348
      %v381 = vadd.f32 %v317, %v349
      %v382 = vadd.f32 %v318, %v350
      %v383 = vadd.f32 %v319, %v351
      %v384 = vadd.f32 %v320, %v352
      %v385 = vadd.f32 %v321, %v353
      %v386 = vadd.f32 %v322, %v354
      %v387 = vadd.f32 %v323, %v355
      %v388 = vadd.f32 %v324, %v356
      %v389 = vadd.f32 %v325, %v357
      %v390 = vadd.f32 %v326, %v358
      %v391 = vmax.f32 %v359, 0.0
      %v392 = vmax.f32 %v360, 0.0
      %v393 = vmax.f32 %v361, 0.0
      %v394 = vmax.f32 %v362, 0.0
      %v395 = vmax.f32 %v363, 0.0
      %v396 = vmax.f32 %v364, 0.0
      %v397 = vmax.f32 %v365, 0.0
      %v398 = vmax.f32 %v366, 0.0
      %v399 = vmax.f32 %v367, 0.0
      %v400 = vmax.f32 %v368, 0.0
      %v401 = vmax.f32 %v369, 0.0
      %v402 = vmax.f32 %v370, 0.0
      %v403 = vmax.f32 %v371, 0.0
      %v404 = vmax.f32 %v372, 0.0
      %v405 = vmax.f32 %v373, 0.0
      %v406 = vmax.f32 %v374, 0.0
      %v407 = vmax.f32 %v375, 0.0
      %v408 = vmax.f32 %v376, 0.0
      %v409 = vmax.f32 %v377, 0.0
      %v410 = vmax.f32 %v378, 0.0
      %v411 = vmax.f32 %v379, 0.0
      %v412 = vmax.f32 %v380, 0.0
      %v413 = vmax.f32 %v381, 0.0
      %v414 = vmax.f32 %v382, 0.0
      %v415 = vmax.f32 %v383, 0.0
      %v416 = vmax.f32 %v384, 0.0
      %v417 = vmax.f32 %v385, 0.0
      %v418 = vmax.f32 %v386, 0.0
      %v419 = vmax.f32 %v387, 0.0
      %v420 = vmax.f32 %v388, 0.0
      %v421 = vmax.f32 %v389, 0.0
      %v422 = vmax.f32 %v390, 0.0
      %423 = vst [vmem:[%s221] sm:$0xff] %v391
      %424 = vst [vmem:[%s221 + $0x8] sm:$0xff] %v392
      %425 = vst [vmem:[%s221 + $0x10] sm:$0xff] %v393
      %426 = vst [vmem:[%s221 + $0x18] sm:$0xff] %v394
      %427 = vst [vmem:[%s221 + $0x20] sm:$0xff] %v395
      %428 = vst [vmem:[%s221 + $0x28] sm:$0xff] %v396
      %429 = vst [vmem:[%s221 + $0x30] sm:$0xff] %v397
      %430 = vst [vmem:[%s221 + $0x38] sm:$0xff] %v398
      %431 = vst [vmem:[%s221 + $0x40] sm:$0xff] %v399
      %432 = vst [vmem:[%s221 + $0x48] sm:$0xff] %v400
      %433 = vst [vmem:[%s221 + $0x50] sm:$0xff] %v401
      %434 = vst [vmem:[%s221 + $0x58] sm:$0xff] %v402
      %435 = vst [vmem:[%s221 + $0x60] sm:$0xff] %v403
      %436 = vst [vmem:[%s221 + $0x68] sm:$0xff] %v404
      %437 = vst [vmem:[%s221 + $0x70] sm:$0xff] %v405
      %438 = vst [vmem:[%s221 + $0x78] sm:$0xff] %v406
      %439 = vst [vmem:[%s221 + $0x80] sm:$0xff] %v407
      %440 = vst [vmem:[%s221 + $0x88] sm:$0xff] %v408
      %441 = vst [vmem:[%s221 + $0x90] sm:$0xff] %v409
      %442 = vst [vmem:[%s221 + $0x98] sm:$0xff] %v410
      %443 = vst [vmem:[%s221 + $0xa0] sm:$0xff] %v411
      %444 = vst [vmem:[%s221 + $0xa8] sm:$0xff] %v412
      %445 = vst [vmem:[%s221 + $0xb0] sm:$0xff] %v413
      %446 = vst [vmem:[%s221 + $0xb8] sm:$0xff] %v414
      %447 = vst [vmem:[%s221 + $0xc0] sm:$0xff] %v415
      %448 = vst [vmem:[%s221 + $0xc8] sm:$0xff] %v416
      %449 = vst [vmem:[%s221 + $0xd0] sm:$0xff] %v417
      %450 = vst [vmem:[%s221 + $0xd8] sm:$0xff] %v418
      %451 = vst [vmem:[%s221 + $0xe0] sm:$0xff] %v419
      %452 = vst [vmem:[%s221 + $0xe8] sm:$0xff] %v420
      %453 = vst [vmem:[%s221 + $0xf0] sm:$0xff] %v421
      %454 = vst [vmem:[%s221 + $0xf8] sm:$0xff] %v422
      %s455 = smul.u32 32, %s15
      %p456 = scmp.lt.s32.totalorder %s455, 63
      %s457 = scalar_select %p456, %s455, 63
      %s458 = smul.addr %s457, 8
      %s459 = scalar_lea.vmem %s4, %s458
      // Predicated region
      $region37: #{debottleneck_forward.7} parent=35 // pred_check
        %p460 = pneg %p127
      $region38: #{debottleneck_forward.7} parent=35 // pred_check_branch
        %462 = sbr.rel (%p460) target = $region40
      $region39: #{debottleneck_forward.7} parent=35 // pred_region
        %s463 = smul.u32 32, %s15
      $region40: #{debottleneck_forward.7} parent=35 // pred_fallthru
        _
    $region36: #{debottleneck_forward.7} parent=5 // pred_fallthru
      _
    %p464 = scmp.le.s32.totalorder 2, %s10
    // Predicated region
    $region41: #{debottleneck_forward.7} parent=5 // pred_check
      %p465 = pneg %p464
    $region42: #{debottleneck_forward.7} parent=5 // pred_check_branch
      %467 = sbr.rel (%p465) target = $region44
    $region43: #{debottleneck_forward.7} parent=5 // pred_region
      %s468 = ssub.s32 %s10, 2
      // Predicated region
      $region45: #{debottleneck_forward.7} parent=43 // pred_check
        %p469 = pneg %p133
      $region46: #{debottleneck_forward.7} parent=43 // pred_check_branch
        %471 = sbr.rel (%p469) target = $region48
      $region47: #{debottleneck_forward.7} parent=43 // pred_region
        %s472 = smul.u32 32, %s16
        %p473 = scmp.lt.s32.totalorder %s472, 63
        %s474 = scalar_select %p473, %s472, 63
        %s475 = smul.addr %s474, 8
        %s476 = scalar_lea.vmem %s4, %s475
      $region48: #{debottleneck_forward.7} parent=43 // pred_fallthru
        _
    $region44: #{debottleneck_forward.7} parent=5 // pred_fallthru
      _
  $region6: #{debottleneck_forward.7} parent=0 // loop_footer
    %s14 = sadd.s32 1, %s10
  $region7: #{debottleneck_forward.7} parent=0 // loop_footer_branch
    %9 = sbr.rel target = $region3
  $region8: #{debottleneck_forward.7} parent=0 // loop_exit
    _

// kernel: debottleneck_forward.6
$region0: #{debottleneck_forward.6}
  #allocation0 [shape = 'u32[]', space=smem, size = 0x4, offset = 0x4, fixed_abs, tag = 'smem constant byte address 0x4 - core index']
  #allocation1 [shape = 'u32[72,128]{1,0:T(1,128)}', space=vmem, size = 0x9000, scoped, tag = 'internal scratch']
  %s0 = inlined_call_operand.vmem [shape: f32[512,128], index: 0, kind: input, shape index: {}]
  %s1 = inlined_call_operand.vmem [shape: f32[1,128], index: 1, kind: input, shape index: {}]
  %s2 = inlined_call_operand.vmem [shape: f32[1,128], index: 2, kind: input, shape index: {}]
  %s3 = inlined_call_operand.vmem [shape: f32[128,128], index: 3, kind: input, shape index: {}]
  %s4 = inlined_call_operand.vmem [shape: f32[512,128], index: 4, kind: output, shape index: {0}]
  %s5 = inlined_call_operand.vmem [shape: f32[2,2,128], index: 5, kind: output, shape index: {1}]
  %6 = xla_tuple %s4, %s5
  %s7 = sld [smem:[#allocation0]]
  $region57: #{debottleneck_forward.6} parent=0
    _
  %s9 = ssub.s32 1, %s7
  %s10 = scalar_select 0, %s9, %s7
  loop: start=0, step=1, limit=4
  $region2: #{debottleneck_forward.6} parent=0 // loop_pre_header
    _
  $region3: #{debottleneck_forward.6} parent=0 // loop_header
    %s12 = sphi 0, %s16
    %p13 = scmp.ge.s32.totalorder %s12, 4
    %s22 = sphi 0, %s24
    %s25 = sphi 0, %s22
    %s26 = sphi 0, %s25
    %s42 = sphi 0, %s26
    %s46 = sphi 0, %s46
    %s48 = sphi 0, %s46
    %s49 = sphi 0, %s48
    %s63 = sphi 0, %s49
    %s67 = sphi 0, %s67
    %s69 = sphi 0, %s67
    %s70 = sphi 0, %s69
    %s84 = sphi 0, %s70
    %s88 = sphi 0, %s88
    %s90 = sphi 0, %s88
    %s91 = sphi 0, %s90
    %s105 = sphi 0, %s91
    %s111 = sphi 0, %s113
    %s114 = sphi 0, %s111
    %s115 = sphi 0, %s114
    %s131 = sphi 0, %s115
    %s137 = sphi 0, %s139
    %s140 = sphi 0, %s137
    %s141 = sphi 0, %s140
    %s157 = sphi 0, %s141
  $region4: #{debottleneck_forward.6} parent=0 // loop_header_branch
    %15 = sbr.rel (%p13) target = $region8
  $region5: #{debottleneck_forward.6} parent=0 // loop_body
    %s17 = ssub.s32 %s12, 1
    %s18 = ssub.s32 %s12, 2
    %s19 = sadd.s32 %s12, 1
    %s20 = ssub.s32 %s12, %s19
    %p21 = scmp.eq.s32.totalorder %s20, 0
    %s23 = sadd.s32 %s22, 1
    %s24 = scalar_select %p21, %s22, %s23
    %p27 = pneg %p21
    %p28 = scmp.eq.s32.totalorder %s12, 1
    %p29 = por %p27, %p28
    %p30 = scmp.ne.s32.totalorder %s22, %s25
    %p31 = scmp.eq.s32.totalorder %s12, 0
    %p32 = por %p30, %p31
    %p33 = scmp.ne.s32.totalorder %s22, %s25
    %p34 = scmp.eq.s32.totalorder %s17, 1
    %p35 = por %p33, %p34
    %p36 = scmp.ne.s32.totalorder %s25, %s26
    %p37 = scmp.eq.s32.totalorder %s17, 0
    %p38 = por %p36, %p37
    %p39 = scmp.ne.s32.totalorder %s25, %s26
    %p40 = scmp.eq.s32.totalorder %s18, 1
    %p41 = por %p39, %p40
    %p43 = scmp.ne.s32.totalorder %s26, %s42
    %p44 = scmp.eq.s32.totalorder %s18, 0
    %p45 = por %p43, %p44
    %s47 = sadd.s32 %s46, 1
    %p50 = scmp.eq.s32.totalorder %s12, 1
    %p51 = scmp.ne.s32.totalorder %s46, %s48
    %p52 = scmp.eq.s32.totalorder %s12, 0
    %p53 = por %p51, %p52
    %p54 = scmp.ne.s32.totalorder %s46, %s48
    %p55 = scmp.eq.s32.totalorder %s17, 1
    %p56 = por %p54, %p55
    %p57 = scmp.ne.s32.totalorder %s48, %s49
    %p58 = scmp.eq.s32.totalorder %s17, 0
    %p59 = por %p57, %p58
    %p60 = scmp.ne.s32.totalorder %s48, %s49
    %p61 = scmp.eq.s32.totalorder %s18, 1
    %p62 = por %p60, %p61
    %p64 = scmp.ne.s32.totalorder %s49, %s63
    %p65 = scmp.eq.s32.totalorder %s18, 0
    %p66 = por %p64, %p65
    %s68 = sadd.s32 %s67, 1
    %p71 = scmp.eq.s32.totalorder %s12, 1
    %p72 = scmp.ne.s32.totalorder %s67, %s69
    %p73 = scmp.eq.s32.totalorder %s12, 0
    %p74 = por %p72, %p73
    %p75 = scmp.ne.s32.totalorder %s67, %s69
    %p76 = scmp.eq.s32.totalorder %s17, 1
    %p77 = por %p75, %p76
    %p78 = scmp.ne.s32.totalorder %s69, %s70
    %p79 = scmp.eq.s32.totalorder %s17, 0
    %p80 = por %p78, %p79
    %p81 = scmp.ne.s32.totalorder %s69, %s70
    %p82 = scmp.eq.s32.totalorder %s18, 1
    %p83 = por %p81, %p82
    %p85 = scmp.ne.s32.totalorder %s70, %s84
    %p86 = scmp.eq.s32.totalorder %s18, 0
    %p87 = por %p85, %p86
    %s89 = sadd.s32 %s88, 1
    %p92 = scmp.eq.s32.totalorder %s12, 1
    %p93 = scmp.ne.s32.totalorder %s88, %s90
    %p94 = scmp.eq.s32.totalorder %s12, 0
    %p95 = por %p93, %p94
    %p96 = scmp.ne.s32.totalorder %s88, %s90
    %p97 = scmp.eq.s32.totalorder %s17, 1
    %p98 = por %p96, %p97
    %p99 = scmp.ne.s32.totalorder %s90, %s91
    %p100 = scmp.eq.s32.totalorder %s17, 0
    %p101 = por %p99, %p100
    %p102 = scmp.ne.s32.totalorder %s90, %s91
    %p103 = scmp.eq.s32.totalorder %s18, 1
    %p104 = por %p102, %p103
    %p106 = scmp.ne.s32.totalorder %s91, %s105
    %p107 = scmp.eq.s32.totalorder %s18, 0
    %p108 = por %p106, %p107
    %s109 = ssub.s32 %s12, %s19
    %p110 = scmp.eq.s32.totalorder %s109, 0
    %s112 = sadd.s32 %s111, 1
    %s113 = scalar_select %p110, %s111, %s112
    %p116 = pneg %p110
    %p117 = scmp.eq.s32.totalorder %s12, 1
    %p118 = por %p116, %p117
    %p119 = scmp.ne.s32.totalorder %s111, %s114
    %p120 = scmp.eq.s32.totalorder %s12, 0
    %p121 = por %p119, %p120
    %p122 = scmp.ne.s32.totalorder %s111, %s114
    %p123 = scmp.eq.s32.totalorder %s17, 1
    %p124 = por %p122, %p123
    %p125 = scmp.ne.s32.totalorder %s114, %s115
    %p126 = scmp.eq.s32.totalorder %s17, 0
    %p127 = por %p125, %p126
    %p128 = scmp.ne.s32.totalorder %s114, %s115
    %p129 = scmp.eq.s32.totalorder %s18, 1
    %p130 = por %p128, %p129
    %p132 = scmp.ne.s32.totalorder %s115, %s131
    %p133 = scmp.eq.s32.totalorder %s18, 0
    %p134 = por %p132, %p133
    %s135 = ssub.s32 %s12, %s19
    %p136 = scmp.eq.s32.totalorder %s135, 0
    %s138 = sadd.s32 %s137, 1
    %s139 = scalar_select %p136, %s137, %s138
    %p142 = pneg %p136
    %p143 = scmp.eq.s32.totalorder %s12, 1
    %p144 = por %p142, %p143
    %p145 = scmp.ne.s32.totalorder %s137, %s140
    %p146 = scmp.eq.s32.totalorder %s12, 0
    %p147 = por %p145, %p146
    %p148 = scmp.ne.s32.totalorder %s137, %s140
    %p149 = scmp.eq.s32.totalorder %s17, 1
    %p150 = por %p148, %p149
    %p151 = scmp.ne.s32.totalorder %s140, %s141
    %p152 = scmp.eq.s32.totalorder %s17, 0
    %p153 = por %p151, %p152
    %p154 = scmp.ne.s32.totalorder %s140, %s141
    %p155 = scmp.eq.s32.totalorder %s18, 1
    %p156 = por %p154, %p155
    %p158 = scmp.ne.s32.totalorder %s141, %s157
    %p159 = scmp.eq.s32.totalorder %s18, 0
    %p160 = por %p158, %p159
    %p161 = scmp.le.s32.totalorder 1, %s12
    %p162 = scmp.lt.s32.totalorder %s12, 3
    %p163 = pnand %p161, %p162
    %p164 = pneg %p163
    // Predicated region
    $region9: #{debottleneck_forward.6} parent=5 // pred_check
      _
    $region10: #{debottleneck_forward.6} parent=5 // pred_check_branch
      %166 = sbr.rel (%p163) target = $region12
    $region11: #{debottleneck_forward.6} parent=5 // pred_region
      %s167 = ssub.s32 %s12, 1
      // Predicated region
      $region13: #{debottleneck_forward.6} parent=11 // pred_check
        %p168 = pneg %p59
      $region14: #{debottleneck_forward.6} parent=11 // pred_check_branch
        %170 = sbr.rel (%p168) target = $region16
      $region15: #{debottleneck_forward.6} parent=11 // pred_region
        _
      $region16: #{debottleneck_forward.6} parent=11 // pred_fallthru
        _
      // Predicated region
      $region17: #{debottleneck_forward.6} parent=11 // pred_check
        %p171 = pneg %p80
      $region18: #{debottleneck_forward.6} parent=11 // pred_check_branch
        %173 = sbr.rel (%p171) target = $region20
      $region19: #{debottleneck_forward.6} parent=11 // pred_region
        _
      $region20: #{debottleneck_forward.6} parent=11 // pred_fallthru
        _
      // Predicated region
      $region21: #{debottleneck_forward.6} parent=11 // pred_check
        %p174 = pneg %p101
      $region22: #{debottleneck_forward.6} parent=11 // pred_check_branch
        %176 = sbr.rel (%p174) target = $region24
      $region23: #{debottleneck_forward.6} parent=11 // pred_region
        _
      $region24: #{debottleneck_forward.6} parent=11 // pred_fallthru
        _
    $region12: #{debottleneck_forward.6} parent=5 // pred_fallthru
      _
    %p177 = scmp.lt.s32.totalorder %s12, 2
    // Predicated region
    $region25: #{debottleneck_forward.6} parent=5 // pred_check
      %p178 = pneg %p177
    $region26: #{debottleneck_forward.6} parent=5 // pred_check_branch
      %180 = sbr.rel (%p178) target = $region28
    $region27: #{debottleneck_forward.6} parent=5 // pred_region
      // Predicated region
      $region29: #{debottleneck_forward.6} parent=27 // pred_check
        %p181 = pneg %p32
      $region30: #{debottleneck_forward.6} parent=27 // pred_check_branch
        %183 = sbr.rel (%p181) target = $region32
      $region31: #{debottleneck_forward.6} parent=27 // pred_region
        %s184 = smul.u32 32, %s12
        %p185 = scmp.lt.s32.totalorder %s184, 63
        %s186 = scalar_select %p185, %s184, 63
        %s187 = smul.addr %s186, 8
        %s188 = scalar_lea.vmem %s0, %s187
        %s189 = smul.u32 32, %s12
      $region32: #{debottleneck_forward.6} parent=27 // pred_fallthru
        _
    $region28: #{debottleneck_forward.6} parent=5 // pred_fallthru
      _
    %p190 = scmp.le.s32.totalorder 1, %s12
    %p191 = scmp.lt.s32.totalorder %s12, 3
    %p192 = pnand %p190, %p191
    %p193 = pneg %p192
    // Predicated region
    $region33: #{debottleneck_forward.6} parent=5 // pred_check
      _
    $region34: #{debottleneck_forward.6} parent=5 // pred_check_branch
      %195 = sbr.rel (%p192) target = $region36
    $region35: #{debottleneck_forward.6} parent=5 // pred_region
      %s196 = ssub.s32 %s12, 1
      %s197 = smul.u32 32, %s17
      %p198 = scmp.lt.s32.totalorder %s197, 63
      %s199 = scalar_select %p198, %s197, 63
      %s200 = smul.addr %s199, 8
      %s201 = scalar_lea.vmem %s0, %s200
      %p202 = pneg %p38
      %p203 = pneg %p35
      %p204 = pneg %p59
      %p205 = pneg %p56
      %p206 = pneg %p80
      %p207 = pneg %p77
      %p208 = pneg %p101
      %p209 = pneg %p98
      %p210 = pneg %p127
      %p211 = pneg %p124
      %s212 = smul.u32 32, %s17
      %p213 = scmp.lt.s32.totalorder %s212, 63
      %s214 = scalar_select %p213, %s212, 63
      %s215 = smul.addr %s214, 8
      %s216 = scalar_lea.vmem %s4, %s215
      %p217 = pneg %p153
      %p218 = pneg %p150
      %p219 = scmp.lt.s32.totalorder %s17, 1
      %s220 = scalar_select %p219, %s17, 1
      %s221 = smul.addr %s220, 2
      %s222 = scalar_lea.vmem %s5, %s221
      %s223 = smul.u32 32, %s17
      %p224 = scmp.lt.s32.totalorder %s223, 63
      %s225 = scalar_select %p224, %s223, 63
      %s226 = smul.addr %s225, 8
      %s227 = scalar_lea.vmem %s0, %s226
      %s228 = smul.u32 32, %s17
      %s229 = smul.u32 32, %s17
      %p230 = scmp.lt.s32.totalorder %s229, 63
      %s231 = scalar_select %p230, %s229, 63
      %s232 = smul.addr %s231, 8
      %s233 = scalar_lea.vmem %s4, %s232
      %s234 = smul.u32 32, %s17
      %p235 = scmp.lt.s32.totalorder %s17, 1
      %s236 = scalar_select %p235, %s17, 1
      %s237 = smul.addr %s236, 2
      %s238 = scalar_lea.vmem %s5, %s237
      %v239 = vld [vmem:[%s227] sm:$0xff]
      %v240 = vld [vmem:[%s227 + $0x8] sm:$0xff]
      %v241 = vld [vmem:[%s227 + $0x10] sm:$0xff]
      %v242 = vld [vmem:[%s227 + $0x18] sm:$0xff]
      %v243 = vld [vmem:[%s227 + $0x20] sm:$0xff]
      %v244 = vld [vmem:[%s227 + $0x28] sm:$0xff]
      %v245 = vld [vmem:[%s227 + $0x30] sm:$0xff]
      %v246 = vld [vmem:[%s227 + $0x38] sm:$0xff]
      %v247 = vld [vmem:[%s227 + $0x40] sm:$0xff]
      %v248 = vld [vmem:[%s227 + $0x48] sm:$0xff]
      %v249 = vld [vmem:[%s227 + $0x50] sm:$0xff]
      %v250 = vld [vmem:[%s227 + $0x58] sm:$0xff]
      %v251 = vld [vmem:[%s227 + $0x60] sm:$0xff]
      %v252 = vld [vmem:[%s227 + $0x68] sm:$0xff]
      %v253 = vld [vmem:[%s227 + $0x70] sm:$0xff]
      %v254 = vld [vmem:[%s227 + $0x78] sm:$0xff]
      %v255 = vld [vmem:[%s227 + $0x80] sm:$0xff]
      %v256 = vld [vmem:[%s227 + $0x88] sm:$0xff]
      %v257 = vld [vmem:[%s227 + $0x90] sm:$0xff]
      %v258 = vld [vmem:[%s227 + $0x98] sm:$0xff]
      %v259 = vld [vmem:[%s227 + $0xa0] sm:$0xff]
      %v260 = vld [vmem:[%s227 + $0xa8] sm:$0xff]
      %v261 = vld [vmem:[%s227 + $0xb0] sm:$0xff]
      %v262 = vld [vmem:[%s227 + $0xb8] sm:$0xff]
      %v263 = vld [vmem:[%s227 + $0xc0] sm:$0xff]
      %v264 = vld [vmem:[%s227 + $0xc8] sm:$0xff]
      %v265 = vld [vmem:[%s227 + $0xd0] sm:$0xff]
      %v266 = vld [vmem:[%s227 + $0xd8] sm:$0xff]
      %v267 = vld [vmem:[%s227 + $0xe0] sm:$0xff]
      %v268 = vld [vmem:[%s227 + $0xe8] sm:$0xff]
      %v269 = vld [vmem:[%s227 + $0xf0] sm:$0xff]
      %v270 = vld [vmem:[%s227 + $0xf8] sm:$0xff]
      %v271 = vld [vmem:[%s1] sm:$0x1]
      %v273 = vperm.slane %v271, 0
      %v275 = vmul.f32 %v239, %v273
      %v276 = vmul.f32 %v240, %v273
      %v277 = vmul.f32 %v241, %v273
      %v278 = vmul.f32 %v242, %v273
      %v279 = vmul.f32 %v243, %v273
      %v280 = vmul.f32 %v244, %v273
      %v281 = vmul.f32 %v245, %v273
      %v282 = vmul.f32 %v246, %v273
      %v283 = vmul.f32 %v247, %v273
      %v284 = vmul.f32 %v248, %v273
      %v285 = vmul.f32 %v249, %v273
      %v286 = vmul.f32 %v250, %v273
      %v287 = vmul.f32 %v251, %v273
      %v288 = vmul.f32 %v252, %v273
      %v289 = vmul.f32 %v253, %v273
      %v290 = vmul.f32 %v254, %v273
      %v291 = vmul.f32 %v255, %v273
      %v292 = vmul.f32 %v256, %v273
      %v293 = vmul.f32 %v257, %v273
      %v294 = vmul.f32 %v258, %v273
      %v295 = vmul.f32 %v259, %v273
      %v296 = vmul.f32 %v260, %v273
      %v297 = vmul.f32 %v261, %v273
      %v298 = vmul.f32 %v262, %v273
      %v299 = vmul.f32 %v263, %v273
      %v300 = vmul.f32 %v264, %v273
      %v301 = vmul.f32 %v265, %v273
      %v302 = vmul.f32 %v266, %v273
      %v303 = vmul.f32 %v267, %v273
      %v304 = vmul.f32 %v268, %v273
      %v305 = vmul.f32 %v269, %v273
      %v306 = vmul.f32 %v270, %v273
      %v307 = vld [vmem:[%s2] sm:$0x1]
      %v309 = vperm.slane %v307, 0
      %v311 = vadd.f32 %v275, %v309
      %v312 = vadd.f32 %v276, %v309
      %v313 = vadd.f32 %v277, %v309
      %v314 = vadd.f32 %v278, %v309
      %v315 = vadd.f32 %v279, %v309
      %v316 = vadd.f32 %v280, %v309
      %v317 = vadd.f32 %v281, %v309
      %v318 = vadd.f32 %v282, %v309
      %v319 = vadd.f32 %v283, %v309
      %v320 = vadd.f32 %v284, %v309
      %v321 = vadd.f32 %v285, %v309
      %v322 = vadd.f32 %v286, %v309
      %v323 = vadd.f32 %v287, %v309
      %v324 = vadd.f32 %v288, %v309
      %v325 = vadd.f32 %v289, %v309
      %v326 = vadd.f32 %v290, %v309
      %v327 = vadd.f32 %v291, %v309
      %v328 = vadd.f32 %v292, %v309
      %v329 = vadd.f32 %v293, %v309
      %v330 = vadd.f32 %v294, %v309
      %v331 = vadd.f32 %v295, %v309
      %v332 = vadd.f32 %v296, %v309
      %v333 = vadd.f32 %v297, %v309
      %v334 = vadd.f32 %v298, %v309
      %v335 = vadd.f32 %v299, %v309
      %v336 = vadd.f32 %v300, %v309
      %v337 = vadd.f32 %v301, %v309
      %v338 = vadd.f32 %v302, %v309
      %v339 = vadd.f32 %v303, %v309
      %v340 = vadd.f32 %v304, %v309
      %v341 = vadd.f32 %v305, %v309
      %v342 = vadd.f32 %v306, %v309
      %v343 = vmax.f32 %v311, 0.0
      %v344 = vmax.f32 %v312, 0.0
      %v345 = vmax.f32 %v313, 0.0
      %v346 = vmax.f32 %v314, 0.0
      %v347 = vmax.f32 %v315, 0.0
      %v348 = vmax.f32 %v316, 0.0
      %v349 = vmax.f32 %v317, 0.0
      %v350 = vmax.f32 %v318, 0.0
      %v351 = vmax.f32 %v319, 0.0
      %v352 = vmax.f32 %v320, 0.0
      %v353 = vmax.f32 %v321, 0.0
      %v354 = vmax.f32 %v322, 0.0
      %v355 = vmax.f32 %v323, 0.0
      %v356 = vmax.f32 %v324, 0.0
      %v357 = vmax.f32 %v325, 0.0
      %v358 = vmax.f32 %v326, 0.0
      %v359 = vmax.f32 %v327, 0.0
      %v360 = vmax.f32 %v328, 0.0
      %v361 = vmax.f32 %v329, 0.0
      %v362 = vmax.f32 %v330, 0.0
      %v363 = vmax.f32 %v331, 0.0
      %v364 = vmax.f32 %v332, 0.0
      %v365 = vmax.f32 %v333, 0.0
      %v366 = vmax.f32 %v334, 0.0
      %v367 = vmax.f32 %v335, 0.0
      %v368 = vmax.f32 %v336, 0.0
      %v369 = vmax.f32 %v337, 0.0
      %v370 = vmax.f32 %v338, 0.0
      %v371 = vmax.f32 %v339, 0.0
      %v372 = vmax.f32 %v340, 0.0
      %v373 = vmax.f32 %v341, 0.0
      %v374 = vmax.f32 %v342, 0.0
      %v375 = vld [vmem:[%s3] sm:$0xff]
      %v376 = vld [vmem:[%s3 + $0x8] sm:$0xff]
      %v377 = vld [vmem:[%s3 + $0x10] sm:$0xff]
      %v378 = vld [vmem:[%s3 + $0x18] sm:$0xff]
      %v379 = vld [vmem:[%s3 + $0x20] sm:$0xff]
      %v380 = vld [vmem:[%s3 + $0x28] sm:$0xff]
      %v381 = vld [vmem:[%s3 + $0x30] sm:$0xff]
      %v382 = vld [vmem:[%s3 + $0x38] sm:$0xff]
      %v383 = vld [vmem:[%s3 + $0x40] sm:$0xff]
      %v384 = vld [vmem:[%s3 + $0x48] sm:$0xff]
      %v385 = vld [vmem:[%s3 + $0x50] sm:$0xff]
      %v386 = vld [vmem:[%s3 + $0x58] sm:$0xff]
      %v387 = vld [vmem:[%s3 + $0x60] sm:$0xff]
      %v388 = vld [vmem:[%s3 + $0x68] sm:$0xff]
      %v389 = vld [vmem:[%s3 + $0x70] sm:$0xff]
      %v390 = vld [vmem:[%s3 + $0x78] sm:$0xff]
      %391 = vmatpush.msra.mxu0 %v390
      %392 = vmatpush.msra.mxu0 %v389
      %393 = vmatpush.msra.mxu0 %v388
      %394 = vmatpush.msra.mxu0 %v387
      %395 = vmatpush.msra.mxu0 %v386
      %396 = vmatpush.msra.mxu0 %v385
      %397 = vmatpush.msra.mxu0 %v384
      %398 = vmatpush.msra.mxu0 %v383
      %399 = vmatpush.msra.mxu0 %v382
      %400 = vmatpush.msra.mxu0 %v381
      %401 = vmatpush.msra.mxu0 %v380
      %402 = vmatpush.msra.mxu0 %v379
      %403 = vmatpush.msra.mxu0 %v378
      %404 = vmatpush.msra.mxu0 %v377
      %405 = vmatpush.msra.mxu0 %v376
      %406 = vmatpush.msra.mxu0 %v375
      %407 = vmatmul.f32.gmra.mxu0 %v343
      %v408 = vpop.f32.mrf.mxu0
      %v409 = vadd.f32 0.0, %v408
      %410 = vmatmul.f32.gmra.mxu0 %v344
      %v411 = vpop.f32.mrf.mxu0
      %v412 = vadd.f32 0.0, %v411
      %413 = vmatmul.f32.gmra.mxu0 %v345
      %v414 = vpop.f32.mrf.mxu0
      %v415 = vadd.f32 0.0, %v414
      %416 = vmatmul.f32.gmra.mxu0 %v346
      %v417 = vpop.f32.mrf.mxu0
      %v418 = vadd.f32 0.0, %v417
      %419 = vmatmul.f32.gmra.mxu0 %v347
      %v420 = vpop.f32.mrf.mxu0
      %v421 = vadd.f32 0.0, %v420
      %422 = vmatmul.f32.gmra.mxu0 %v348
      %v423 = vpop.f32.mrf.mxu0
      %v424 = vadd.f32 0.0, %v423
      %425 = vmatmul.f32.gmra.mxu0 %v349
      %v426 = vpop.f32.mrf.mxu0
      %v427 = vadd.f32 0.0, %v426
      %428 = vmatmul.f32.gmra.mxu0 %v350
      %v429 = vpop.f32.mrf.mxu0
      %v430 = vadd.f32 0.0, %v429
      %431 = vmatmul.f32.gmra.mxu0 %v351
      %v432 = vpop.f32.mrf.mxu0
      %v433 = vadd.f32 0.0, %v432
      %434 = vmatmul.f32.gmra.mxu0 %v352
      %v435 = vpop.f32.mrf.mxu0
      %v436 = vadd.f32 0.0, %v435
      %437 = vmatmul.f32.gmra.mxu0 %v353
      %v438 = vpop.f32.mrf.mxu0
      %v439 = vadd.f32 0.0, %v438
      %440 = vmatmul.f32.gmra.mxu0 %v354
      %v441 = vpop.f32.mrf.mxu0
      %v442 = vadd.f32 0.0, %v441
      %443 = vmatmul.f32.gmra.mxu0 %v355
      %v444 = vpop.f32.mrf.mxu0
      %v445 = vadd.f32 0.0, %v444
      %446 = vmatmul.f32.gmra.mxu0 %v356
      %v447 = vpop.f32.mrf.mxu0
      %v448 = vadd.f32 0.0, %v447
      %449 = vmatmul.f32.gmra.mxu0 %v357
      %v450 = vpop.f32.mrf.mxu0
      %v451 = vadd.f32 0.0, %v450
      %452 = vmatmul.f32.gmra.mxu0 %v358
      %v453 = vpop.f32.mrf.mxu0
      %v454 = vadd.f32 0.0, %v453
      %455 = vmatmul.f32.gmra.mxu0 %v359
      %v456 = vpop.f32.mrf.mxu0
      %v457 = vadd.f32 0.0, %v456
      %458 = vmatmul.f32.gmra.mxu0 %v360
      %v459 = vpop.f32.mrf.mxu0
      %v460 = vadd.f32 0.0, %v459
      %461 = vmatmul.f32.gmra.mxu0 %v361
      %v462 = vpop.f32.mrf.mxu0
      %v463 = vadd.f32 0.0, %v462
      %464 = vmatmul.f32.gmra.mxu0 %v362
      %v465 = vpop.f32.mrf.mxu0
      %v466 = vadd.f32 0.0, %v465
      %467 = vmatmul.f32.gmra.mxu0 %v363
      %v468 = vpop.f32.mrf.mxu0
      %v469 = vadd.f32 0.0, %v468
      %470 = vmatmul.f32.gmra.mxu0 %v364
      %v471 = vpop.f32.mrf.mxu0
      %v472 = vadd.f32 0.0, %v471
      %473 = vmatmul.f32.gmra.mxu0 %v365
      %v474 = vpop.f32.mrf.mxu0
      %v475 = vadd.f32 0.0, %v474
      %476 = vmatmul.f32.gmra.mxu0 %v366
      %v477 = vpop.f32.mrf.mxu0
      %v478 = vadd.f32 0.0, %v477
      %479 = vmatmul.f32.gmra.mxu0 %v367
      %v480 = vpop.f32.mrf.mxu0
      %v481 = vadd.f32 0.0, %v480
      %482 = vmatmul.f32.gmra.mxu0 %v368
      %v483 = vpop.f32.mrf.mxu0
      %v484 = vadd.f32 0.0, %v483
      %485 = vmatmul.f32.gmra.mxu0 %v369
      %v486 = vpop.f32.mrf.mxu0
      %v487 = vadd.f32 0.0, %v486
      %488 = vmatmul.f32.gmra.mxu0 %v370
      %v489 = vpop.f32.mrf.mxu0
      %v490 = vadd.f32 0.0, %v489
      %491 = vmatmul.f32.gmra.mxu0 %v371
      %v492 = vpop.f32.mrf.mxu0
      %v493 = vadd.f32 0.0, %v492
      %494 = vmatmul.f32.gmra.mxu0 %v372
      %v495 = vpop.f32.mrf.mxu0
      %v496 = vadd.f32 0.0, %v495
      %497 = vmatmul.f32.gmra.mxu0 %v373
      %v498 = vpop.f32.mrf.mxu0
      %v499 = vadd.f32 0.0, %v498
      %500 = vmatmul.f32.gmra.mxu0 %v374
      %v501 = vpop.f32.mrf.mxu0
      %v502 = vadd.f32 0.0, %v501
      %503 = vdwg.mxu0
      %504 = vst [vmem:[%s233] sm:$0xff] %v409
      %505 = vst [vmem:[%s233 + $0x8] sm:$0xff] %v412
      %506 = vst [vmem:[%s233 + $0x10] sm:$0xff] %v415
      %507 = vst [vmem:[%s233 + $0x18] sm:$0xff] %v418
      %508 = vst [vmem:[%s233 + $0x20] sm:$0xff] %v421
      %509 = vst [vmem:[%s233 + $0x28] sm:$0xff] %v424
      %510 = vst [vmem:[%s233 + $0x30] sm:$0xff] %v427
      %511 = vst [vmem:[%s233 + $0x38] sm:$0xff] %v430
      %512 = vst [vmem:[%s233 + $0x40] sm:$0xff] %v433
      %513 = vst [vmem:[%s233 + $0x48] sm:$0xff] %v436
      %514 = vst [vmem:[%s233 + $0x50] sm:$0xff] %v439
      %515 = vst [vmem:[%s233 + $0x58] sm:$0xff] %v442
      %516 = vst [vmem:[%s233 + $0x60] sm:$0xff] %v445
      %517 = vst [vmem:[%s233 + $0x68] sm:$0xff] %v448
      %518 = vst [vmem:[%s233 + $0x70] sm:$0xff] %v451
      %519 = vst [vmem:[%s233 + $0x78] sm:$0xff] %v454
      %520 = vst [vmem:[%s233 + $0x80] sm:$0xff] %v457
      %521 = vst [vmem:[%s233 + $0x88] sm:$0xff] %v460
      %522 = vst [vmem:[%s233 + $0x90] sm:$0xff] %v463
      %523 = vst [vmem:[%s233 + $0x98] sm:$0xff] %v466
      %524 = vst [vmem:[%s233 + $0xa0] sm:$0xff] %v469
      %525 = vst [vmem:[%s233 + $0xa8] sm:$0xff] %v472
      %526 = vst [vmem:[%s233 + $0xb0] sm:$0xff] %v475
      %527 = vst [vmem:[%s233 + $0xb8] sm:$0xff] %v478
      %528 = vst [vmem:[%s233 + $0xc0] sm:$0xff] %v481
      %529 = vst [vmem:[%s233 + $0xc8] sm:$0xff] %v484
      %530 = vst [vmem:[%s233 + $0xd0] sm:$0xff] %v487
      %531 = vst [vmem:[%s233 + $0xd8] sm:$0xff] %v490
      %532 = vst [vmem:[%s233 + $0xe0] sm:$0xff] %v493
      %533 = vst [vmem:[%s233 + $0xe8] sm:$0xff] %v496
      %534 = vst [vmem:[%s233 + $0xf0] sm:$0xff] %v499
      %535 = vst [vmem:[%s233 + $0xf8] sm:$0xff] %v502
      %v536 = vadd.f32 %v409, %v412
      %v537 = vadd.f32 %v536, %v415
      %v538 = vadd.f32 %v537, %v418
      %v539 = vadd.f32 %v538, %v421
      %v540 = vadd.f32 %v539, %v424
      %v541 = vadd.f32 %v540, %v427
      %v542 = vadd.f32 %v541, %v430
      %v543 = vadd.f32 %v542, %v433
      %v544 = vadd.f32 %v543, %v436
      %v545 = vadd.f32 %v544, %v439
      %v546 = vadd.f32 %v545, %v442
      %v547 = vadd.f32 %v546, %v445
      %v548 = vadd.f32 %v547, %v448
      %v549 = vadd.f32 %v548, %v451
      %v550 = vadd.f32 %v549, %v454
      %v551 = vadd.f32 %v550, %v457
      %v552 = vadd.f32 %v551, %v460
      %v553 = vadd.f32 %v552, %v463
      %v554 = vadd.f32 %v553, %v466
      %v555 = vadd.f32 %v554, %v469
      %v556 = vadd.f32 %v555, %v472
      %v557 = vadd.f32 %v556, %v475
      %v558 = vadd.f32 %v557, %v478
      %v559 = vadd.f32 %v558, %v481
      %v560 = vadd.f32 %v559, %v484
      %v561 = vadd.f32 %v560, %v487
      %v562 = vadd.f32 %v561, %v490
      %v563 = vadd.f32 %v562, %v493
      %v564 = vadd.f32 %v563, %v496
      %v565 = vadd.f32 %v564, %v499
      %v566 = vadd.f32 %v565, %v502
      %v567 = vrot.slane %v566, 4
      %v568 = vadd.f32 %v566, %v567
      %v569 = vrot.slane %v568, 2
      %v570 = vadd.f32 %v568, %v569
      %v571 = vrot.slane %v570, 1
      %v572 = vadd.f32 %v570, %v571
      %v573 = vmul.f32 %v409, %v409
      %v574 = vmul.f32 %v412, %v412
      %v575 = vmul.f32 %v415, %v415
      %v576 = vmul.f32 %v418, %v418
      %v577 = vmul.f32 %v421, %v421
      %v578 = vmul.f32 %v424, %v424
      %v579 = vmul.f32 %v427, %v427
      %v580 = vmul.f32 %v430, %v430
      %v581 = vmul.f32 %v433, %v433
      %v582 = vmul.f32 %v436, %v436
      %v583 = vmul.f32 %v439, %v439
      %v584 = vmul.f32 %v442, %v442
      %v585 = vmul.f32 %v445, %v445
      %v586 = vmul.f32 %v448, %v448
      %v587 = vmul.f32 %v451, %v451
      %v588 = vmul.f32 %v454, %v454
      %v589 = vmul.f32 %v457, %v457
      %v590 = vmul.f32 %v460, %v460
      %v591 = vmul.f32 %v463, %v463
      %v592 = vmul.f32 %v466, %v466
      %v593 = vmul.f32 %v469, %v469
      %v594 = vmul.f32 %v472, %v472
      %v595 = vmul.f32 %v475, %v475
      %v596 = vmul.f32 %v478, %v478
      %v597 = vmul.f32 %v481, %v481
      %v598 = vmul.f32 %v484, %v484
      %v599 = vmul.f32 %v487, %v487
      %v600 = vmul.f32 %v490, %v490
      %v601 = vmul.f32 %v493, %v493
      %v602 = vmul.f32 %v496, %v496
      %v603 = vmul.f32 %v499, %v499
      %v604 = vmul.f32 %v502, %v502
      %v605 = vadd.f32 %v573, %v574
      %v606 = vadd.f32 %v605, %v575
      %v607 = vadd.f32 %v606, %v576
      %v608 = vadd.f32 %v607, %v577
      %v609 = vadd.f32 %v608, %v578
      %v610 = vadd.f32 %v609, %v579
      %v611 = vadd.f32 %v610, %v580
      %v612 = vadd.f32 %v611, %v581
      %v613 = vadd.f32 %v612, %v582
      %v614 = vadd.f32 %v613, %v583
      %v615 = vadd.f32 %v614, %v584
      %v616 = vadd.f32 %v615, %v585
      %v617 = vadd.f32 %v616, %v586
      %v618 = vadd.f32 %v617, %v587
      %v619 = vadd.f32 %v618, %v588
      %v620 = vadd.f32 %v619, %v589
      %v621 = vadd.f32 %v620, %v590
      %v622 = vadd.f32 %v621, %v591
      %v623 = vadd.f32 %v622, %v592
      %v624 = vadd.f32 %v623, %v593
      %v625 = vadd.f32 %v624, %v594
      %v626 = vadd.f32 %v625, %v595
      %v627 = vadd.f32 %v626, %v596
      %v628 = vadd.f32 %v627, %v597
      %v629 = vadd.f32 %v628, %v598
      %v630 = vadd.f32 %v629, %v599
      %v631 = vadd.f32 %v630, %v600
      %v632 = vadd.f32 %v631, %v601
      %v633 = vadd.f32 %v632, %v602
      %v634 = vadd.f32 %v633, %v603
      %v635 = vadd.f32 %v634, %v604
      %v636 = vrot.slane %v635, 4
      %v637 = vadd.f32 %v635, %v636
      %v638 = vrot.slane %v637, 2
      %v639 = vadd.f32 %v637, %v638
      %v640 = vrot.slane %v639, 1
      %v641 = vadd.f32 %v639, %v640
      %vm642 = vcmask 1040384
      %v643 = vsel %vm642, %v572, %v641
      %644 = vst [vmem:[%s238] sm:$0x3] %v643
      %s645 = smul.u32 32, %s17
      %p646 = scmp.lt.s32.totalorder %s645, 63
      %s647 = scalar_select %p646, %s645, 63
      %s648 = smul.addr %s647, 8
      %s649 = scalar_lea.vmem %s4, %s648
      %p650 = scmp.lt.s32.totalorder %s17, 1
      %s651 = scalar_select %p650, %s17, 1
      %s652 = smul.addr %s651, 2
      %s653 = scalar_lea.vmem %s5, %s652
      // Predicated region
      $region37: #{debottleneck_forward.6} parent=35 // pred_check
        %p654 = pneg %p124
      $region38: #{debottleneck_forward.6} parent=35 // pred_check_branch
        %656 = sbr.rel (%p654) target = $region40
      $region39: #{debottleneck_forward.6} parent=35 // pred_region
        %s657 = smul.u32 32, %s17
      $region40: #{debottleneck_forward.6} parent=35 // pred_fallthru
        _
      // Predicated region
      $region41: #{debottleneck_forward.6} parent=35 // pred_check
        %p658 = pneg %p150
      $region42: #{debottleneck_forward.6} parent=35 // pred_check_branch
        %660 = sbr.rel (%p658) target = $region44
      $region43: #{debottleneck_forward.6} parent=35 // pred_region
        _
      $region44: #{debottleneck_forward.6} parent=35 // pred_fallthru
        _
    $region36: #{debottleneck_forward.6} parent=5 // pred_fallthru
      _
    %p661 = scmp.le.s32.totalorder 2, %s12
    // Predicated region
    $region45: #{debottleneck_forward.6} parent=5 // pred_check
      %p662 = pneg %p661
    $region46: #{debottleneck_forward.6} parent=5 // pred_check_branch
      %664 = sbr.rel (%p662) target = $region48
    $region47: #{debottleneck_forward.6} parent=5 // pred_region
      %s665 = ssub.s32 %s12, 2
      // Predicated region
      $region49: #{debottleneck_forward.6} parent=47 // pred_check
        %p666 = pneg %p130
      $region50: #{debottleneck_forward.6} parent=47 // pred_check_branch
        %668 = sbr.rel (%p666) target = $region52
      $region51: #{debottleneck_forward.6} parent=47 // pred_region
        %s669 = smul.u32 32, %s18
        %p670 = scmp.lt.s32.totalorder %s669, 63
        %s671 = scalar_select %p670, %s669, 63
        %s672 = smul.addr %s671, 8
        %s673 = scalar_lea.vmem %s4, %s672
      $region52: #{debottleneck_forward.6} parent=47 // pred_fallthru
        _
      // Predicated region
      $region53: #{debottleneck_forward.6} parent=47 // pred_check
        %p674 = pneg %p156
      $region54: #{debottleneck_forward.6} parent=47 // pred_check_branch
        %676 = sbr.rel (%p674) target = $region56
      $region55: #{debottleneck_forward.6} parent=47 // pred_region
        %p677 = scmp.lt.s32.totalorder %s18, 1
        %s678 = scalar_select %p677, %s18, 1
        %s679 = smul.addr %s678, 2
        %s680 = scalar_lea.vmem %s5, %s679
      $region56: #{debottleneck_forward.6} parent=47 // pred_fallthru
        _
    $region48: #{debottleneck_forward.6} parent=5 // pred_fallthru
      _
  $region6: #{debottleneck_forward.6} parent=0 // loop_footer
    %s16 = sadd.s32 1, %s12
  $region7: #{debottleneck_forward.6} parent=0 // loop_footer_branch
    %11 = sbr.rel target = $region3
  $region8: #{debottleneck_forward.6} parent=0 // loop_exit
    _

// kernel: debottleneck_forward.5
$region0: #{debottleneck_forward.5}
  #allocation0 [shape = 'u32[]', space=smem, size = 0x4, offset = 0x4, fixed_abs, tag = 'smem constant byte address 0x4 - core index']
  #allocation1 [shape = 'u32[72,128]{1,0:T(1,128)}', space=vmem, size = 0x9000, scoped, tag = 'internal scratch']
  #allocation2 [shape = 'f32[18,18,128]{2,1,0:T(8,128)}', space=vmem, size = 0x36000, scoped, tag = 'scratch operand']
  #allocation3 [shape = 'f32[256,1152]{1,0:T(8,128)}', space=vmem, size = 0x120000, scoped, tag = 'scratch operand']
  %s0 = inlined_call_operand.vmem [shape: f32[512,128], index: 0, kind: input, shape index: {}]
  %s1 = inlined_call_operand.vmem [shape: f32[1,128], index: 1, kind: input, shape index: {}]
  %s2 = inlined_call_operand.vmem [shape: f32[1,128], index: 2, kind: input, shape index: {}]
  %s3 = inlined_call_operand.vmem [shape: f32[1152,128], index: 3, kind: input, shape index: {}]
  %s4 = inlined_call_operand.vmem [shape: f32[512,128], index: 4, kind: output, shape index: {0}]
  %s5 = inlined_call_operand.vmem [shape: f32[2,2,128], index: 5, kind: output, shape index: {1}]
  %6 = xla_tuple %s4, %s5
  %s7 = sld [smem:[#allocation0]]
  $region57: #{debottleneck_forward.5} parent=0
    _
  %s9 = ssub.s32 1, %s7
  %s10 = scalar_select 0, %s9, %s7
  loop: start=0, step=1, limit=4
  $region2: #{debottleneck_forward.5} parent=0 // loop_pre_header
    _
  $region3: #{debottleneck_forward.5} parent=0 // loop_header
    %s12 = sphi 0, %s16
    %p13 = scmp.ge.s32.totalorder %s12, 4
    %s22 = sphi 0, %s24
    %s25 = sphi 0, %s22
    %s26 = sphi 0, %s25
    %s42 = sphi 0, %s26
    %s46 = sphi 0, %s46
    %s48 = sphi 0, %s46
    %s49 = sphi 0, %s48
    %s63 = sphi 0, %s49
    %s67 = sphi 0, %s67
    %s69 = sphi 0, %s67
    %s70 = sphi 0, %s69
    %s84 = sphi 0, %s70
    %s88 = sphi 0, %s88
    %s90 = sphi 0, %s88
    %s91 = sphi 0, %s90
    %s105 = sphi 0, %s91
    %s111 = sphi 0, %s113
    %s114 = sphi 0, %s111
    %s115 = sphi 0, %s114
    %s131 = sphi 0, %s115
    %s137 = sphi 0, %s139
    %s140 = sphi 0, %s137
    %s141 = sphi 0, %s140
    %s157 = sphi 0, %s141
  $region4: #{debottleneck_forward.5} parent=0 // loop_header_branch
    %15 = sbr.rel (%p13) target = $region8
  $region5: #{debottleneck_forward.5} parent=0 // loop_body
    %s17 = ssub.s32 %s12, 1
    %s18 = ssub.s32 %s12, 2
    %s19 = sadd.s32 %s12, 1
    %s20 = ssub.s32 %s12, %s19
    %p21 = scmp.eq.s32.totalorder %s20, 0
    %s23 = sadd.s32 %s22, 1
    %s24 = scalar_select %p21, %s22, %s23
    %p27 = pneg %p21
    %p28 = scmp.eq.s32.totalorder %s12, 1
    %p29 = por %p27, %p28
    %p30 = scmp.ne.s32.totalorder %s22, %s25
    %p31 = scmp.eq.s32.totalorder %s12, 0
    %p32 = por %p30, %p31
    %p33 = scmp.ne.s32.totalorder %s22, %s25
    %p34 = scmp.eq.s32.totalorder %s17, 1
    %p35 = por %p33, %p34
    %p36 = scmp.ne.s32.totalorder %s25, %s26
    %p37 = scmp.eq.s32.totalorder %s17, 0
    %p38 = por %p36, %p37
    %p39 = scmp.ne.s32.totalorder %s25, %s26
    %p40 = scmp.eq.s32.totalorder %s18, 1
    %p41 = por %p39, %p40
    %p43 = scmp.ne.s32.totalorder %s26, %s42
    %p44 = scmp.eq.s32.totalorder %s18, 0
    %p45 = por %p43, %p44
    %s47 = sadd.s32 %s46, 1
    %p50 = scmp.eq.s32.totalorder %s12, 1
    %p51 = scmp.ne.s32.totalorder %s46, %s48
    %p52 = scmp.eq.s32.totalorder %s12, 0
    %p53 = por %p51, %p52
    %p54 = scmp.ne.s32.totalorder %s46, %s48
    %p55 = scmp.eq.s32.totalorder %s17, 1
    %p56 = por %p54, %p55
    %p57 = scmp.ne.s32.totalorder %s48, %s49
    %p58 = scmp.eq.s32.totalorder %s17, 0
    %p59 = por %p57, %p58
    %p60 = scmp.ne.s32.totalorder %s48, %s49
    %p61 = scmp.eq.s32.totalorder %s18, 1
    %p62 = por %p60, %p61
    %p64 = scmp.ne.s32.totalorder %s49, %s63
    %p65 = scmp.eq.s32.totalorder %s18, 0
    %p66 = por %p64, %p65
    %s68 = sadd.s32 %s67, 1
    %p71 = scmp.eq.s32.totalorder %s12, 1
    %p72 = scmp.ne.s32.totalorder %s67, %s69
    %p73 = scmp.eq.s32.totalorder %s12, 0
    %p74 = por %p72, %p73
    %p75 = scmp.ne.s32.totalorder %s67, %s69
    %p76 = scmp.eq.s32.totalorder %s17, 1
    %p77 = por %p75, %p76
    %p78 = scmp.ne.s32.totalorder %s69, %s70
    %p79 = scmp.eq.s32.totalorder %s17, 0
    %p80 = por %p78, %p79
    %p81 = scmp.ne.s32.totalorder %s69, %s70
    %p82 = scmp.eq.s32.totalorder %s18, 1
    %p83 = por %p81, %p82
    %p85 = scmp.ne.s32.totalorder %s70, %s84
    %p86 = scmp.eq.s32.totalorder %s18, 0
    %p87 = por %p85, %p86
    %s89 = sadd.s32 %s88, 1
    %p92 = scmp.eq.s32.totalorder %s12, 1
    %p93 = scmp.ne.s32.totalorder %s88, %s90
    %p94 = scmp.eq.s32.totalorder %s12, 0
    %p95 = por %p93, %p94
    %p96 = scmp.ne.s32.totalorder %s88, %s90
    %p97 = scmp.eq.s32.totalorder %s17, 1
    %p98 = por %p96, %p97
    %p99 = scmp.ne.s32.totalorder %s90, %s91
    %p100 = scmp.eq.s32.totalorder %s17, 0
    %p101 = por %p99, %p100
    %p102 = scmp.ne.s32.totalorder %s90, %s91
    %p103 = scmp.eq.s32.totalorder %s18, 1
    %p104 = por %p102, %p103
    %p106 = scmp.ne.s32.totalorder %s91, %s105
    %p107 = scmp.eq.s32.totalorder %s18, 0
    %p108 = por %p106, %p107
    %s109 = ssub.s32 %s12, %s19
    %p110 = scmp.eq.s32.totalorder %s109, 0
    %s112 = sadd.s32 %s111, 1
    %s113 = scalar_select %p110, %s111, %s112
    %p116 = pneg %p110
    %p117 = scmp.eq.s32.totalorder %s12, 1
    %p118 = por %p116, %p117
    %p119 = scmp.ne.s32.totalorder %s111, %s114
    %p120 = scmp.eq.s32.totalorder %s12, 0
    %p121 = por %p119, %p120
    %p122 = scmp.ne.s32.totalorder %s111, %s114
    %p123 = scmp.eq.s32.totalorder %s17, 1
    %p124 = por %p122, %p123
    %p125 = scmp.ne.s32.totalorder %s114, %s115
    %p126 = scmp.eq.s32.totalorder %s17, 0
    %p127 = por %p125, %p126
    %p128 = scmp.ne.s32.totalorder %s114, %s115
    %p129 = scmp.eq.s32.totalorder %s18, 1
    %p130 = por %p128, %p129
    %p132 = scmp.ne.s32.totalorder %s115, %s131
    %p133 = scmp.eq.s32.totalorder %s18, 0
    %p134 = por %p132, %p133
    %s135 = ssub.s32 %s12, %s19
    %p136 = scmp.eq.s32.totalorder %s135, 0
    %s138 = sadd.s32 %s137, 1
    %s139 = scalar_select %p136, %s137, %s138
    %p142 = pneg %p136
    %p143 = scmp.eq.s32.totalorder %s12, 1
    %p144 = por %p142, %p143
    %p145 = scmp.ne.s32.totalorder %s137, %s140
    %p146 = scmp.eq.s32.totalorder %s12, 0
    %p147 = por %p145, %p146
    %p148 = scmp.ne.s32.totalorder %s137, %s140
    %p149 = scmp.eq.s32.totalorder %s17, 1
    %p150 = por %p148, %p149
    %p151 = scmp.ne.s32.totalorder %s140, %s141
    %p152 = scmp.eq.s32.totalorder %s17, 0
    %p153 = por %p151, %p152
    %p154 = scmp.ne.s32.totalorder %s140, %s141
    %p155 = scmp.eq.s32.totalorder %s18, 1
    %p156 = por %p154, %p155
    %p158 = scmp.ne.s32.totalorder %s141, %s157
    %p159 = scmp.eq.s32.totalorder %s18, 0
    %p160 = por %p158, %p159
    %p161 = scmp.le.s32.totalorder 1, %s12
    %p162 = scmp.lt.s32.totalorder %s12, 3
    %p163 = pnand %p161, %p162
    %p164 = pneg %p163
    // Predicated region
    $region9: #{debottleneck_forward.5} parent=5 // pred_check
      _
    $region10: #{debottleneck_forward.5} parent=5 // pred_check_branch
      %166 = sbr.rel (%p163) target = $region12
    $region11: #{debottleneck_forward.5} parent=5 // pred_region
      %s167 = ssub.s32 %s12, 1
      // Predicated region
      $region13: #{debottleneck_forward.5} parent=11 // pred_check
        %p168 = pneg %p59
      $region14: #{debottleneck_forward.5} parent=11 // pred_check_branch
        %170 = sbr.rel (%p168) target = $region16
      $region15: #{debottleneck_forward.5} parent=11 // pred_region
        _
      $region16: #{debottleneck_forward.5} parent=11 // pred_fallthru
        _
      // Predicated region
      $region17: #{debottleneck_forward.5} parent=11 // pred_check
        %p171 = pneg %p80
      $region18: #{debottleneck_forward.5} parent=11 // pred_check_branch
        %173 = sbr.rel (%p171) target = $region20
      $region19: #{debottleneck_forward.5} parent=11 // pred_region
        _
      $region20: #{debottleneck_forward.5} parent=11 // pred_fallthru
        _
      // Predicated region
      $region21: #{debottleneck_forward.5} parent=11 // pred_check
        %p174 = pneg %p101
      $region22: #{debottleneck_forward.5} parent=11 // pred_check_branch
        %176 = sbr.rel (%p174) target = $region24
      $region23: #{debottleneck_forward.5} parent=11 // pred_region
        _
      $region24: #{debottleneck_forward.5} parent=11 // pred_fallthru
        _
    $region12: #{debottleneck_forward.5} parent=5 // pred_fallthru
      _
    %p177 = scmp.lt.s32.totalorder %s12, 2
    // Predicated region
    $region25: #{debottleneck_forward.5} parent=5 // pred_check
      %p178 = pneg %p177
    $region26: #{debottleneck_forward.5} parent=5 // pred_check_branch
      %180 = sbr.rel (%p178) target = $region28
    $region27: #{debottleneck_forward.5} parent=5 // pred_region
      // Predicated region
      $region29: #{debottleneck_forward.5} parent=27 // pred_check
        %p181 = pneg %p32
      $region30: #{debottleneck_forward.5} parent=27 // pred_check_branch
        %183 = sbr.rel (%p181) target = $region32
      $region31: #{debottleneck_forward.5} parent=27 // pred_region
        %s184 = smul.u32 32, %s12
        %p185 = scmp.lt.s32.totalorder %s184, 63
        %s186 = scalar_select %p185, %s184, 63
        %s187 = smul.addr %s186, 8
        %s188 = scalar_lea.vmem %s0, %s187
        %s189 = smul.u32 32, %s12
      $region32: #{debottleneck_forward.5} parent=27 // pred_fallthru
        _
    $region28: #{debottleneck_forward.5} parent=5 // pred_fallthru
      _
    %p190 = scmp.le.s32.totalorder 1, %s12
    %p191 = scmp.lt.s32.totalorder %s12, 3
    %p192 = pnand %p190, %p191
    %p193 = pneg %p192
    // Predicated region
    $region33: #{debottleneck_forward.5} parent=5 // pred_check
      _
    $region34: #{debottleneck_forward.5} parent=5 // pred_check_branch
      %195 = sbr.rel (%p192) target = $region36
    $region35: #{debottleneck_forward.5} parent=5 // pred_region
      %s196 = ssub.s32 %s12, 1
      %s197 = smul.u32 32, %s17
      %p198 = scmp.lt.s32.totalorder %s197, 63
      %s199 = scalar_select %p198, %s197, 63
      %s200 = smul.addr %s199, 8
      %s201 = scalar_lea.vmem %s0, %s200
      %p202 = pneg %p38
      %p203 = pneg %p35
      %p204 = pneg %p59
      %p205 = pneg %p56
      %p206 = pneg %p80
      %p207 = pneg %p77
      %p208 = pneg %p101
      %p209 = pneg %p98
      %p210 = pneg %p127
      %p211 = pneg %p124
      %s212 = smul.u32 32, %s17
      %p213 = scmp.lt.s32.totalorder %s212, 63
      %s214 = scalar_select %p213, %s212, 63
      %s215 = smul.addr %s214, 8
      %s216 = scalar_lea.vmem %s4, %s215
      %p217 = pneg %p153
      %p218 = pneg %p150
      %p219 = scmp.lt.s32.totalorder %s17, 1
      %s220 = scalar_select %p219, %s17, 1
      %s221 = smul.addr %s220, 2
      %s222 = scalar_lea.vmem %s5, %s221
      %s223 = smul.u32 32, %s17
      %p224 = scmp.lt.s32.totalorder %s223, 63
      %s225 = scalar_select %p224, %s223, 63
      %s226 = smul.addr %s225, 8
      %s227 = scalar_lea.vmem %s0, %s226
      %s228 = smul.u32 32, %s17
      %s229 = smul.u32 32, %s17
      %p230 = scmp.lt.s32.totalorder %s229, 63
      %s231 = scalar_select %p230, %s229, 63
      %s232 = smul.addr %s231, 8
      %s233 = scalar_lea.vmem %s4, %s232
      %s234 = smul.u32 32, %s17
      %p235 = scmp.lt.s32.totalorder %s17, 1
      %s236 = scalar_select %p235, %s17, 1
      %s237 = smul.addr %s236, 2
      %s238 = scalar_lea.vmem %s5, %s237
      %v239 = vld [vmem:[%s227] sm:$0xff]
      %v240 = vld [vmem:[%s227 + $0x8] sm:$0xff]
      %v241 = vld [vmem:[%s227 + $0x10] sm:$0xff]
      %v242 = vld [vmem:[%s227 + $0x18] sm:$0xff]
      %v243 = vld [vmem:[%s227 + $0x20] sm:$0xff]
      %v244 = vld [vmem:[%s227 + $0x28] sm:$0xff]
      %v245 = vld [vmem:[%s227 + $0x30] sm:$0xff]
      %v246 = vld [vmem:[%s227 + $0x38] sm:$0xff]
      %v247 = vld [vmem:[%s227 + $0x40] sm:$0xff]
      %v248 = vld [vmem:[%s227 + $0x48] sm:$0xff]
      %v249 = vld [vmem:[%s227 + $0x50] sm:$0xff]
      %v250 = vld [vmem:[%s227 + $0x58] sm:$0xff]
      %v251 = vld [vmem:[%s227 + $0x60] sm:$0xff]
      %v252 = vld [vmem:[%s227 + $0x68] sm:$0xff]
      %v253 = vld [vmem:[%s227 + $0x70] sm:$0xff]
      %v254 = vld [vmem:[%s227 + $0x78] sm:$0xff]
      %v255 = vld [vmem:[%s227 + $0x80] sm:$0xff]
      %v256 = vld [vmem:[%s227 + $0x88] sm:$0xff]
      %v257 = vld [vmem:[%s227 + $0x90] sm:$0xff]
      %v258 = vld [vmem:[%s227 + $0x98] sm:$0xff]
      %v259 = vld [vmem:[%s227 + $0xa0] sm:$0xff]
      %v260 = vld [vmem:[%s227 + $0xa8] sm:$0xff]
      %v261 = vld [vmem:[%s227 + $0xb0] sm:$0xff]
      %v262 = vld [vmem:[%s227 + $0xb8] sm:$0xff]
      %v263 = vld [vmem:[%s227 + $0xc0] sm:$0xff]
      %v264 = vld [vmem:[%s227 + $0xc8] sm:$0xff]
      %v265 = vld [vmem:[%s227 + $0xd0] sm:$0xff]
      %v266 = vld [vmem:[%s227 + $0xd8] sm:$0xff]
      %v267 = vld [vmem:[%s227 + $0xe0] sm:$0xff]
      %v268 = vld [vmem:[%s227 + $0xe8] sm:$0xff]
      %v269 = vld [vmem:[%s227 + $0xf0] sm:$0xff]
      %v270 = vld [vmem:[%s227 + $0xf8] sm:$0xff]
      %v271 = vld [vmem:[%s1] sm:$0x1]
      %v273 = vperm.slane %v271, 0
      %v275 = vmul.f32 %v239, %v273
      %v276 = vmul.f32 %v240, %v273
      %v277 = vmul.f32 %v241, %v273
      %v278 = vmul.f32 %v242, %v273
      %v279 = vmul.f32 %v243, %v273
      %v280 = vmul.f32 %v244, %v273
      %v281 = vmul.f32 %v245, %v273
      %v282 = vmul.f32 %v246, %v273
      %v283 = vmul.f32 %v247, %v273
      %v284 = vmul.f32 %v248, %v273
      %v285 = vmul.f32 %v249, %v273
      %v286 = vmul.f32 %v250, %v273
      %v287 = vmul.f32 %v251, %v273
      %v288 = vmul.f32 %v252, %v273
      %v289 = vmul.f32 %v253, %v273
      %v290 = vmul.f32 %v254, %v273
      %v291 = vmul.f32 %v255, %v273
      %v292 = vmul.f32 %v256, %v273
      %v293 = vmul.f32 %v257, %v273
      %v294 = vmul.f32 %v258, %v273
      %v295 = vmul.f32 %v259, %v273
      %v296 = vmul.f32 %v260, %v273
      %v297 = vmul.f32 %v261, %v273
      %v298 = vmul.f32 %v262, %v273
      %v299 = vmul.f32 %v263, %v273
      %v300 = vmul.f32 %v264, %v273
      %v301 = vmul.f32 %v265, %v273
      %v302 = vmul.f32 %v266, %v273
      %v303 = vmul.f32 %v267, %v273
      %v304 = vmul.f32 %v268, %v273
      %v305 = vmul.f32 %v269, %v273
      %v306 = vmul.f32 %v270, %v273
      %v307 = vld [vmem:[%s2] sm:$0x1]
      %v309 = vperm.slane %v307, 0
      %v311 = vadd.f32 %v275, %v309
      %v312 = vadd.f32 %v276, %v309
      %v313 = vadd.f32 %v277, %v309
      %v314 = vadd.f32 %v278, %v309
      %v315 = vadd.f32 %v279, %v309
      %v316 = vadd.f32 %v280, %v309
      %v317 = vadd.f32 %v281, %v309
      %v318 = vadd.f32 %v282, %v309
      %v319 = vadd.f32 %v283, %v309
      %v320 = vadd.f32 %v284, %v309
      %v321 = vadd.f32 %v285, %v309
      %v322 = vadd.f32 %v286, %v309
      %v323 = vadd.f32 %v287, %v309
      %v324 = vadd.f32 %v288, %v309
      %v325 = vadd.f32 %v289, %v309
      %v326 = vadd.f32 %v290, %v309
      %v327 = vadd.f32 %v291, %v309
      %v328 = vadd.f32 %v292, %v309
      %v329 = vadd.f32 %v293, %v309
      %v330 = vadd.f32 %v294, %v309
      %v331 = vadd.f32 %v295, %v309
      %v332 = vadd.f32 %v296, %v309
      %v333 = vadd.f32 %v297, %v309
      %v334 = vadd.f32 %v298, %v309
      %v335 = vadd.f32 %v299, %v309
      %v336 = vadd.f32 %v300, %v309
      %v337 = vadd.f32 %v301, %v309
      %v338 = vadd.f32 %v302, %v309
      %v339 = vadd.f32 %v303, %v309
      %v340 = vadd.f32 %v304, %v309
      %v341 = vadd.f32 %v305, %v309
      %v342 = vadd.f32 %v306, %v309
      %v343 = vmax.f32 %v311, 0.0
      %v344 = vmax.f32 %v312, 0.0
      %v345 = vmax.f32 %v313, 0.0
      %v346 = vmax.f32 %v314, 0.0
      %v347 = vmax.f32 %v315, 0.0
      %v348 = vmax.f32 %v316, 0.0
      %v349 = vmax.f32 %v317, 0.0
      %v350 = vmax.f32 %v318, 0.0
      %v351 = vmax.f32 %v319, 0.0
      %v352 = vmax.f32 %v320, 0.0
      %v353 = vmax.f32 %v321, 0.0
      %v354 = vmax.f32 %v322, 0.0
      %v355 = vmax.f32 %v323, 0.0
      %v356 = vmax.f32 %v324, 0.0
      %v357 = vmax.f32 %v325, 0.0
      %v358 = vmax.f32 %v326, 0.0
      %v359 = vmax.f32 %v327, 0.0
      %v360 = vmax.f32 %v328, 0.0
      %v361 = vmax.f32 %v329, 0.0
      %v362 = vmax.f32 %v330, 0.0
      %v363 = vmax.f32 %v331, 0.0
      %v364 = vmax.f32 %v332, 0.0
      %v365 = vmax.f32 %v333, 0.0
      %v366 = vmax.f32 %v334, 0.0
      %v367 = vmax.f32 %v335, 0.0
      %v368 = vmax.f32 %v336, 0.0
      %v369 = vmax.f32 %v337, 0.0
      %v370 = vmax.f32 %v338, 0.0
      %v371 = vmax.f32 %v339, 0.0
      %v372 = vmax.f32 %v340, 0.0
      %v373 = vmax.f32 %v341, 0.0
      %v374 = vmax.f32 %v342, 0.0
      %375 = vst [vmem:[#allocation2] sm:$0xff] 0.0
      %376 = vst [vmem:[#allocation2 + $0x8] sm:$0xff] 0.0
      %377 = vst [vmem:[#allocation2 + $0x10] sm:$0x3] 0.0
      %s378 = scalar_lea.vmem [#allocation2], 408
      %379 = vst [vmem:[%s378] sm:$0xff] 0.0
      %380 = vst [vmem:[%s378 + $0x8] sm:$0xff] 0.0
      %381 = vst [vmem:[%s378 + $0x10] sm:$0x3] 0.0
      %382 = vst [vmem:[#allocation2] sm:$0x1] 0.0
      %383 = vst [vmem:[#allocation2 + $0x18] sm:$0x1] 0.0
      %384 = vst [vmem:[#allocation2 + $0x30] sm:$0x1] 0.0
      %385 = vst [vmem:[#allocation2 + $0x48] sm:$0x1] 0.0
      %386 = vst [vmem:[#allocation2 + $0x60] sm:$0x1] 0.0
      %387 = vst [vmem:[#allocation2 + $0x78] sm:$0x1] 0.0
      %388 = vst [vmem:[#allocation2 + $0x90] sm:$0x1] 0.0
      %389 = vst [vmem:[#allocation2 + $0xa8] sm:$0x1] 0.0
      %390 = vst [vmem:[#allocation2 + $0xc0] sm:$0x1] 0.0
      %391 = vst [vmem:[#allocation2 + $0xd8] sm:$0x1] 0.0
      %392 = vst [vmem:[#allocation2 + $0xf0] sm:$0x1] 0.0
      %393 = vst [vmem:[#allocation2 + $0x108] sm:$0x1] 0.0
      %394 = vst [vmem:[#allocation2 + $0x120] sm:$0x1] 0.0
      %395 = vst [vmem:[#allocation2 + $0x138] sm:$0x1] 0.0
      %396 = vst [vmem:[#allocation2 + $0x150] sm:$0x1] 0.0
      %397 = vst [vmem:[#allocation2 + $0x168] sm:$0x1] 0.0
      %398 = vst [vmem:[#allocation2 + $0x180] sm:$0x1] 0.0
      %399 = vst [vmem:[#allocation2 + $0x198] sm:$0x1] 0.0
      %400 = vst [vmem:[#allocation2 + $0x11] sm:$0x1] 0.0
      %401 = vst [vmem:[#allocation2 + $0x29] sm:$0x1] 0.0
      %402 = vst [vmem:[#allocation2 + $0x41] sm:$0x1] 0.0
      %403 = vst [vmem:[#allocation2 + $0x59] sm:$0x1] 0.0
      %404 = vst [vmem:[#allocation2 + $0x71] sm:$0x1] 0.0
      %405 = vst [vmem:[#allocation2 + $0x89] sm:$0x1] 0.0
      %406 = vst [vmem:[#allocation2 + $0xa1] sm:$0x1] 0.0
      %407 = vst [vmem:[#allocation2 + $0xb9] sm:$0x1] 0.0
      %408 = vst [vmem:[#allocation2 + $0xd1] sm:$0x1] 0.0
      %409 = vst [vmem:[#allocation2 + $0xe9] sm:$0x1] 0.0
      %410 = vst [vmem:[#allocation2 + $0x101] sm:$0x1] 0.0
      %411 = vst [vmem:[#allocation2 + $0x119] sm:$0x1] 0.0
      %412 = vst [vmem:[#allocation2 + $0x131] sm:$0x1] 0.0
      %413 = vst [vmem:[#allocation2 + $0x149] sm:$0x1] 0.0
      %414 = vst [vmem:[#allocation2 + $0x161] sm:$0x1] 0.0
      %415 = vst [vmem:[#allocation2 + $0x179] sm:$0x1] 0.0
      %416 = vst [vmem:[#allocation2 + $0x191] sm:$0x1] 0.0
      %417 = vst [vmem:[#allocation2 + $0x1a9] sm:$0x1] 0.0
      %s418 = scalar_lea.vmem [#allocation2], 24
      %419 = vst [vmem:[%s418 + $0x1] sm:$0xff] %v343
      %420 = vst [vmem:[%s418 + $0x9] sm:$0xff] %v344
      %421 = vst [vmem:[%s418 + $0x19] sm:$0xff] %v345
      %422 = vst [vmem:[%s418 + $0x21] sm:$0xff] %v346
      %423 = vst [vmem:[%s418 + $0x31] sm:$0xff] %v347
      %424 = vst [vmem:[%s418 + $0x39] sm:$0xff] %v348
      %425 = vst [vmem:[%s418 + $0x49] sm:$0xff] %v349
      %426 = vst [vmem:[%s418 + $0x51] sm:$0xff] %v350
      %427 = vst [vmem:[%s418 + $0x61] sm:$0xff] %v351
      %428 = vst [vmem:[%s418 + $0x69] sm:$0xff] %v352
      %429 = vst [vmem:[%s418 + $0x79] sm:$0xff] %v353
      %430 = vst [vmem:[%s418 + $0x81] sm:$0xff] %v354
      %431 = vst [vmem:[%s418 + $0x91] sm:$0xff] %v355
      %432 = vst [vmem:[%s418 + $0x99] sm:$0xff] %v356
      %433 = vst [vmem:[%s418 + $0xa9] sm:$0xff] %v357
      %434 = vst [vmem:[%s418 + $0xb1] sm:$0xff] %v358
      %435 = vst [vmem:[%s418 + $0xc1] sm:$0xff] %v359
      %436 = vst [vmem:[%s418 + $0xc9] sm:$0xff] %v360
      %437 = vst [vmem:[%s418 + $0xd9] sm:$0xff] %v361
      %438 = vst [vmem:[%s418 + $0xe1] sm:$0xff] %v362
      %439 = vst [vmem:[%s418 + $0xf1] sm:$0xff] %v363
      %440 = vst [vmem:[%s418 + $0xf9] sm:$0xff] %v364
      %441 = vst [vmem:[%s418 + $0x109] sm:$0xff] %v365
      %442 = vst [vmem:[%s418 + $0x111] sm:$0xff] %v366
      %443 = vst [vmem:[%s418 + $0x121] sm:$0xff] %v367
      %444 = vst [vmem:[%s418 + $0x129] sm:$0xff] %v368
      %445 = vst [vmem:[%s418 + $0x139] sm:$0xff] %v369
      %446 = vst [vmem:[%s418 + $0x141] sm:$0xff] %v370
      %447 = vst [vmem:[%s418 + $0x151] sm:$0xff] %v371
      %448 = vst [vmem:[%s418 + $0x159] sm:$0xff] %v372
      %449 = vst [vmem:[%s418 + $0x169] sm:$0xff] %v373
      %450 = vst [vmem:[%s418 + $0x171] sm:$0xff] %v374
      %v451 = vld [vmem:[#allocation2] sm:$0xff]
      %v452 = vld [vmem:[#allocation2 + $0x8] sm:$0xff]
      %v453 = vld [vmem:[#allocation2 + $0x18] sm:$0xff]
      %v454 = vld [vmem:[#allocation2 + $0x20] sm:$0xff]
      %v455 = vld [vmem:[#allocation2 + $0x30] sm:$0xff]
      %v456 = vld [vmem:[#allocation2 + $0x38] sm:$0xff]
      %v457 = vld [vmem:[#allocation2 + $0x48] sm:$0xff]
      %v458 = vld [vmem:[#allocation2 + $0x50] sm:$0xff]
      %v459 = vld [vmem:[#allocation2 + $0x60] sm:$0xff]
      %v460 = vld [vmem:[#allocation2 + $0x68] sm:$0xff]
      %v461 = vld [vmem:[#allocation2 + $0x78] sm:$0xff]
      %v462 = vld [vmem:[#allocation2 + $0x80] sm:$0xff]
      %v463 = vld [vmem:[#allocation2 + $0x90] sm:$0xff]
      %v464 = vld [vmem:[#allocation2 + $0x98] sm:$0xff]
      %v465 = vld [vmem:[#allocation2 + $0xa8] sm:$0xff]
      %v466 = vld [vmem:[#allocation2 + $0xb0] sm:$0xff]
      %v467 = vld [vmem:[#allocation2 + $0xc0] sm:$0xff]
      %v468 = vld [vmem:[#allocation2 + $0xc8] sm:$0xff]
      %v469 = vld [vmem:[#allocation2 + $0xd8] sm:$0xff]
      %v470 = vld [vmem:[#allocation2 + $0xe0] sm:$0xff]
      %v471 = vld [vmem:[#allocation2 + $0xf0] sm:$0xff]
      %v472 = vld [vmem:[#allocation2 + $0xf8] sm:$0xff]
      %v473 = vld [vmem:[#allocation2 + $0x108] sm:$0xff]
      %v474 = vld [vmem:[#allocation2 + $0x110] sm:$0xff]
      %v475 = vld [vmem:[#allocation2 + $0x120] sm:$0xff]
      %v476 = vld [vmem:[#allocation2 + $0x128] sm:$0xff]
      %v477 = vld [vmem:[#allocation2 + $0x138] sm:$0xff]
      %v478 = vld [vmem:[#allocation2 + $0x140] sm:$0xff]
      %v479 = vld [vmem:[#allocation2 + $0x150] sm:$0xff]
      %v480 = vld [vmem:[#allocation2 + $0x158] sm:$0xff]
      %v481 = vld [vmem:[#allocation2 + $0x168] sm:$0xff]
      %v482 = vld [vmem:[#allocation2 + $0x170] sm:$0xff]
      %483 = vst [vmem:[#allocation3] sm:$0xff] %v451
      %484 = vst [vmem:[#allocation3 + $0x48] sm:$0xff] %v452
      %485 = vst [vmem:[#allocation3 + $0x90] sm:$0xff] %v453
      %486 = vst [vmem:[#allocation3 + $0xd8] sm:$0xff] %v454
      %487 = vst [vmem:[#allocation3 + $0x120] sm:$0xff] %v455
      %488 = vst [vmem:[#allocation3 + $0x168] sm:$0xff] %v456
      %489 = vst [vmem:[#allocation3 + $0x1b0] sm:$0xff] %v457
      %490 = vst [vmem:[#allocation3 + $0x1f8] sm:$0xff] %v458
      %491 = vst [vmem:[#allocation3 + $0x240] sm:$0xff] %v459
      %492 = vst [vmem:[#allocation3 + $0x288] sm:$0xff] %v460
      %493 = vst [vmem:[#allocation3 + $0x2d0] sm:$0xff] %v461
      %494 = vst [vmem:[#allocation3 + $0x318] sm:$0xff] %v462
      %495 = vst [vmem:[#allocation3 + $0x360] sm:$0xff] %v463
      %496 = vst [vmem:[#allocation3 + $0x3a8] sm:$0xff] %v464
      %497 = vst [vmem:[#allocation3 + $0x3f0] sm:$0xff] %v465
      %498 = vst [vmem:[#allocation3 + $0x438] sm:$0xff] %v466
      %499 = vst [vmem:[#allocation3 + $0x480] sm:$0xff] %v467
      %500 = vst [vmem:[#allocation3 + $0x4c8] sm:$0xff] %v468
      %501 = vst [vmem:[#allocation3 + $0x510] sm:$0xff] %v469
      %502 = vst [vmem:[#allocation3 + $0x558] sm:$0xff] %v470
      %503 = vst [vmem:[#allocation3 + $0x5a0] sm:$0xff] %v471
      %504 = vst [vmem:[#allocation3 + $0x5e8] sm:$0xff] %v472
      %505 = vst [vmem:[#allocation3 + $0x630] sm:$0xff] %v473
      %506 = vst [vmem:[#allocation3 + $0x678] sm:$0xff] %v474
      %507 = vst [vmem:[#allocation3 + $0x6c0] sm:$0xff] %v475
      %508 = vst [vmem:[#allocation3 + $0x708] sm:$0xff] %v476
      %509 = vst [vmem:[#allocation3 + $0x750] sm:$0xff] %v477
      %510 = vst [vmem:[#allocation3 + $0x798] sm:$0xff] %v478
      %511 = vst [vmem:[#allocation3 + $0x7e0] sm:$0xff] %v479
      %512 = vst [vmem:[#allocation3 + $0x828] sm:$0xff] %v480
      %513 = vst [vmem:[#allocation3 + $0x870] sm:$0xff] %v481
      %514 = vst [vmem:[#allocation3 + $0x8b8] sm:$0xff] %v482
      %v515 = vld [vmem:[#allocation2 + $0x1] sm:$0xff]
      %v516 = vld [vmem:[#allocation2 + $0x9] sm:$0xff]
      %v517 = vld [vmem:[#allocation2 + $0x19] sm:$0xff]
      %v518 = vld [vmem:[#allocation2 + $0x21] sm:$0xff]
      %v519 = vld [vmem:[#allocation2 + $0x31] sm:$0xff]
      %v520 = vld [vmem:[#allocation2 + $0x39] sm:$0xff]
      %v521 = vld [vmem:[#allocation2 + $0x49] sm:$0xff]
      %v522 = vld [vmem:[#allocation2 + $0x51] sm:$0xff]
      %v523 = vld [vmem:[#allocation2 + $0x61] sm:$0xff]
      %v524 = vld [vmem:[#allocation2 + $0x69] sm:$0xff]
      %v525 = vld [vmem:[#allocation2 + $0x79] sm:$0xff]
      %v526 = vld [vmem:[#allocation2 + $0x81] sm:$0xff]
      %v527 = vld [vmem:[#allocation2 + $0x91] sm:$0xff]
      %v528 = vld [vmem:[#allocation2 + $0x99] sm:$0xff]
      %v529 = vld [vmem:[#allocation2 + $0xa9] sm:$0xff]
      %v530 = vld [vmem:[#allocation2 + $0xb1] sm:$0xff]
      %v531 = vld [vmem:[#allocation2 + $0xc1] sm:$0xff]
      %v532 = vld [vmem:[#allocation2 + $0xc9] sm:$0xff]
      %v533 = vld [vmem:[#allocation2 + $0xd9] sm:$0xff]
      %v534 = vld [vmem:[#allocation2 + $0xe1] sm:$0xff]
      %v535 = vld [vmem:[#allocation2 + $0xf1] sm:$0xff]
      %v536 = vld [vmem:[#allocation2 + $0xf9] sm:$0xff]
      %v537 = vld [vmem:[#allocation2 + $0x109] sm:$0xff]
      %v538 = vld [vmem:[#allocation2 + $0x111] sm:$0xff]
      %v539 = vld [vmem:[#allocation2 + $0x121] sm:$0xff]
      %v540 = vld [vmem:[#allocation2 + $0x129] sm:$0xff]
      %v541 = vld [vmem:[#allocation2 + $0x139] sm:$0xff]
      %v542 = vld [vmem:[#allocation2 + $0x141] sm:$0xff]
      %v543 = vld [vmem:[#allocation2 + $0x151] sm:$0xff]
      %v544 = vld [vmem:[#allocation2 + $0x159] sm:$0xff]
      %v545 = vld [vmem:[#allocation2 + $0x169] sm:$0xff]
      %v546 = vld [vmem:[#allocation2 + $0x171] sm:$0xff]
      %547 = vst [vmem:[#allocation3 + $0x8] sm:$0xff] %v515
      %548 = vst [vmem:[#allocation3 + $0x50] sm:$0xff] %v516
      %549 = vst [vmem:[#allocation3 + $0x98] sm:$0xff] %v517
      %550 = vst [vmem:[#allocation3 + $0xe0] sm:$0xff] %v518
      %551 = vst [vmem:[#allocation3 + $0x128] sm:$0xff] %v519
      %552 = vst [vmem:[#allocation3 + $0x170] sm:$0xff] %v520
      %553 = vst [vmem:[#allocation3 + $0x1b8] sm:$0xff] %v521
      %554 = vst [vmem:[#allocation3 + $0x200] sm:$0xff] %v522
      %555 = vst [vmem:[#allocation3 + $0x248] sm:$0xff] %v523
      %556 = vst [vmem:[#allocation3 + $0x290] sm:$0xff] %v524
      %557 = vst [vmem:[#allocation3 + $0x2d8] sm:$0xff] %v525
      %558 = vst [vmem:[#allocation3 + $0x320] sm:$0xff] %v526
      %559 = vst [vmem:[#allocation3 + $0x368] sm:$0xff] %v527
      %560 = vst [vmem:[#allocation3 + $0x3b0] sm:$0xff] %v528
      %561 = vst [vmem:[#allocation3 + $0x3f8] sm:$0xff] %v529
      %562 = vst [vmem:[#allocation3 + $0x440] sm:$0xff] %v530
      %563 = vst [vmem:[#allocation3 + $0x488] sm:$0xff] %v531
      %564 = vst [vmem:[#allocation3 + $0x4d0] sm:$0xff] %v532
      %565 = vst [vmem:[#allocation3 + $0x518] sm:$0xff] %v533
      %566 = vst [vmem:[#allocation3 + $0x560] sm:$0xff] %v534
      %567 = vst [vmem:[#allocation3 + $0x5a8] sm:$0xff] %v535
      %568 = vst [vmem:[#allocation3 + $0x5f0] sm:$0xff] %v536
      %569 = vst [vmem:[#allocation3 + $0x638] sm:$0xff] %v537
      %570 = vst [vmem:[#allocation3 + $0x680] sm:$0xff] %v538
      %571 = vst [vmem:[#allocation3 + $0x6c8] sm:$0xff] %v539
      %572 = vst [vmem:[#allocation3 + $0x710] sm:$0xff] %v540
      %573 = vst [vmem:[#allocation3 + $0x758] sm:$0xff] %v541
      %574 = vst [vmem:[#allocation3 + $0x7a0] sm:$0xff] %v542
      %575 = vst [vmem:[#allocation3 + $0x7e8] sm:$0xff] %v543
      %576 = vst [vmem:[#allocation3 + $0x830] sm:$0xff] %v544
      %577 = vst [vmem:[#allocation3 + $0x878] sm:$0xff] %v545
      %578 = vst [vmem:[#allocation3 + $0x8c0] sm:$0xff] %v546
      %v579 = vld [vmem:[#allocation2 + $0x2] sm:$0xff]
      %v580 = vld [vmem:[#allocation2 + $0xa] sm:$0xff]
      %v581 = vld [vmem:[#allocation2 + $0x1a] sm:$0xff]
      %v582 = vld [vmem:[#allocation2 + $0x22] sm:$0xff]
      %v583 = vld [vmem:[#allocation2 + $0x32] sm:$0xff]
      %v584 = vld [vmem:[#allocation2 + $0x3a] sm:$0xff]
      %v585 = vld [vmem:[#allocation2 + $0x4a] sm:$0xff]
      %v586 = vld [vmem:[#allocation2 + $0x52] sm:$0xff]
      %v587 = vld [vmem:[#allocation2 + $0x62] sm:$0xff]
      %v588 = vld [vmem:[#allocation2 + $0x6a] sm:$0xff]
      %v589 = vld [vmem:[#allocation2 + $0x7a] sm:$0xff]
      %v590 = vld [vmem:[#allocation2 + $0x82] sm:$0xff]
      %v591 = vld [vmem:[#allocation2 + $0x92] sm:$0xff]
      %v592 = vld [vmem:[#allocation2 + $0x9a] sm:$0xff]
      %v593 = vld [vmem:[#allocation2 + $0xaa] sm:$0xff]
      %v594 = vld [vmem:[#allocation2 + $0xb2] sm:$0xff]
      %v595 = vld [vmem:[#allocation2 + $0xc2] sm:$0xff]
      %v596 = vld [vmem:[#allocation2 + $0xca] sm:$0xff]
      %v597 = vld [vmem:[#allocation2 + $0xda] sm:$0xff]
      %v598 = vld [vmem:[#allocation2 + $0xe2] sm:$0xff]
      %v599 = vld [vmem:[#allocation2 + $0xf2] sm:$0xff]
      %v600 = vld [vmem:[#allocation2 + $0xfa] sm:$0xff]
      %v601 = vld [vmem:[#allocation2 + $0x10a] sm:$0xff]
      %v602 = vld [vmem:[#allocation2 + $0x112] sm:$0xff]
      %v603 = vld [vmem:[#allocation2 + $0x122] sm:$0xff]
      %v604 = vld [vmem:[#allocation2 + $0x12a] sm:$0xff]
      %v605 = vld [vmem:[#allocation2 + $0x13a] sm:$0xff]
      %v606 = vld [vmem:[#allocation2 + $0x142] sm:$0xff]
      %v607 = vld [vmem:[#allocation2 + $0x152] sm:$0xff]
      %v608 = vld [vmem:[#allocation2 + $0x15a] sm:$0xff]
      %v609 = vld [vmem:[#allocation2 + $0x16a] sm:$0xff]
      %v610 = vld [vmem:[#allocation2 + $0x172] sm:$0xff]
      %611 = vst [vmem:[#allocation3 + $0x10] sm:$0xff] %v579
      %612 = vst [vmem:[#allocation3 + $0x58] sm:$0xff] %v580
      %613 = vst [vmem:[#allocation3 + $0xa0] sm:$0xff] %v581
      %614 = vst [vmem:[#allocation3 + $0xe8] sm:$0xff] %v582
      %615 = vst [vmem:[#allocation3 + $0x130] sm:$0xff] %v583
      %616 = vst [vmem:[#allocation3 + $0x178] sm:$0xff] %v584
      %617 = vst [vmem:[#allocation3 + $0x1c0] sm:$0xff] %v585
      %618 = vst [vmem:[#allocation3 + $0x208] sm:$0xff] %v586
      %619 = vst [vmem:[#allocation3 + $0x250] sm:$0xff] %v587
      %620 = vst [vmem:[#allocation3 + $0x298] sm:$0xff] %v588
      %621 = vst [vmem:[#allocation3 + $0x2e0] sm:$0xff] %v589
      %622 = vst [vmem:[#allocation3 + $0x328] sm:$0xff] %v590
      %623 = vst [vmem:[#allocation3 + $0x370] sm:$0xff] %v591
      %624 = vst [vmem:[#allocation3 + $0x3b8] sm:$0xff] %v592
      %625 = vst [vmem:[#allocation3 + $0x400] sm:$0xff] %v593
      %626 = vst [vmem:[#allocation3 + $0x448] sm:$0xff] %v594
      %627 = vst [vmem:[#allocation3 + $0x490] sm:$0xff] %v595
      %628 = vst [vmem:[#allocation3 + $0x4d8] sm:$0xff] %v596
      %629 = vst [vmem:[#allocation3 + $0x520] sm:$0xff] %v597
      %630 = vst [vmem:[#allocation3 + $0x568] sm:$0xff] %v598
      %631 = vst [vmem:[#allocation3 + $0x5b0] sm:$0xff] %v599
      %632 = vst [vmem:[#allocation3 + $0x5f8] sm:$0xff] %v600
      %633 = vst [vmem:[#allocation3 + $0x640] sm:$0xff] %v601
      %634 = vst [vmem:[#allocation3 + $0x688] sm:$0xff] %v602
      %635 = vst [vmem:[#allocation3 + $0x6d0] sm:$0xff] %v603
      %636 = vst [vmem:[#allocation3 + $0x718] sm:$0xff] %v604
      %637 = vst [vmem:[#allocation3 + $0x760] sm:$0xff] %v605
      %638 = vst [vmem:[#allocation3 + $0x7a8] sm:$0xff] %v606
      %639 = vst [vmem:[#allocation3 + $0x7f0] sm:$0xff] %v607
      %640 = vst [vmem:[#allocation3 + $0x838] sm:$0xff] %v608
      %641 = vst [vmem:[#allocation3 + $0x880] sm:$0xff] %v609
      %642 = vst [vmem:[#allocation3 + $0x8c8] sm:$0xff] %v610
      %v643 = vld [vmem:[%s418] sm:$0xff]
      %v644 = vld [vmem:[%s418 + $0x8] sm:$0xff]
      %v645 = vld [vmem:[%s418 + $0x18] sm:$0xff]
      %v646 = vld [vmem:[%s418 + $0x20] sm:$0xff]
      %v647 = vld [vmem:[%s418 + $0x30] sm:$0xff]
      %v648 = vld [vmem:[%s418 + $0x38] sm:$0xff]
      %v649 = vld [vmem:[%s418 + $0x48] sm:$0xff]
      %v650 = vld [vmem:[%s418 + $0x50] sm:$0xff]
      %v651 = vld [vmem:[%s418 + $0x60] sm:$0xff]
      %v652 = vld [vmem:[%s418 + $0x68] sm:$0xff]
      %v653 = vld [vmem:[%s418 + $0x78] sm:$0xff]
      %v654 = vld [vmem:[%s418 + $0x80] sm:$0xff]
      %v655 = vld [vmem:[%s418 + $0x90] sm:$0xff]
      %v656 = vld [vmem:[%s418 + $0x98] sm:$0xff]
      %v657 = vld [vmem:[%s418 + $0xa8] sm:$0xff]
      %v658 = vld [vmem:[%s418 + $0xb0] sm:$0xff]
      %v659 = vld [vmem:[%s418 + $0xc0] sm:$0xff]
      %v660 = vld [vmem:[%s418 + $0xc8] sm:$0xff]
      %v661 = vld [vmem:[%s418 + $0xd8] sm:$0xff]
      %v662 = vld [vmem:[%s418 + $0xe0] sm:$0xff]
      %v663 = vld [vmem:[%s418 + $0xf0] sm:$0xff]
      %v664 = vld [vmem:[%s418 + $0xf8] sm:$0xff]
      %v665 = vld [vmem:[%s418 + $0x108] sm:$0xff]
      %v666 = vld [vmem:[%s418 + $0x110] sm:$0xff]
      %v667 = vld [vmem:[%s418 + $0x120] sm:$0xff]
      %v668 = vld [vmem:[%s418 + $0x128] sm:$0xff]
      %v669 = vld [vmem:[%s418 + $0x138] sm:$0xff]
      %v670 = vld [vmem:[%s418 + $0x140] sm:$0xff]
      %v671 = vld [vmem:[%s418 + $0x150] sm:$0xff]
      %v672 = vld [vmem:[%s418 + $0x158] sm:$0xff]
      %v673 = vld [vmem:[%s418 + $0x168] sm:$0xff]
      %v674 = vld [vmem:[%s418 + $0x170] sm:$0xff]
      %675 = vst [vmem:[#allocation3 + $0x18] sm:$0xff] %v643
      %676 = vst [vmem:[#allocation3 + $0x60] sm:$0xff] %v644
      %677 = vst [vmem:[#allocation3 + $0xa8] sm:$0xff] %v645
      %678 = vst [vmem:[#allocation3 + $0xf0] sm:$0xff] %v646
      %679 = vst [vmem:[#allocation3 + $0x138] sm:$0xff] %v647
      %680 = vst [vmem:[#allocation3 + $0x180] sm:$0xff] %v648
      %681 = vst [vmem:[#allocation3 + $0x1c8] sm:$0xff] %v649
      %682 = vst [vmem:[#allocation3 + $0x210] sm:$0xff] %v650
      %683 = vst [vmem:[#allocation3 + $0x258] sm:$0xff] %v651
      %684 = vst [vmem:[#allocation3 + $0x2a0] sm:$0xff] %v652
      %685 = vst [vmem:[#allocation3 + $0x2e8] sm:$0xff] %v653
      %686 = vst [vmem:[#allocation3 + $0x330] sm:$0xff] %v654
      %687 = vst [vmem:[#allocation3 + $0x378] sm:$0xff] %v655
      %688 = vst [vmem:[#allocation3 + $0x3c0] sm:$0xff] %v656
      %689 = vst [vmem:[#allocation3 + $0x408] sm:$0xff] %v657
      %690 = vst [vmem:[#allocation3 + $0x450] sm:$0xff] %v658
      %691 = vst [vmem:[#allocation3 + $0x498] sm:$0xff] %v659
      %692 = vst [vmem:[#allocation3 + $0x4e0] sm:$0xff] %v660
      %693 = vst [vmem:[#allocation3 + $0x528] sm:$0xff] %v661
      %694 = vst [vmem:[#allocation3 + $0x570] sm:$0xff] %v662
      %695 = vst [vmem:[#allocation3 + $0x5b8] sm:$0xff] %v663
      %696 = vst [vmem:[#allocation3 + $0x600] sm:$0xff] %v664
      %697 = vst [vmem:[#allocation3 + $0x648] sm:$0xff] %v665
      %698 = vst [vmem:[#allocation3 + $0x690] sm:$0xff] %v666
      %699 = vst [vmem:[#allocation3 + $0x6d8] sm:$0xff] %v667
      %700 = vst [vmem:[#allocation3 + $0x720] sm:$0xff] %v668
      %701 = vst [vmem:[#allocation3 + $0x768] sm:$0xff] %v669
      %702 = vst [vmem:[#allocation3 + $0x7b0] sm:$0xff] %v670
      %703 = vst [vmem:[#allocation3 + $0x7f8] sm:$0xff] %v671
      %704 = vst [vmem:[#allocation3 + $0x840] sm:$0xff] %v672
      %705 = vst [vmem:[#allocation3 + $0x888] sm:$0xff] %v673
      %706 = vst [vmem:[#allocation3 + $0x8d0] sm:$0xff] %v674
      %v707 = vld [vmem:[%s418 + $0x1] sm:$0xff]
      %v708 = vld [vmem:[%s418 + $0x9] sm:$0xff]
      %v709 = vld [vmem:[%s418 + $0x19] sm:$0xff]
      %v710 = vld [vmem:[%s418 + $0x21] sm:$0xff]
      %v711 = vld [vmem:[%s418 + $0x31] sm:$0xff]
      %v712 = vld [vmem:[%s418 + $0x39] sm:$0xff]
      %v713 = vld [vmem:[%s418 + $0x49] sm:$0xff]
      %v714 = vld [vmem:[%s418 + $0x51] sm:$0xff]
      %v715 = vld [vmem:[%s418 + $0x61] sm:$0xff]
      %v716 = vld [vmem:[%s418 + $0x69] sm:$0xff]
      %v717 = vld [vmem:[%s418 + $0x79] sm:$0xff]
      %v718 = vld [vmem:[%s418 + $0x81] sm:$0xff]
      %v719 = vld [vmem:[%s418 + $0x91] sm:$0xff]
      %v720 = vld [vmem:[%s418 + $0x99] sm:$0xff]
      %v721 = vld [vmem:[%s418 + $0xa9] sm:$0xff]
      %v722 = vld [vmem:[%s418 + $0xb1] sm:$0xff]
      %v723 = vld [vmem:[%s418 + $0xc1] sm:$0xff]
      %v724 = vld [vmem:[%s418 + $0xc9] sm:$0xff]
      %v725 = vld [vmem:[%s418 + $0xd9] sm:$0xff]
      %v726 = vld [vmem:[%s418 + $0xe1] sm:$0xff]
      %v727 = vld [vmem:[%s418 + $0xf1] sm:$0xff]
      %v728 = vld [vmem:[%s418 + $0xf9] sm:$0xff]
      %v729 = vld [vmem:[%s418 + $0x109] sm:$0xff]
      %v730 = vld [vmem:[%s418 + $0x111] sm:$0xff]
      %v731 = vld [vmem:[%s418 + $0x121] sm:$0xff]
      %v732 = vld [vmem:[%s418 + $0x129] sm:$0xff]
      %v733 = vld [vmem:[%s418 + $0x139] sm:$0xff]
      %v734 = vld [vmem:[%s418 + $0x141] sm:$0xff]
      %v735 = vld [vmem:[%s418 + $0x151] sm:$0xff]
      %v736 = vld [vmem:[%s418 + $0x159] sm:$0xff]
      %v737 = vld [vmem:[%s418 + $0x169] sm:$0xff]
      %v738 = vld [vmem:[%s418 + $0x171] sm:$0xff]
      %739 = vst [vmem:[#allocation3 + $0x20] sm:$0xff] %v707
      %740 = vst [vmem:[#allocation3 + $0x68] sm:$0xff] %v708
      %741 = vst [vmem:[#allocation3 + $0xb0] sm:$0xff] %v709
      %742 = vst [vmem:[#allocation3 + $0xf8] sm:$0xff] %v710
      %743 = vst [vmem:[#allocation3 + $0x140] sm:$0xff] %v711
      %744 = vst [vmem:[#allocation3 + $0x188] sm:$0xff] %v712
      %745 = vst [vmem:[#allocation3 + $0x1d0] sm:$0xff] %v713
      %746 = vst [vmem:[#allocation3 + $0x218] sm:$0xff] %v714
      %747 = vst [vmem:[#allocation3 + $0x260] sm:$0xff] %v715
      %748 = vst [vmem:[#allocation3 + $0x2a8] sm:$0xff] %v716
      %749 = vst [vmem:[#allocation3 + $0x2f0] sm:$0xff] %v717
      %750 = vst [vmem:[#allocation3 + $0x338] sm:$0xff] %v718
      %751 = vst [vmem:[#allocation3 + $0x380] sm:$0xff] %v719
      %752 = vst [vmem:[#allocation3 + $0x3c8] sm:$0xff] %v720
      %753 = vst [vmem:[#allocation3 + $0x410] sm:$0xff] %v721
      %754 = vst [vmem:[#allocation3 + $0x458] sm:$0xff] %v722
      %755 = vst [vmem:[#allocation3 + $0x4a0] sm:$0xff] %v723
      %756 = vst [vmem:[#allocation3 + $0x4e8] sm:$0xff] %v724
      %757 = vst [vmem:[#allocation3 + $0x530] sm:$0xff] %v725
      %758 = vst [vmem:[#allocation3 + $0x578] sm:$0xff] %v726
      %759 = vst [vmem:[#allocation3 + $0x5c0] sm:$0xff] %v727
      %760 = vst [vmem:[#allocation3 + $0x608] sm:$0xff] %v728
      %761 = vst [vmem:[#allocation3 + $0x650] sm:$0xff] %v729
      %762 = vst [vmem:[#allocation3 + $0x698] sm:$0xff] %v730
      %763 = vst [vmem:[#allocation3 + $0x6e0] sm:$0xff] %v731
      %764 = vst [vmem:[#allocation3 + $0x728] sm:$0xff] %v732
      %765 = vst [vmem:[#allocation3 + $0x770] sm:$0xff] %v733
      %766 = vst [vmem:[#allocation3 + $0x7b8] sm:$0xff] %v734
      %767 = vst [vmem:[#allocation3 + $0x800] sm:$0xff] %v735
      %768 = vst [vmem:[#allocation3 + $0x848] sm:$0xff] %v736
      %769 = vst [vmem:[#allocation3 + $0x890] sm:$0xff] %v737
      %770 = vst [vmem:[#allocation3 + $0x8d8] sm:$0xff] %v738
      %v771 = vld [vmem:[%s418 + $0x2] sm:$0xff]
      %v772 = vld [vmem:[%s418 + $0xa] sm:$0xff]
      %v773 = vld [vmem:[%s418 + $0x1a] sm:$0xff]
      %v774 = vld [vmem:[%s418 + $0x22] sm:$0xff]
      %v775 = vld [vmem:[%s418 + $0x32] sm:$0xff]
      %v776 = vld [vmem:[%s418 + $0x3a] sm:$0xff]
      %v777 = vld [vmem:[%s418 + $0x4a] sm:$0xff]
      %v778 = vld [vmem:[%s418 + $0x52] sm:$0xff]
      %v779 = vld [vmem:[%s418 + $0x62] sm:$0xff]
      %v780 = vld [vmem:[%s418 + $0x6a] sm:$0xff]
      %v781 = vld [vmem:[%s418 + $0x7a] sm:$0xff]
      %v782 = vld [vmem:[%s418 + $0x82] sm:$0xff]
      %v783 = vld [vmem:[%s418 + $0x92] sm:$0xff]
      %v784 = vld [vmem:[%s418 + $0x9a] sm:$0xff]
      %v785 = vld [vmem:[%s418 + $0xaa] sm:$0xff]
      %v786 = vld [vmem:[%s418 + $0xb2] sm:$0xff]
      %v787 = vld [vmem:[%s418 + $0xc2] sm:$0xff]
      %v788 = vld [vmem:[%s418 + $0xca] sm:$0xff]
      %v789 = vld [vmem:[%s418 + $0xda] sm:$0xff]
      %v790 = vld [vmem:[%s418 + $0xe2] sm:$0xff]
      %v791 = vld [vmem:[%s418 + $0xf2] sm:$0xff]
      %v792 = vld [vmem:[%s418 + $0xfa] sm:$0xff]
      %v793 = vld [vmem:[%s418 + $0x10a] sm:$0xff]
      %v794 = vld [vmem:[%s418 + $0x112] sm:$0xff]
      %v795 = vld [vmem:[%s418 + $0x122] sm:$0xff]
      %v796 = vld [vmem:[%s418 + $0x12a] sm:$0xff]
      %v797 = vld [vmem:[%s418 + $0x13a] sm:$0xff]
      %v798 = vld [vmem:[%s418 + $0x142] sm:$0xff]
      %v799 = vld [vmem:[%s418 + $0x152] sm:$0xff]
      %v800 = vld [vmem:[%s418 + $0x15a] sm:$0xff]
      %v801 = vld [vmem:[%s418 + $0x16a] sm:$0xff]
      %v802 = vld [vmem:[%s418 + $0x172] sm:$0xff]
      %803 = vst [vmem:[#allocation3 + $0x28] sm:$0xff] %v771
      %804 = vst [vmem:[#allocation3 + $0x70] sm:$0xff] %v772
      %805 = vst [vmem:[#allocation3 + $0xb8] sm:$0xff] %v773
      %806 = vst [vmem:[#allocation3 + $0x100] sm:$0xff] %v774
      %807 = vst [vmem:[#allocation3 + $0x148] sm:$0xff] %v775
      %808 = vst [vmem:[#allocation3 + $0x190] sm:$0xff] %v776
      %809 = vst [vmem:[#allocation3 + $0x1d8] sm:$0xff] %v777
      %810 = vst [vmem:[#allocation3 + $0x220] sm:$0xff] %v778
      %811 = vst [vmem:[#allocation3 + $0x268] sm:$0xff] %v779
      %812 = vst [vmem:[#allocation3 + $0x2b0] sm:$0xff] %v780
      %813 = vst [vmem:[#allocation3 + $0x2f8] sm:$0xff] %v781
      %814 = vst [vmem:[#allocation3 + $0x340] sm:$0xff] %v782
      %815 = vst [vmem:[#allocation3 + $0x388] sm:$0xff] %v783
      %816 = vst [vmem:[#allocation3 + $0x3d0] sm:$0xff] %v784
      %817 = vst [vmem:[#allocation3 + $0x418] sm:$0xff] %v785
      %818 = vst [vmem:[#allocation3 + $0x460] sm:$0xff] %v786
      %819 = vst [vmem:[#allocation3 + $0x4a8] sm:$0xff] %v787
      %820 = vst [vmem:[#allocation3 + $0x4f0] sm:$0xff] %v788
      %821 = vst [vmem:[#allocation3 + $0x538] sm:$0xff] %v789
      %822 = vst [vmem:[#allocation3 + $0x580] sm:$0xff] %v790
      %823 = vst [vmem:[#allocation3 + $0x5c8] sm:$0xff] %v791
      %824 = vst [vmem:[#allocation3 + $0x610] sm:$0xff] %v792
      %825 = vst [vmem:[#allocation3 + $0x658] sm:$0xff] %v793
      %826 = vst [vmem:[#allocation3 + $0x6a0] sm:$0xff] %v794
      %827 = vst [vmem:[#allocation3 + $0x6e8] sm:$0xff] %v795
      %828 = vst [vmem:[#allocation3 + $0x730] sm:$0xff] %v796
      %829 = vst [vmem:[#allocation3 + $0x778] sm:$0xff] %v797
      %830 = vst [vmem:[#allocation3 + $0x7c0] sm:$0xff] %v798
      %831 = vst [vmem:[#allocation3 + $0x808] sm:$0xff] %v799
      %832 = vst [vmem:[#allocation3 + $0x850] sm:$0xff] %v800
      %833 = vst [vmem:[#allocation3 + $0x898] sm:$0xff] %v801
      %834 = vst [vmem:[#allocation3 + $0x8e0] sm:$0xff] %v802
      %s835 = scalar_lea.vmem [#allocation2], 48
      %v836 = vld [vmem:[%s835] sm:$0xff]
      %v837 = vld [vmem:[%s835 + $0x8] sm:$0xff]
      %v838 = vld [vmem:[%s835 + $0x18] sm:$0xff]
      %v839 = vld [vmem:[%s835 + $0x20] sm:$0xff]
      %v840 = vld [vmem:[%s835 + $0x30] sm:$0xff]
      %v841 = vld [vmem:[%s835 + $0x38] sm:$0xff]
      %v842 = vld [vmem:[%s835 + $0x48] sm:$0xff]
      %v843 = vld [vmem:[%s835 + $0x50] sm:$0xff]
      %v844 = vld [vmem:[%s835 + $0x60] sm:$0xff]
      %v845 = vld [vmem:[%s835 + $0x68] sm:$0xff]
      %v846 = vld [vmem:[%s835 + $0x78] sm:$0xff]
      %v847 = vld [vmem:[%s835 + $0x80] sm:$0xff]
      %v848 = vld [vmem:[%s835 + $0x90] sm:$0xff]
      %v849 = vld [vmem:[%s835 + $0x98] sm:$0xff]
      %v850 = vld [vmem:[%s835 + $0xa8] sm:$0xff]
      %v851 = vld [vmem:[%s835 + $0xb0] sm:$0xff]
      %v852 = vld [vmem:[%s835 + $0xc0] sm:$0xff]
      %v853 = vld [vmem:[%s835 + $0xc8] sm:$0xff]
      %v854 = vld [vmem:[%s835 + $0xd8] sm:$0xff]
      %v855 = vld [vmem:[%s835 + $0xe0] sm:$0xff]
      %v856 = vld [vmem:[%s835 + $0xf0] sm:$0xff]
      %v857 = vld [vmem:[%s835 + $0xf8] sm:$0xff]
      %v858 = vld [vmem:[%s835 + $0x108] sm:$0xff]
      %v859 = vld [vmem:[%s835 + $0x110] sm:$0xff]
      %v860 = vld [vmem:[%s835 + $0x120] sm:$0xff]
      %v861 = vld [vmem:[%s835 + $0x128] sm:$0xff]
      %v862 = vld [vmem:[%s835 + $0x138] sm:$0xff]
      %v863 = vld [vmem:[%s835 + $0x140] sm:$0xff]
      %v864 = vld [vmem:[%s835 + $0x150] sm:$0xff]
      %v865 = vld [vmem:[%s835 + $0x158] sm:$0xff]
      %v866 = vld [vmem:[%s835 + $0x168] sm:$0xff]
      %v867 = vld [vmem:[%s835 + $0x170] sm:$0xff]
      %868 = vst [vmem:[#allocation3 + $0x30] sm:$0xff] %v836
      %869 = vst [vmem:[#allocation3 + $0x78] sm:$0xff] %v837
      %870 = vst [vmem:[#allocation3 + $0xc0] sm:$0xff] %v838
      %871 = vst [vmem:[#allocation3 + $0x108] sm:$0xff] %v839
      %872 = vst [vmem:[#allocation3 + $0x150] sm:$0xff] %v840
      %873 = vst [vmem:[#allocation3 + $0x198] sm:$0xff] %v841
      %874 = vst [vmem:[#allocation3 + $0x1e0] sm:$0xff] %v842
      %875 = vst [vmem:[#allocation3 + $0x228] sm:$0xff] %v843
      %876 = vst [vmem:[#allocation3 + $0x270] sm:$0xff] %v844
      %877 = vst [vmem:[#allocation3 + $0x2b8] sm:$0xff] %v845
      %878 = vst [vmem:[#allocation3 + $0x300] sm:$0xff] %v846
      %879 = vst [vmem:[#allocation3 + $0x348] sm:$0xff] %v847
      %880 = vst [vmem:[#allocation3 + $0x390] sm:$0xff] %v848
      %881 = vst [vmem:[#allocation3 + $0x3d8] sm:$0xff] %v849
      %882 = vst [vmem:[#allocation3 + $0x420] sm:$0xff] %v850
      %883 = vst [vmem:[#allocation3 + $0x468] sm:$0xff] %v851
      %884 = vst [vmem:[#allocation3 + $0x4b0] sm:$0xff] %v852
      %885 = vst [vmem:[#allocation3 + $0x4f8] sm:$0xff] %v853
      %886 = vst [vmem:[#allocation3 + $0x540] sm:$0xff] %v854
      %887 = vst [vmem:[#allocation3 + $0x588] sm:$0xff] %v855
      %888 = vst [vmem:[#allocation3 + $0x5d0] sm:$0xff] %v856
      %889 = vst [vmem:[#allocation3 + $0x618] sm:$0xff] %v857
      %890 = vst [vmem:[#allocation3 + $0x660] sm:$0xff] %v858
      %891 = vst [vmem:[#allocation3 + $0x6a8] sm:$0xff] %v859
      %892 = vst [vmem:[#allocation3 + $0x6f0] sm:$0xff] %v860
      %893 = vst [vmem:[#allocation3 + $0x738] sm:$0xff] %v861
      %894 = vst [vmem:[#allocation3 + $0x780] sm:$0xff] %v862
      %895 = vst [vmem:[#allocation3 + $0x7c8] sm:$0xff] %v863
      %896 = vst [vmem:[#allocation3 + $0x810] sm:$0xff] %v864
      %897 = vst [vmem:[#allocation3 + $0x858] sm:$0xff] %v865
      %898 = vst [vmem:[#allocation3 + $0x8a0] sm:$0xff] %v866
      %899 = vst [vmem:[#allocation3 + $0x8e8] sm:$0xff] %v867
      %v900 = vld [vmem:[%s835 + $0x1] sm:$0xff]
      %v901 = vld [vmem:[%s835 + $0x9] sm:$0xff]
      %v902 = vld [vmem:[%s835 + $0x19] sm:$0xff]
      %v903 = vld [vmem:[%s835 + $0x21] sm:$0xff]
      %v904 = vld [vmem:[%s835 + $0x31] sm:$0xff]
      %v905 = vld [vmem:[%s835 + $0x39] sm:$0xff]
      %v906 = vld [vmem:[%s835 + $0x49] sm:$0xff]
      %v907 = vld [vmem:[%s835 + $0x51] sm:$0xff]
      %v908 = vld [vmem:[%s835 + $0x61] sm:$0xff]
      %v909 = vld [vmem:[%s835 + $0x69] sm:$0xff]
      %v910 = vld [vmem:[%s835 + $0x79] sm:$0xff]
      %v911 = vld [vmem:[%s835 + $0x81] sm:$0xff]
      %v912 = vld [vmem:[%s835 + $0x91] sm:$0xff]
      %v913 = vld [vmem:[%s835 + $0x99] sm:$0xff]
      %v914 = vld [vmem:[%s835 + $0xa9] sm:$0xff]
      %v915 = vld [vmem:[%s835 + $0xb1] sm:$0xff]
      %v916 = vld [vmem:[%s835 + $0xc1] sm:$0xff]
      %v917 = vld [vmem:[%s835 + $0xc9] sm:$0xff]
      %v918 = vld [vmem:[%s835 + $0xd9] sm:$0xff]
      %v919 = vld [vmem:[%s835 + $0xe1] sm:$0xff]
      %v920 = vld [vmem:[%s835 + $0xf1] sm:$0xff]
      %v921 = vld [vmem:[%s835 + $0xf9] sm:$0xff]
      %v922 = vld [vmem:[%s835 + $0x109] sm:$0xff]
      %v923 = vld [vmem:[%s835 + $0x111] sm:$0xff]
      %v924 = vld [vmem:[%s835 + $0x121] sm:$0xff]
      %v925 = vld [vmem:[%s835 + $0x129] sm:$0xff]
      %v926 = vld [vmem:[%s835 + $0x139] sm:$0xff]
      %v927 = vld [vmem:[%s835 + $0x141] sm:$0xff]
      %v928 = vld [vmem:[%s835 + $0x151] sm:$0xff]
      %v929 = vld [vmem:[%s835 + $0x159] sm:$0xff]
      %v930 = vld [vmem:[%s835 + $0x169] sm:$0xff]
      %v931 = vld [vmem:[%s835 + $0x171] sm:$0xff]
      %932 = vst [vmem:[#allocation3 + $0x38] sm:$0xff] %v900
      %933 = vst [vmem:[#allocation3 + $0x80] sm:$0xff] %v901
      %934 = vst [vmem:[#allocation3 + $0xc8] sm:$0xff] %v902
      %935 = vst [vmem:[#allocation3 + $0x110] sm:$0xff] %v903
      %936 = vst [vmem:[#allocation3 + $0x158] sm:$0xff] %v904
      %937 = vst [vmem:[#allocation3 + $0x1a0] sm:$0xff] %v905
      %938 = vst [vmem:[#allocation3 + $0x1e8] sm:$0xff] %v906
      %939 = vst [vmem:[#allocation3 + $0x230] sm:$0xff] %v907
      %940 = vst [vmem:[#allocation3 + $0x278] sm:$0xff] %v908
      %941 = vst [vmem:[#allocation3 + $0x2c0] sm:$0xff] %v909
      %942 = vst [vmem:[#allocation3 + $0x308] sm:$0xff] %v910
      %943 = vst [vmem:[#allocation3 + $0x350] sm:$0xff] %v911
      %944 = vst [vmem:[#allocation3 + $0x398] sm:$0xff] %v912
      %945 = vst [vmem:[#allocation3 + $0x3e0] sm:$0xff] %v913
      %946 = vst [vmem:[#allocation3 + $0x428] sm:$0xff] %v914
      %947 = vst [vmem:[#allocation3 + $0x470] sm:$0xff] %v915
      %948 = vst [vmem:[#allocation3 + $0x4b8] sm:$0xff] %v916
      %949 = vst [vmem:[#allocation3 + $0x500] sm:$0xff] %v917
      %950 = vst [vmem:[#allocation3 + $0x548] sm:$0xff] %v918
      %951 = vst [vmem:[#allocation3 + $0x590] sm:$0xff] %v919
      %952 = vst [vmem:[#allocation3 + $0x5d8] sm:$0xff] %v920
      %953 = vst [vmem:[#allocation3 + $0x620] sm:$0xff] %v921
      %954 = vst [vmem:[#allocation3 + $0x668] sm:$0xff] %v922
      %955 = vst [vmem:[#allocation3 + $0x6b0] sm:$0xff] %v923
      %956 = vst [vmem:[#allocation3 + $0x6f8] sm:$0xff] %v924
      %957 = vst [vmem:[#allocation3 + $0x740] sm:$0xff] %v925
      %958 = vst [vmem:[#allocation3 + $0x788] sm:$0xff] %v926
      %959 = vst [vmem:[#allocation3 + $0x7d0] sm:$0xff] %v927
      %960 = vst [vmem:[#allocation3 + $0x818] sm:$0xff] %v928
      %961 = vst [vmem:[#allocation3 + $0x860] sm:$0xff] %v929
      %962 = vst [vmem:[#allocation3 + $0x8a8] sm:$0xff] %v930
      %963 = vst [vmem:[#allocation3 + $0x8f0] sm:$0xff] %v931
      %v964 = vld [vmem:[%s835 + $0x2] sm:$0xff]
      %v965 = vld [vmem:[%s835 + $0xa] sm:$0xff]
      %v966 = vld [vmem:[%s835 + $0x1a] sm:$0xff]
      %v967 = vld [vmem:[%s835 + $0x22] sm:$0xff]
      %v968 = vld [vmem:[%s835 + $0x32] sm:$0xff]
      %v969 = vld [vmem:[%s835 + $0x3a] sm:$0xff]
      %v970 = vld [vmem:[%s835 + $0x4a] sm:$0xff]
      %v971 = vld [vmem:[%s835 + $0x52] sm:$0xff]
      %v972 = vld [vmem:[%s835 + $0x62] sm:$0xff]
      %v973 = vld [vmem:[%s835 + $0x6a] sm:$0xff]
      %v974 = vld [vmem:[%s835 + $0x7a] sm:$0xff]
      %v975 = vld [vmem:[%s835 + $0x82] sm:$0xff]
      %v976 = vld [vmem:[%s835 + $0x92] sm:$0xff]
      %v977 = vld [vmem:[%s835 + $0x9a] sm:$0xff]
      %v978 = vld [vmem:[%s835 + $0xaa] sm:$0xff]
      %v979 = vld [vmem:[%s835 + $0xb2] sm:$0xff]
      %v980 = vld [vmem:[%s835 + $0xc2] sm:$0xff]
      %v981 = vld [vmem:[%s835 + $0xca] sm:$0xff]
      %v982 = vld [vmem:[%s835 + $0xda] sm:$0xff]
      %v983 = vld [vmem:[%s835 + $0xe2] sm:$0xff]
      %v984 = vld [vmem:[%s835 + $0xf2] sm:$0xff]
      %v985 = vld [vmem:[%s835 + $0xfa] sm:$0xff]
      %v986 = vld [vmem:[%s835 + $0x10a] sm:$0xff]
      %v987 = vld [vmem:[%s835 + $0x112] sm:$0xff]
      %v988 = vld [vmem:[%s835 + $0x122] sm:$0xff]
      %v989 = vld [vmem:[%s835 + $0x12a] sm:$0xff]
      %v990 = vld [vmem:[%s835 + $0x13a] sm:$0xff]
      %v991 = vld [vmem:[%s835 + $0x142] sm:$0xff]
      %v992 = vld [vmem:[%s835 + $0x152] sm:$0xff]
      %v993 = vld [vmem:[%s835 + $0x15a] sm:$0xff]
      %v994 = vld [vmem:[%s835 + $0x16a] sm:$0xff]
      %v995 = vld [vmem:[%s835 + $0x172] sm:$0xff]
      %996 = vst [vmem:[#allocation3 + $0x40] sm:$0xff] %v964
      %997 = vst [vmem:[#allocation3 + $0x88] sm:$0xff] %v965
      %998 = vst [vmem:[#allocation3 + $0xd0] sm:$0xff] %v966
      %999 = vst [vmem:[#allocation3 + $0x118] sm:$0xff] %v967
      %1000 = vst [vmem:[#allocation3 + $0x160] sm:$0xff] %v968
      %1001 = vst [vmem:[#allocation3 + $0x1a8] sm:$0xff] %v969
      %1002 = vst [vmem:[#allocation3 + $0x1f0] sm:$0xff] %v970
      %1003 = vst [vmem:[#allocation3 + $0x238] sm:$0xff] %v971
      %1004 = vst [vmem:[#allocation3 + $0x280] sm:$0xff] %v972
      %1005 = vst [vmem:[#allocation3 + $0x2c8] sm:$0xff] %v973
      %1006 = vst [vmem:[#allocation3 + $0x310] sm:$0xff] %v974
      %1007 = vst [vmem:[#allocation3 + $0x358] sm:$0xff] %v975
      %1008 = vst [vmem:[#allocation3 + $0x3a0] sm:$0xff] %v976
      %1009 = vst [vmem:[#allocation3 + $0x3e8] sm:$0xff] %v977
      %1010 = vst [vmem:[#allocation3 + $0x430] sm:$0xff] %v978
      %1011 = vst [vmem:[#allocation3 + $0x478] sm:$0xff] %v979
      %1012 = vst [vmem:[#allocation3 + $0x4c0] sm:$0xff] %v980
      %1013 = vst [vmem:[#allocation3 + $0x508] sm:$0xff] %v981
      %1014 = vst [vmem:[#allocation3 + $0x550] sm:$0xff] %v982
      %1015 = vst [vmem:[#allocation3 + $0x598] sm:$0xff] %v983
      %1016 = vst [vmem:[#allocation3 + $0x5e0] sm:$0xff] %v984
      %1017 = vst [vmem:[#allocation3 + $0x628] sm:$0xff] %v985
      %1018 = vst [vmem:[#allocation3 + $0x670] sm:$0xff] %v986
      %1019 = vst [vmem:[#allocation3 + $0x6b8] sm:$0xff] %v987
      %1020 = vst [vmem:[#allocation3 + $0x700] sm:$0xff] %v988
      %1021 = vst [vmem:[#allocation3 + $0x748] sm:$0xff] %v989
      %1022 = vst [vmem:[#allocation3 + $0x790] sm:$0xff] %v990
      %1023 = vst [vmem:[#allocation3 + $0x7d8] sm:$0xff] %v991
      %1024 = vst [vmem:[#allocation3 + $0x820] sm:$0xff] %v992
      %1025 = vst [vmem:[#allocation3 + $0x868] sm:$0xff] %v993
      %1026 = vst [vmem:[#allocation3 + $0x8b0] sm:$0xff] %v994
      %1027 = vst [vmem:[#allocation3 + $0x8f8] sm:$0xff] %v995
      %v1028 = vld [vmem:[#allocation3] sm:$0xff]
      %v1029 = vld [vmem:[#allocation3 + $0x8] sm:$0xff]
      %v1030 = vld [vmem:[#allocation3 + $0x10] sm:$0xff]
      %v1031 = vld [vmem:[#allocation3 + $0x18] sm:$0xff]
      %v1032 = vld [vmem:[#allocation3 + $0x20] sm:$0xff]
      %v1033 = vld [vmem:[#allocation3 + $0x28] sm:$0xff]
      %v1034 = vld [vmem:[#allocation3 + $0x30] sm:$0xff]
      %v1035 = vld [vmem:[#allocation3 + $0x38] sm:$0xff]
      %v1036 = vld [vmem:[#allocation3 + $0x40] sm:$0xff]
      %v1037 = vld [vmem:[#allocation3 + $0x48] sm:$0xff]
      %v1038 = vld [vmem:[#allocation3 + $0x50] sm:$0xff]
      %v1039 = vld [vmem:[#allocation3 + $0x58] sm:$0xff]
      %v1040 = vld [vmem:[#allocation3 + $0x60] sm:$0xff]
      %v1041 = vld [vmem:[#allocation3 + $0x68] sm:$0xff]
      %v1042 = vld [vmem:[#allocation3 + $0x70] sm:$0xff]
      %v1043 = vld [vmem:[#allocation3 + $0x78] sm:$0xff]
      %v1044 = vld [vmem:[#allocation3 + $0x80] sm:$0xff]
      %v1045 = vld [vmem:[#allocation3 + $0x88] sm:$0xff]
      %v1046 = vld [vmem:[#allocation3 + $0x90] sm:$0xff]
      %v1047 = vld [vmem:[#allocation3 + $0x98] sm:$0xff]
      %v1048 = vld [vmem:[#allocation3 + $0xa0] sm:$0xff]
      %v1049 = vld [vmem:[#allocation3 + $0xa8] sm:$0xff]
      %v1050 = vld [vmem:[#allocation3 + $0xb0] sm:$0xff]
      %v1051 = vld [vmem:[#allocation3 + $0xb8] sm:$0xff]
      %v1052 = vld [vmem:[#allocation3 + $0xc0] sm:$0xff]
      %v1053 = vld [vmem:[#allocation3 + $0xc8] sm:$0xff]
      %v1054 = vld [vmem:[#allocation3 + $0xd0] sm:$0xff]
      %v1055 = vld [vmem:[#allocation3 + $0xd8] sm:$0xff]
      %v1056 = vld [vmem:[#allocation3 + $0xe0] sm:$0xff]
      %v1057 = vld [vmem:[#allocation3 + $0xe8] sm:$0xff]
      %v1058 = vld [vmem:[#allocation3 + $0xf0] sm:$0xff]
      %v1059 = vld [vmem:[#allocation3 + $0xf8] sm:$0xff]
      %v1060 = vld [vmem:[#allocation3 + $0x100] sm:$0xff]
      %v1061 = vld [vmem:[#allocation3 + $0x108] sm:$0xff]
      %v1062 = vld [vmem:[#allocation3 + $0x110] sm:$0xff]
      %v1063 = vld [vmem:[#allocation3 + $0x118] sm:$0xff]
      %v1064 = vld [vmem:[#allocation3 + $0x120] sm:$0xff]
      %v1065 = vld [vmem:[#allocation3 + $0x128] sm:$0xff]
      %v1066 = vld [vmem:[#allocation3 + $0x130] sm:$0xff]
      %v1067 = vld [vmem:[#allocation3 + $0x138] sm:$0xff]
      %v1068 = vld [vmem:[#allocation3 + $0x140] sm:$0xff]
      %v1069 = vld [vmem:[#allocation3 + $0x148] sm:$0xff]
      %v1070 = vld [vmem:[#allocation3 + $0x150] sm:$0xff]
      %v1071 = vld [vmem:[#allocation3 + $0x158] sm:$0xff]
      %v1072 = vld [vmem:[#allocation3 + $0x160] sm:$0xff]
      %v1073 = vld [vmem:[#allocation3 + $0x168] sm:$0xff]
      %v1074 = vld [vmem:[#allocation3 + $0x170] sm:$0xff]
      %v1075 = vld [vmem:[#allocation3 + $0x178] sm:$0xff]
      %v1076 = vld [vmem:[#allocation3 + $0x180] sm:$0xff]
      %v1077 = vld [vmem:[#allocation3 + $0x188] sm:$0xff]
      %v1078 = vld [vmem:[#allocation3 + $0x190] sm:$0xff]
      %v1079 = vld [vmem:[#allocation3 + $0x198] sm:$0xff]
      %v1080 = vld [vmem:[#allocation3 + $0x1a0] sm:$0xff]
      %v1081 = vld [vmem:[#allocation3 + $0x1a8] sm:$0xff]
      %v1082 = vld [vmem:[#allocation3 + $0x1b0] sm:$0xff]
      %v1083 = vld [vmem:[#allocation3 + $0x1b8] sm:$0xff]
      %v1084 = vld [vmem:[#allocation3 + $0x1c0] sm:$0xff]
      %v1085 = vld [vmem:[#allocation3 + $0x1c8] sm:$0xff]
      %v1086 = vld [vmem:[#allocation3 + $0x1d0] sm:$0xff]
      %v1087 = vld [vmem:[#allocation3 + $0x1d8] sm:$0xff]
      %v1088 = vld [vmem:[#allocation3 + $0x1e0] sm:$0xff]
      %v1089 = vld [vmem:[#allocation3 + $0x1e8] sm:$0xff]
      %v1090 = vld [vmem:[#allocation3 + $0x1f0] sm:$0xff]
      %v1091 = vld [vmem:[#allocation3 + $0x1f8] sm:$0xff]
      %v1092 = vld [vmem:[#allocation3 + $0x200] sm:$0xff]
      %v1093 = vld [vmem:[#allocation3 + $0x208] sm:$0xff]
      %v1094 = vld [vmem:[#allocation3 + $0x210] sm:$0xff]
      %v1095 = vld [vmem:[#allocation3 + $0x218] sm:$0xff]
      %v1096 = vld [vmem:[#allocation3 + $0x220] sm:$0xff]
      %v1097 = vld [vmem:[#allocation3 + $0x228] sm:$0xff]
      %v1098 = vld [vmem:[#allocation3 + $0x230] sm:$0xff]
      %v1099 = vld [vmem:[#allocation3 + $0x238] sm:$0xff]
      %v1100 = vld [vmem:[#allocation3 + $0x240] sm:$0xff]
      %v1101 = vld [vmem:[#allocation3 + $0x248] sm:$0xff]
      %v1102 = vld [vmem:[#allocation3 + $0x250] sm:$0xff]
      %v1103 = vld [vmem:[#allocation3 + $0x258] sm:$0xff]
      %v1104 = vld [vmem:[#allocation3 + $0x260] sm:$0xff]
      %v1105 = vld [vmem:[#allocation3 + $0x268] sm:$0xff]
      %v1106 = vld [vmem:[#allocation3 + $0x270] sm:$0xff]
      %v1107 = vld [vmem:[#allocation3 + $0x278] sm:$0xff]
      %v1108 = vld [vmem:[#allocation3 + $0x280] sm:$0xff]
      %v1109 = vld [vmem:[#allocation3 + $0x288] sm:$0xff]
      %v1110 = vld [vmem:[#allocation3 + $0x290] sm:$0xff]
      %v1111 = vld [vmem:[#allocation3 + $0x298] sm:$0xff]
      %v1112 = vld [vmem:[#allocation3 + $0x2a0] sm:$0xff]
      %v1113 = vld [vmem:[#allocation3 + $0x2a8] sm:$0xff]
      %v1114 = vld [vmem:[#allocation3 + $0x2b0] sm:$0xff]
      %v1115 = vld [vmem:[#allocation3 + $0x2b8] sm:$0xff]
      %v1116 = vld [vmem:[#allocation3 + $0x2c0] sm:$0xff]
      %v1117 = vld [vmem:[#allocation3 + $0x2c8] sm:$0xff]
      %v1118 = vld [vmem:[#allocation3 + $0x2d0] sm:$0xff]
      %v1119 = vld [vmem:[#allocation3 + $0x2d8] sm:$0xff]
      %v1120 = vld [vmem:[#allocation3 + $0x2e0] sm:$0xff]
      %v1121 = vld [vmem:[#allocation3 + $0x2e8] sm:$0xff]
      %v1122 = vld [vmem:[#allocation3 + $0x2f0] sm:$0xff]
      %v1123 = vld [vmem:[#allocation3 + $0x2f8] sm:$0xff]
      %v1124 = vld [vmem:[#allocation3 + $0x300] sm:$0xff]
      %v1125 = vld [vmem:[#allocation3 + $0x308] sm:$0xff]
      %v1126 = vld [vmem:[#allocation3 + $0x310] sm:$0xff]
      %v1127 = vld [vmem:[#allocation3 + $0x318] sm:$0xff]
      %v1128 = vld [vmem:[#allocation3 + $0x320] sm:$0xff]
      %v1129 = vld [vmem:[#allocation3 + $0x328] sm:$0xff]
      %v1130 = vld [vmem:[#allocation3 + $0x330] sm:$0xff]
      %v1131 = vld [vmem:[#allocation3 + $0x338] sm:$0xff]
      %v1132 = vld [vmem:[#allocation3 + $0x340] sm:$0xff]
      %v1133 = vld [vmem:[#allocation3 + $0x348] sm:$0xff]
      %v1134 = vld [vmem:[#allocation3 + $0x350] sm:$0xff]
      %v1135 = vld [vmem:[#allocation3 + $0x358] sm:$0xff]
      %v1136 = vld [vmem:[#allocation3 + $0x360] sm:$0xff]
      %v1137 = vld [vmem:[#allocation3 + $0x368] sm:$0xff]
      %v1138 = vld [vmem:[#allocation3 + $0x370] sm:$0xff]
      %v1139 = vld [vmem:[#allocation3 + $0x378] sm:$0xff]
      %v1140 = vld [vmem:[#allocation3 + $0x380] sm:$0xff]
      %v1141 = vld [vmem:[#allocation3 + $0x388] sm:$0xff]
      %v1142 = vld [vmem:[#allocation3 + $0x390] sm:$0xff]
      %v1143 = vld [vmem:[#allocation3 + $0x398] sm:$0xff]
      %v1144 = vld [vmem:[#allocation3 + $0x3a0] sm:$0xff]
      %v1145 = vld [vmem:[#allocation3 + $0x3a8] sm:$0xff]
      %v1146 = vld [vmem:[#allocation3 + $0x3b0] sm:$0xff]
      %v1147 = vld [vmem:[#allocation3 + $0x3b8] sm:$0xff]
      %v1148 = vld [vmem:[#allocation3 + $0x3c0] sm:$0xff]
      %v1149 = vld [vmem:[#allocation3 + $0x3c8] sm:$0xff]
      %v1150 = vld [vmem:[#allocation3 + $0x3d0] sm:$0xff]
      %v1151 = vld [vmem:[#allocation3 + $0x3d8] sm:$0xff]
      %v1152 = vld [vmem:[#allocation3 + $0x3e0] sm:$0xff]
      %v1153 = vld [vmem:[#allocation3 + $0x3e8] sm:$0xff]
      %v1154 = vld [vmem:[#allocation3 + $0x3f0] sm:$0xff]
      %v1155 = vld [vmem:[#allocation3 + $0x3f8] sm:$0xff]
      %v1156 = vld [vmem:[#allocation3 + $0x400] sm:$0xff]
      %v1157 = vld [vmem:[#allocation3 + $0x408] sm:$0xff]
      %v1158 = vld [vmem:[#allocation3 + $0x410] sm:$0xff]
      %v1159 = vld [vmem:[#allocation3 + $0x418] sm:$0xff]
      %v1160 = vld [vmem:[#allocation3 + $0x420] sm:$0xff]
      %v1161 = vld [vmem:[#allocation3 + $0x428] sm:$0xff]
      %v1162 = vld [vmem:[#allocation3 + $0x430] sm:$0xff]
      %v1163 = vld [vmem:[#allocation3 + $0x438] sm:$0xff]
      %v1164 = vld [vmem:[#allocation3 + $0x440] sm:$0xff]
      %v1165 = vld [vmem:[#allocation3 + $0x448] sm:$0xff]
      %v1166 = vld [vmem:[#allocation3 + $0x450] sm:$0xff]
      %v1167 = vld [vmem:[#allocation3 + $0x458] sm:$0xff]
      %v1168 = vld [vmem:[#allocation3 + $0x460] sm:$0xff]
      %v1169 = vld [vmem:[#allocation3 + $0x468] sm:$0xff]
      %v1170 = vld [vmem:[#allocation3 + $0x470] sm:$0xff]
      %v1171 = vld [vmem:[#allocation3 + $0x478] sm:$0xff]
      %v1172 = vld [vmem:[#allocation3 + $0x480] sm:$0xff]
      %v1173 = vld [vmem:[#allocation3 + $0x488] sm:$0xff]
      %v1174 = vld [vmem:[#allocation3 + $0x490] sm:$0xff]
      %v1175 = vld [vmem:[#allocation3 + $0x498] sm:$0xff]
      %v1176 = vld [vmem:[#allocation3 + $0x4a0] sm:$0xff]
      %v1177 = vld [vmem:[#allocation3 + $0x4a8] sm:$0xff]
      %v1178 = vld [vmem:[#allocation3 + $0x4b0] sm:$0xff]
      %v1179 = vld [vmem:[#allocation3 + $0x4b8] sm:$0xff]
      %v1180 = vld [vmem:[#allocation3 + $0x4c0] sm:$0xff]
      %v1181 = vld [vmem:[#allocation3 + $0x4c8] sm:$0xff]
      %v1182 = vld [vmem:[#allocation3 + $0x4d0] sm:$0xff]
      %v1183 = vld [vmem:[#allocation3 + $0x4d8] sm:$0xff]
      %v1184 = vld [vmem:[#allocation3 + $0x4e0] sm:$0xff]
      %v1185 = vld [vmem:[#allocation3 + $0x4e8] sm:$0xff]
      %v1186 = vld [vmem:[#allocation3 + $0x4f0] sm:$0xff]
      %v1187 = vld [vmem:[#allocation3 + $0x4f8] sm:$0xff]
      %v1188 = vld [vmem:[#allocation3 + $0x500] sm:$0xff]
      %v1189 = vld [vmem:[#allocation3 + $0x508] sm:$0xff]
      %v1190 = vld [vmem:[#allocation3 + $0x510] sm:$0xff]
      %v1191 = vld [vmem:[#allocation3 + $0x518] sm:$0xff]
      %v1192 = vld [vmem:[#allocation3 + $0x520] sm:$0xff]
      %v1193 = vld [vmem:[#allocation3 + $0x528] sm:$0xff]
      %v1194 = vld [vmem:[#allocation3 + $0x530] sm:$0xff]
      %v1195 = vld [vmem:[#allocation3 + $0x538] sm:$0xff]
      %v1196 = vld [vmem:[#allocation3 + $0x540] sm:$0xff]
      %v1197 = vld [vmem:[#allocation3 + $0x548] sm:$0xff]
      %v1198 = vld [vmem:[#allocation3 + $0x550] sm:$0xff]
      %v1199 = vld [vmem:[#allocation3 + $0x558] sm:$0xff]
      %v1200 = vld [vmem:[#allocation3 + $0x560] sm:$0xff]
      %v1201 = vld [vmem:[#allocation3 + $0x568] sm:$0xff]
      %v1202 = vld [vmem:[#allocation3 + $0x570] sm:$0xff]
      %v1203 = vld [vmem:[#allocation3 + $0x578] sm:$0xff]
      %v1204 = vld [vmem:[#allocation3 + $0x580] sm:$0xff]
      %v1205 = vld [vmem:[#allocation3 + $0x588] sm:$0xff]
      %v1206 = vld [vmem:[#allocation3 + $0x590] sm:$0xff]
      %v1207 = vld [vmem:[#allocation3 + $0x598] sm:$0xff]
      %v1208 = vld [vmem:[#allocation3 + $0x5a0] sm:$0xff]
      %v1209 = vld [vmem:[#allocation3 + $0x5a8] sm:$0xff]
      %v1210 = vld [vmem:[#allocation3 + $0x5b0] sm:$0xff]
      %v1211 = vld [vmem:[#allocation3 + $0x5b8] sm:$0xff]
      %v1212 = vld [vmem:[#allocation3 + $0x5c0] sm:$0xff]
      %v1213 = vld [vmem:[#allocation3 + $0x5c8] sm:$0xff]
      %v1214 = vld [vmem:[#allocation3 + $0x5d0] sm:$0xff]
      %v1215 = vld [vmem:[#allocation3 + $0x5d8] sm:$0xff]
      %v1216 = vld [vmem:[#allocation3 + $0x5e0] sm:$0xff]
      %v1217 = vld [vmem:[#allocation3 + $0x5e8] sm:$0xff]
      %v1218 = vld [vmem:[#allocation3 + $0x5f0] sm:$0xff]
      %v1219 = vld [vmem:[#allocation3 + $0x5f8] sm:$0xff]
      %v1220 = vld [vmem:[#allocation3 + $0x600] sm:$0xff]
      %v1221 = vld [vmem:[#allocation3 + $0x608] sm:$0xff]
      %v1222 = vld [vmem:[#allocation3 + $0x610] sm:$0xff]
      %v1223 = vld [vmem:[#allocation3 + $0x618] sm:$0xff]
      %v1224 = vld [vmem:[#allocation3 + $0x620] sm:$0xff]
      %v1225 = vld [vmem:[#allocation3 + $0x628] sm:$0xff]
      %v1226 = vld [vmem:[#allocation3 + $0x630] sm:$0xff]
      %v1227 = vld [vmem:[#allocation3 + $0x638] sm:$0xff]
      %v1228 = vld [vmem:[#allocation3 + $0x640] sm:$0xff]
      %v1229 = vld [vmem:[#allocation3 + $0x648] sm:$0xff]
      %v1230 = vld [vmem:[#allocation3 + $0x650] sm:$0xff]
      %v1231 = vld [vmem:[#allocation3 + $0x658] sm:$0xff]
      %v1232 = vld [vmem:[#allocation3 + $0x660] sm:$0xff]
      %v1233 = vld [vmem:[#allocation3 + $0x668] sm:$0xff]
      %v1234 = vld [vmem:[#allocation3 + $0x670] sm:$0xff]
      %v1235 = vld [vmem:[#allocation3 + $0x678] sm:$0xff]
      %v1236 = vld [vmem:[#allocation3 + $0x680] sm:$0xff]
      %v1237 = vld [vmem:[#allocation3 + $0x688] sm:$0xff]
      %v1238 = vld [vmem:[#allocation3 + $0x690] sm:$0xff]
      %v1239 = vld [vmem:[#allocation3 + $0x698] sm:$0xff]
      %v1240 = vld [vmem:[#allocation3 + $0x6a0] sm:$0xff]
      %v1241 = vld [vmem:[#allocation3 + $0x6a8] sm:$0xff]
      %v1242 = vld [vmem:[#allocation3 + $0x6b0] sm:$0xff]
      %v1243 = vld [vmem:[#allocation3 + $0x6b8] sm:$0xff]
      %v1244 = vld [vmem:[#allocation3 + $0x6c0] sm:$0xff]
      %v1245 = vld [vmem:[#allocation3 + $0x6c8] sm:$0xff]
      %v1246 = vld [vmem:[#allocation3 + $0x6d0] sm:$0xff]
      %v1247 = vld [vmem:[#allocation3 + $0x6d8] sm:$0xff]
      %v1248 = vld [vmem:[#allocation3 + $0x6e0] sm:$0xff]
      %v1249 = vld [vmem:[#allocation3 + $0x6e8] sm:$0xff]
      %v1250 = vld [vmem:[#allocation3 + $0x6f0] sm:$0xff]
      %v1251 = vld [vmem:[#allocation3 + $0x6f8] sm:$0xff]
      %v1252 = vld [vmem:[#allocation3 + $0x700] sm:$0xff]
      %v1253 = vld [vmem:[#allocation3 + $0x708] sm:$0xff]
      %v1254 = vld [vmem:[#allocation3 + $0x710] sm:$0xff]
      %v1255 = vld [vmem:[#allocation3 + $0x718] sm:$0xff]
      %v1256 = vld [vmem:[#allocation3 + $0x720] sm:$0xff]
      %v1257 = vld [vmem:[#allocation3 + $0x728] sm:$0xff]
      %v1258 = vld [vmem:[#allocation3 + $0x730] sm:$0xff]
      %v1259 = vld [vmem:[#allocation3 + $0x738] sm:$0xff]
      %v1260 = vld [vmem:[#allocation3 + $0x740] sm:$0xff]
      %v1261 = vld [vmem:[#allocation3 + $0x748] sm:$0xff]
      %v1262 = vld [vmem:[#allocation3 + $0x750] sm:$0xff]
      %v1263 = vld [vmem:[#allocation3 + $0x758] sm:$0xff]
      %v1264 = vld [vmem:[#allocation3 + $0x760] sm:$0xff]
      %v1265 = vld [vmem:[#allocation3 + $0x768] sm:$0xff]
      %v1266 = vld [vmem:[#allocation3 + $0x770] sm:$0xff]
      %v1267 = vld [vmem:[#allocation3 + $0x778] sm:$0xff]
      %v1268 = vld [vmem:[#allocation3 + $0x780] sm:$0xff]
      %v1269 = vld [vmem:[#allocation3 + $0x788] sm:$0xff]
      %v1270 = vld [vmem:[#allocation3 + $0x790] sm:$0xff]
      %v1271 = vld [vmem:[#allocation3 + $0x798] sm:$0xff]
      %v1272 = vld [vmem:[#allocation3 + $0x7a0] sm:$0xff]
      %v1273 = vld [vmem:[#allocation3 + $0x7a8] sm:$0xff]
      %v1274 = vld [vmem:[#allocation3 + $0x7b0] sm:$0xff]
      %v1275 = vld [vmem:[#allocation3 + $0x7b8] sm:$0xff]
      %v1276 = vld [vmem:[#allocation3 + $0x7c0] sm:$0xff]
      %v1277 = vld [vmem:[#allocation3 + $0x7c8] sm:$0xff]
      %v1278 = vld [vmem:[#allocation3 + $0x7d0] sm:$0xff]
      %v1279 = vld [vmem:[#allocation3 + $0x7d8] sm:$0xff]
      %v1280 = vld [vmem:[#allocation3 + $0x7e0] sm:$0xff]
      %v1281 = vld [vmem:[#allocation3 + $0x7e8] sm:$0xff]
      %v1282 = vld [vmem:[#allocation3 + $0x7f0] sm:$0xff]
      %v1283 = vld [vmem:[#allocation3 + $0x7f8] sm:$0xff]
      %v1284 = vld [vmem:[#allocation3 + $0x800] sm:$0xff]
      %v1285 = vld [vmem:[#allocation3 + $0x808] sm:$0xff]
      %v1286 = vld [vmem:[#allocation3 + $0x810] sm:$0xff]
      %v1287 = vld [vmem:[#allocation3 + $0x818] sm:$0xff]
      %v1288 = vld [vmem:[#allocation3 + $0x820] sm:$0xff]
      %v1289 = vld [vmem:[#allocation3 + $0x828] sm:$0xff]
      %v1290 = vld [vmem:[#allocation3 + $0x830] sm:$0xff]
      %v1291 = vld [vmem:[#allocation3 + $0x838] sm:$0xff]
      %v1292 = vld [vmem:[#allocation3 + $0x840] sm:$0xff]
      %v1293 = vld [vmem:[#allocation3 + $0x848] sm:$0xff]
      %v1294 = vld [vmem:[#allocation3 + $0x850] sm:$0xff]
      %v1295 = vld [vmem:[#allocation3 + $0x858] sm:$0xff]
      %v1296 = vld [vmem:[#allocation3 + $0x860] sm:$0xff]
      %v1297 = vld [vmem:[#allocation3 + $0x868] sm:$0xff]
      %v1298 = vld [vmem:[#allocation3 + $0x870] sm:$0xff]
      %v1299 = vld [vmem:[#allocation3 + $0x878] sm:$0xff]
      %v1300 = vld [vmem:[#allocation3 + $0x880] sm:$0xff]
      %v1301 = vld [vmem:[#allocation3 + $0x888] sm:$0xff]
      %v1302 = vld [vmem:[#allocation3 + $0x890] sm:$0xff]
      %v1303 = vld [vmem:[#allocation3 + $0x898] sm:$0xff]
      %v1304 = vld [vmem:[#allocation3 + $0x8a0] sm:$0xff]
      %v1305 = vld [vmem:[#allocation3 + $0x8a8] sm:$0xff]
      %v1306 = vld [vmem:[#allocation3 + $0x8b0] sm:$0xff]
      %v1307 = vld [vmem:[#allocation3 + $0x8b8] sm:$0xff]
      %v1308 = vld [vmem:[#allocation3 + $0x8c0] sm:$0xff]
      %v1309 = vld [vmem:[#allocation3 + $0x8c8] sm:$0xff]
      %v1310 = vld [vmem:[#allocation3 + $0x8d0] sm:$0xff]
      %v1311 = vld [vmem:[#allocation3 + $0x8d8] sm:$0xff]
      %v1312 = vld [vmem:[#allocation3 + $0x8e0] sm:$0xff]
      %v1313 = vld [vmem:[#allocation3 + $0x8e8] sm:$0xff]
      %v1314 = vld [vmem:[#allocation3 + $0x8f0] sm:$0xff]
      %v1315 = vld [vmem:[#allocation3 + $0x8f8] sm:$0xff]
      %v1316 = vld [vmem:[%s3] sm:$0xff]
      %v1317 = vld [vmem:[%s3 + $0x8] sm:$0xff]
      %v1318 = vld [vmem:[%s3 + $0x10] sm:$0xff]
      %v1319 = vld [vmem:[%s3 + $0x18] sm:$0xff]
      %v1320 = vld [vmem:[%s3 + $0x20] sm:$0xff]
      %v1321 = vld [vmem:[%s3 + $0x28] sm:$0xff]
      %v1322 = vld [vmem:[%s3 + $0x30] sm:$0xff]
      %v1323 = vld [vmem:[%s3 + $0x38] sm:$0xff]
      %v1324 = vld [vmem:[%s3 + $0x40] sm:$0xff]
      %v1325 = vld [vmem:[%s3 + $0x48] sm:$0xff]
      %v1326 = vld [vmem:[%s3 + $0x50] sm:$0xff]
      %v1327 = vld [vmem:[%s3 + $0x58] sm:$0xff]
      %v1328 = vld [vmem:[%s3 + $0x60] sm:$0xff]
      %v1329 = vld [vmem:[%s3 + $0x68] sm:$0xff]
      %v1330 = vld [vmem:[%s3 + $0x70] sm:$0xff]
      %v1331 = vld [vmem:[%s3 + $0x78] sm:$0xff]
      %v1332 = vld [vmem:[%s3 + $0x80] sm:$0xff]
      %v1333 = vld [vmem:[%s3 + $0x88] sm:$0xff]
      %v1334 = vld [vmem:[%s3 + $0x90] sm:$0xff]
      %v1335 = vld [vmem:[%s3 + $0x98] sm:$0xff]
      %v1336 = vld [vmem:[%s3 + $0xa0] sm:$0xff]
      %v1337 = vld [vmem:[%s3 + $0xa8] sm:$0xff]
      %v1338 = vld [vmem:[%s3 + $0xb0] sm:$0xff]
      %v1339 = vld [vmem:[%s3 + $0xb8] sm:$0xff]
      %v1340 = vld [vmem:[%s3 + $0xc0] sm:$0xff]
      %v1341 = vld [vmem:[%s3 + $0xc8] sm:$0xff]
      %v1342 = vld [vmem:[%s3 + $0xd0] sm:$0xff]
      %v1343 = vld [vmem:[%s3 + $0xd8] sm:$0xff]
      %v1344 = vld [vmem:[%s3 + $0xe0] sm:$0xff]
      %v1345 = vld [vmem:[%s3 + $0xe8] sm:$0xff]
      %v1346 = vld [vmem:[%s3 + $0xf0] sm:$0xff]
      %v1347 = vld [vmem:[%s3 + $0xf8] sm:$0xff]
      %v1348 = vld [vmem:[%s3 + $0x100] sm:$0xff]
      %v1349 = vld [vmem:[%s3 + $0x108] sm:$0xff]
      %v1350 = vld [vmem:[%s3 + $0x110] sm:$0xff]
      %v1351 = vld [vmem:[%s3 + $0x118] sm:$0xff]
      %v1352 = vld [vmem:[%s3 + $0x120] sm:$0xff]
      %v1353 = vld [vmem:[%s3 + $0x128] sm:$0xff]
      %v1354 = vld [vmem:[%s3 + $0x130] sm:$0xff]
      %v1355 = vld [vmem:[%s3 + $0x138] sm:$0xff]
      %v1356 = vld [vmem:[%s3 + $0x140] sm:$0xff]
      %v1357 = vld [vmem:[%s3 + $0x148] sm:$0xff]
      %v1358 = vld [vmem:[%s3 + $0x150] sm:$0xff]
      %v1359 = vld [vmem:[%s3 + $0x158] sm:$0xff]
      %v1360 = vld [vmem:[%s3 + $0x160] sm:$0xff]
      %v1361 = vld [vmem:[%s3 + $0x168] sm:$0xff]
      %v1362 = vld [vmem:[%s3 + $0x170] sm:$0xff]
      %v1363 = vld [vmem:[%s3 + $0x178] sm:$0xff]
      %v1364 = vld [vmem:[%s3 + $0x180] sm:$0xff]
      %v1365 = vld [vmem:[%s3 + $0x188] sm:$0xff]
      %v1366 = vld [vmem:[%s3 + $0x190] sm:$0xff]
      %v1367 = vld [vmem:[%s3 + $0x198] sm:$0xff]
      %v1368 = vld [vmem:[%s3 + $0x1a0] sm:$0xff]
      %v1369 = vld [vmem:[%s3 + $0x1a8] sm:$0xff]
      %v1370 = vld [vmem:[%s3 + $0x1b0] sm:$0xff]
      %v1371 = vld [vmem:[%s3 + $0x1b8] sm:$0xff]
      %v1372 = vld [vmem:[%s3 + $0x1c0] sm:$0xff]
      %v1373 = vld [vmem:[%s3 + $0x1c8] sm:$0xff]
      %v1374 = vld [vmem:[%s3 + $0x1d0] sm:$0xff]
      %v1375 = vld [vmem:[%s3 + $0x1d8] sm:$0xff]
      %v1376 = vld [vmem:[%s3 + $0x1e0] sm:$0xff]
      %v1377 = vld [vmem:[%s3 + $0x1e8] sm:$0xff]
      %v1378 = vld [vmem:[%s3 + $0x1f0] sm:$0xff]
      %v1379 = vld [vmem:[%s3 + $0x1f8] sm:$0xff]
      %v1380 = vld [vmem:[%s3 + $0x200] sm:$0xff]
      %v1381 = vld [vmem:[%s3 + $0x208] sm:$0xff]
      %v1382 = vld [vmem:[%s3 + $0x210] sm:$0xff]
      %v1383 = vld [vmem:[%s3 + $0x218] sm:$0xff]
      %v1384 = vld [vmem:[%s3 + $0x220] sm:$0xff]
      %v1385 = vld [vmem:[%s3 + $0x228] sm:$0xff]
      %v1386 = vld [vmem:[%s3 + $0x230] sm:$0xff]
      %v1387 = vld [vmem:[%s3 + $0x238] sm:$0xff]
      %v1388 = vld [vmem:[%s3 + $0x240] sm:$0xff]
      %v1389 = vld [vmem:[%s3 + $0x248] sm:$0xff]
      %v1390 = vld [vmem:[%s3 + $0x250] sm:$0xff]
      %v1391 = vld [vmem:[%s3 + $0x258] sm:$0xff]
      %v1392 = vld [vmem:[%s3 + $0x260] sm:$0xff]
      %v1393 = vld [vmem:[%s3 + $0x268] sm:$0xff]
      %v1394 = vld [vmem:[%s3 + $0x270] sm:$0xff]
      %v1395 = vld [vmem:[%s3 + $0x278] sm:$0xff]
      %v1396 = vld [vmem:[%s3 + $0x280] sm:$0xff]
      %v1397 = vld [vmem:[%s3 + $0x288] sm:$0xff]
      %v1398 = vld [vmem:[%s3 + $0x290] sm:$0xff]
      %v1399 = vld [vmem:[%s3 + $0x298] sm:$0xff]
      %v1400 = vld [vmem:[%s3 + $0x2a0] sm:$0xff]
      %v1401 = vld [vmem:[%s3 + $0x2a8] sm:$0xff]
      %v1402 = vld [vmem:[%s3 + $0x2b0] sm:$0xff]
      %v1403 = vld [vmem:[%s3 + $0x2b8] sm:$0xff]
      %v1404 = vld [vmem:[%s3 + $0x2c0] sm:$0xff]
      %v1405 = vld [vmem:[%s3 + $0x2c8] sm:$0xff]
      %v1406 = vld [vmem:[%s3 + $0x2d0] sm:$0xff]
      %v1407 = vld [vmem:[%s3 + $0x2d8] sm:$0xff]
      %v1408 = vld [vmem:[%s3 + $0x2e0] sm:$0xff]
      %v1409 = vld [vmem:[%s3 + $0x2e8] sm:$0xff]
      %v1410 = vld [vmem:[%s3 + $0x2f0] sm:$0xff]
      %v1411 = vld [vmem:[%s3 + $0x2f8] sm:$0xff]
      %v1412 = vld [vmem:[%s3 + $0x300] sm:$0xff]
      %v1413 = vld [vmem:[%s3 + $0x308] sm:$0xff]
      %v1414 = vld [vmem:[%s3 + $0x310] sm:$0xff]
      %v1415 = vld [vmem:[%s3 + $0x318] sm:$0xff]
      %v1416 = vld [vmem:[%s3 + $0x320] sm:$0xff]
      %v1417 = vld [vmem:[%s3 + $0x328] sm:$0xff]
      %v1418 = vld [vmem:[%s3 + $0x330] sm:$0xff]
      %v1419 = vld [vmem:[%s3 + $0x338] sm:$0xff]
      %v1420 = vld [vmem:[%s3 + $0x340] sm:$0xff]
      %v1421 = vld [vmem:[%s3 + $0x348] sm:$0xff]
      %v1422 = vld [vmem:[%s3 + $0x350] sm:$0xff]
      %v1423 = vld [vmem:[%s3 + $0x358] sm:$0xff]
      %v1424 = vld [vmem:[%s3 + $0x360] sm:$0xff]
      %v1425 = vld [vmem:[%s3 + $0x368] sm:$0xff]
      %v1426 = vld [vmem:[%s3 + $0x370] sm:$0xff]
      %v1427 = vld [vmem:[%s3 + $0x378] sm:$0xff]
      %v1428 = vld [vmem:[%s3 + $0x380] sm:$0xff]
      %v1429 = vld [vmem:[%s3 + $0x388] sm:$0xff]
      %v1430 = vld [vmem:[%s3 + $0x390] sm:$0xff]
      %v1431 = vld [vmem:[%s3 + $0x398] sm:$0xff]
      %v1432 = vld [vmem:[%s3 + $0x3a0] sm:$0xff]
      %v1433 = vld [vmem:[%s3 + $0x3a8] sm:$0xff]
      %v1434 = vld [vmem:[%s3 + $0x3b0] sm:$0xff]
      %v1435 = vld [vmem:[%s3 + $0x3b8] sm:$0xff]
      %v1436 = vld [vmem:[%s3 + $0x3c0] sm:$0xff]
      %v1437 = vld [vmem:[%s3 + $0x3c8] sm:$0xff]
      %v1438 = vld [vmem:[%s3 + $0x3d0] sm:$0xff]
      %v1439 = vld [vmem:[%s3 + $0x3d8] sm:$0xff]
      %v1440 = vld [vmem:[%s3 + $0x3e0] sm:$0xff]
      %v1441 = vld [vmem:[%s3 + $0x3e8] sm:$0xff]
      %v1442 = vld [vmem:[%s3 + $0x3f0] sm:$0xff]
      %v1443 = vld [vmem:[%s3 + $0x3f8] sm:$0xff]
      %v1444 = vld [vmem:[%s3 + $0x400] sm:$0xff]
      %v1445 = vld [vmem:[%s3 + $0x408] sm:$0xff]
      %v1446 = vld [vmem:[%s3 + $0x410] sm:$0xff]
      %v1447 = vld [vmem:[%s3 + $0x418] sm:$0xff]
      %v1448 = vld [vmem:[%s3 + $0x420] sm:$0xff]
      %v1449 = vld [vmem:[%s3 + $0x428] sm:$0xff]
      %v1450 = vld [vmem:[%s3 + $0x430] sm:$0xff]
      %v1451 = vld [vmem:[%s3 + $0x438] sm:$0xff]
      %v1452 = vld [vmem:[%s3 + $0x440] sm:$0xff]
      %v1453 = vld [vmem:[%s3 + $0x448] sm:$0xff]
      %v1454 = vld [vmem:[%s3 + $0x450] sm:$0xff]
      %v1455 = vld [vmem:[%s3 + $0x458] sm:$0xff]
      %v1456 = vld [vmem:[%s3 + $0x460] sm:$0xff]
      %v1457 = vld [vmem:[%s3 + $0x468] sm:$0xff]
      %v1458 = vld [vmem:[%s3 + $0x470] sm:$0xff]
      %v1459 = vld [vmem:[%s3 + $0x478] sm:$0xff]
      %1460 = vmatpush.msra.mxu0 %v1331
      %1461 = vmatpush.msra.mxu0 %v1330
      %1462 = vmatpush.msra.mxu0 %v1329
      %1463 = vmatpush.msra.mxu0 %v1328
      %1464 = vmatpush.msra.mxu0 %v1327
      %1465 = vmatpush.msra.mxu0 %v1326
      %1466 = vmatpush.msra.mxu0 %v1325
      %1467 = vmatpush.msra.mxu0 %v1324
      %1468 = vmatpush.msra.mxu0 %v1323
      %1469 = vmatpush.msra.mxu0 %v1322
      %1470 = vmatpush.msra.mxu0 %v1321
      %1471 = vmatpush.msra.mxu0 %v1320
      %1472 = vmatpush.msra.mxu0 %v1319
      %1473 = vmatpush.msra.mxu0 %v1318
      %1474 = vmatpush.msra.mxu0 %v1317
      %1475 = vmatpush.msra.mxu0 %v1316
      %1476 = vmatmul.f32.gmra.mxu0 %v1028
      %v1477 = vpop.f32.mrf.mxu0
      %v1478 = vadd.f32 0.0, %v1477
      %1479 = vmatmul.f32.gmra.mxu0 %v1037
      %v1480 = vpop.f32.mrf.mxu0
      %v1481 = vadd.f32 0.0, %v1480
      %1482 = vmatmul.f32.gmra.mxu0 %v1046
      %v1483 = vpop.f32.mrf.mxu0
      %v1484 = vadd.f32 0.0, %v1483
      %1485 = vmatmul.f32.gmra.mxu0 %v1055
      %v1486 = vpop.f32.mrf.mxu0
      %v1487 = vadd.f32 0.0, %v1486
      %1488 = vmatmul.f32.gmra.mxu0 %v1064
      %v1489 = vpop.f32.mrf.mxu0
      %v1490 = vadd.f32 0.0, %v1489
      %1491 = vmatmul.f32.gmra.mxu0 %v1073
      %v1492 = vpop.f32.mrf.mxu0
      %v1493 = vadd.f32 0.0, %v1492
      %1494 = vmatmul.f32.gmra.mxu0 %v1082
      %v1495 = vpop.f32.mrf.mxu0
      %v1496 = vadd.f32 0.0, %v1495
      %1497 = vmatmul.f32.gmra.mxu0 %v1091
      %v1498 = vpop.f32.mrf.mxu0
      %v1499 = vadd.f32 0.0, %v1498
      %1500 = vmatmul.f32.gmra.mxu0 %v1100
      %v1501 = vpop.f32.mrf.mxu0
      %v1502 = vadd.f32 0.0, %v1501
      %1503 = vmatmul.f32.gmra.mxu0 %v1109
      %v1504 = vpop.f32.mrf.mxu0
      %v1505 = vadd.f32 0.0, %v1504
      %1506 = vmatmul.f32.gmra.mxu0 %v1118
      %v1507 = vpop.f32.mrf.mxu0
      %v1508 = vadd.f32 0.0, %v1507
      %1509 = vmatmul.f32.gmra.mxu0 %v1127
      %v1510 = vpop.f32.mrf.mxu0
      %v1511 = vadd.f32 0.0, %v1510
      %1512 = vmatmul.f32.gmra.mxu0 %v1136
      %v1513 = vpop.f32.mrf.mxu0
      %v1514 = vadd.f32 0.0, %v1513
      %1515 = vmatmul.f32.gmra.mxu0 %v1145
      %v1516 = vpop.f32.mrf.mxu0
      %v1517 = vadd.f32 0.0, %v1516
      %1518 = vmatmul.f32.gmra.mxu0 %v1154
      %v1519 = vpop.f32.mrf.mxu0
      %v1520 = vadd.f32 0.0, %v1519
      %1521 = vmatmul.f32.gmra.mxu0 %v1163
      %v1522 = vpop.f32.mrf.mxu0
      %v1523 = vadd.f32 0.0, %v1522
      %1524 = vmatmul.f32.gmra.mxu0 %v1172
      %v1525 = vpop.f32.mrf.mxu0
      %v1526 = vadd.f32 0.0, %v1525
      %1527 = vmatmul.f32.gmra.mxu0 %v1181
      %v1528 = vpop.f32.mrf.mxu0
      %v1529 = vadd.f32 0.0, %v1528
      %1530 = vmatmul.f32.gmra.mxu0 %v1190
      %v1531 = vpop.f32.mrf.mxu0
      %v1532 = vadd.f32 0.0, %v1531
      %1533 = vmatmul.f32.gmra.mxu0 %v1199
      %v1534 = vpop.f32.mrf.mxu0
      %v1535 = vadd.f32 0.0, %v1534
      %1536 = vmatmul.f32.gmra.mxu0 %v1208
      %v1537 = vpop.f32.mrf.mxu0
      %v1538 = vadd.f32 0.0, %v1537
      %1539 = vmatmul.f32.gmra.mxu0 %v1217
      %v1540 = vpop.f32.mrf.mxu0
      %v1541 = vadd.f32 0.0, %v1540
      %1542 = vmatmul.f32.gmra.mxu0 %v1226
      %v1543 = vpop.f32.mrf.mxu0
      %v1544 = vadd.f32 0.0, %v1543
      %1545 = vmatmul.f32.gmra.mxu0 %v1235
      %v1546 = vpop.f32.mrf.mxu0
      %v1547 = vadd.f32 0.0, %v1546
      %1548 = vmatmul.f32.gmra.mxu0 %v1244
      %v1549 = vpop.f32.mrf.mxu0
      %v1550 = vadd.f32 0.0, %v1549
      %1551 = vmatmul.f32.gmra.mxu0 %v1253
      %v1552 = vpop.f32.mrf.mxu0
      %v1553 = vadd.f32 0.0, %v1552
      %1554 = vmatmul.f32.gmra.mxu0 %v1262
      %v1555 = vpop.f32.mrf.mxu0
      %v1556 = vadd.f32 0.0, %v1555
      %1557 = vmatmul.f32.gmra.mxu0 %v1271
      %v1558 = vpop.f32.mrf.mxu0
      %v1559 = vadd.f32 0.0, %v1558
      %1560 = vmatmul.f32.gmra.mxu0 %v1280
      %v1561 = vpop.f32.mrf.mxu0
      %v1562 = vadd.f32 0.0, %v1561
      %1563 = vmatmul.f32.gmra.mxu0 %v1289
      %v1564 = vpop.f32.mrf.mxu0
      %v1565 = vadd.f32 0.0, %v1564
      %1566 = vmatmul.f32.gmra.mxu0 %v1298
      %v1567 = vpop.f32.mrf.mxu0
      %v1568 = vadd.f32 0.0, %v1567
      %1569 = vmatmul.f32.gmra.mxu0 %v1307
      %v1570 = vpop.f32.mrf.mxu0
      %v1571 = vadd.f32 0.0, %v1570
      %1572 = vdwg.mxu0
      %1573 = vmatpush.msra.mxu0 %v1347
      %1574 = vmatpush.msra.mxu0 %v1346
      %1575 = vmatpush.msra.mxu0 %v1345
      %1576 = vmatpush.msra.mxu0 %v1344
      %1577 = vmatpush.msra.mxu0 %v1343
      %1578 = vmatpush.msra.mxu0 %v1342
      %1579 = vmatpush.msra.mxu0 %v1341
      %1580 = vmatpush.msra.mxu0 %v1340
      %1581 = vmatpush.msra.mxu0 %v1339
      %1582 = vmatpush.msra.mxu0 %v1338
      %1583 = vmatpush.msra.mxu0 %v1337
      %1584 = vmatpush.msra.mxu0 %v1336
      %1585 = vmatpush.msra.mxu0 %v1335
      %1586 = vmatpush.msra.mxu0 %v1334
      %1587 = vmatpush.msra.mxu0 %v1333
      %1588 = vmatpush.msra.mxu0 %v1332
      %1589 = vmatmul.f32.gmra.mxu0 %v1029
      %v1590 = vpop.f32.mrf.mxu0
      %v1591 = vadd.f32 %v1478, %v1590
      %1592 = vmatmul.f32.gmra.mxu0 %v1038
      %v1593 = vpop.f32.mrf.mxu0
      %v1594 = vadd.f32 %v1481, %v1593
      %1595 = vmatmul.f32.gmra.mxu0 %v1047
      %v1596 = vpop.f32.mrf.mxu0
      %v1597 = vadd.f32 %v1484, %v1596
      %1598 = vmatmul.f32.gmra.mxu0 %v1056
      %v1599 = vpop.f32.mrf.mxu0
      %v1600 = vadd.f32 %v1487, %v1599
      %1601 = vmatmul.f32.gmra.mxu0 %v1065
      %v1602 = vpop.f32.mrf.mxu0
      %v1603 = vadd.f32 %v1490, %v1602
      %1604 = vmatmul.f32.gmra.mxu0 %v1074
      %v1605 = vpop.f32.mrf.mxu0
      %v1606 = vadd.f32 %v1493, %v1605
      %1607 = vmatmul.f32.gmra.mxu0 %v1083
      %v1608 = vpop.f32.mrf.mxu0
      %v1609 = vadd.f32 %v1496, %v1608
      %1610 = vmatmul.f32.gmra.mxu0 %v1092
      %v1611 = vpop.f32.mrf.mxu0
      %v1612 = vadd.f32 %v1499, %v1611
      %1613 = vmatmul.f32.gmra.mxu0 %v1101
      %v1614 = vpop.f32.mrf.mxu0
      %v1615 = vadd.f32 %v1502, %v1614
      %1616 = vmatmul.f32.gmra.mxu0 %v1110
      %v1617 = vpop.f32.mrf.mxu0
      %v1618 = vadd.f32 %v1505, %v1617
      %1619 = vmatmul.f32.gmra.mxu0 %v1119
      %v1620 = vpop.f32.mrf.mxu0
      %v1621 = vadd.f32 %v1508, %v1620
      %1622 = vmatmul.f32.gmra.mxu0 %v1128
      %v1623 = vpop.f32.mrf.mxu0
      %v1624 = vadd.f32 %v1511, %v1623
      %1625 = vmatmul.f32.gmra.mxu0 %v1137
      %v1626 = vpop.f32.mrf.mxu0
      %v1627 = vadd.f32 %v1514, %v1626
      %1628 = vmatmul.f32.gmra.mxu0 %v1146
      %v1629 = vpop.f32.mrf.mxu0
      %v1630 = vadd.f32 %v1517, %v1629
      %1631 = vmatmul.f32.gmra.mxu0 %v1155
      %v1632 = vpop.f32.mrf.mxu0
      %v1633 = vadd.f32 %v1520, %v1632
      %1634 = vmatmul.f32.gmra.mxu0 %v1164
      %v1635 = vpop.f32.mrf.mxu0
      %v1636 = vadd.f32 %v1523, %v1635
      %1637 = vmatmul.f32.gmra.mxu0 %v1173
      %v1638 = vpop.f32.mrf.mxu0
      %v1639 = vadd.f32 %v1526, %v1638
      %1640 = vmatmul.f32.gmra.mxu0 %v1182
      %v1641 = vpop.f32.mrf.mxu0
      %v1642 = vadd.f32 %v1529, %v1641
      %1643 = vmatmul.f32.gmra.mxu0 %v1191
      %v1644 = vpop.f32.mrf.mxu0
      %v1645 = vadd.f32 %v1532, %v1644
      %1646 = vmatmul.f32.gmra.mxu0 %v1200
      %v1647 = vpop.f32.mrf.mxu0
      %v1648 = vadd.f32 %v1535, %v1647
      %1649 = vmatmul.f32.gmra.mxu0 %v1209
      %v1650 = vpop.f32.mrf.mxu0
      %v1651 = vadd.f32 %v1538, %v1650
      %1652 = vmatmul.f32.gmra.mxu0 %v1218
      %v1653 = vpop.f32.mrf.mxu0
      %v1654 = vadd.f32 %v1541, %v1653
      %1655 = vmatmul.f32.gmra.mxu0 %v1227
      %v1656 = vpop.f32.mrf.mxu0
      %v1657 = vadd.f32 %v1544, %v1656
      %1658 = vmatmul.f32.gmra.mxu0 %v1236
      %v1659 = vpop.f32.mrf.mxu0
      %v1660 = vadd.f32 %v1547, %v1659
      %1661 = vmatmul.f32.gmra.mxu0 %v1245
      %v1662 = vpop.f32.mrf.mxu0
      %v1663 = vadd.f32 %v1550, %v1662
      %1664 = vmatmul.f32.gmra.mxu0 %v1254
      %v1665 = vpop.f32.mrf.mxu0
      %v1666 = vadd.f32 %v1553, %v1665
      %1667 = vmatmul.f32.gmra.mxu0 %v1263
      %v1668 = vpop.f32.mrf.mxu0
      %v1669 = vadd.f32 %v1556, %v1668
      %1670 = vmatmul.f32.gmra.mxu0 %v1272
      %v1671 = vpop.f32.mrf.mxu0
      %v1672 = vadd.f32 %v1559, %v1671
      %1673 = vmatmul.f32.gmra.mxu0 %v1281
      %v1674 = vpop.f32.mrf.mxu0
      %v1675 = vadd.f32 %v1562, %v1674
      %1676 = vmatmul.f32.gmra.mxu0 %v1290
      %v1677 = vpop.f32.mrf.mxu0
      %v1678 = vadd.f32 %v1565, %v1677
      %1679 = vmatmul.f32.gmra.mxu0 %v1299
      %v1680 = vpop.f32.mrf.mxu0
      %v1681 = vadd.f32 %v1568, %v1680
      %1682 = vmatmul.f32.gmra.mxu0 %v1308
      %v1683 = vpop.f32.mrf.mxu0
      %v1684 = vadd.f32 %v1571, %v1683
      %1685 = vdwg.mxu0
      %1686 = vmatpush.msra.mxu0 %v1363
      %1687 = vmatpush.msra.mxu0 %v1362
      %1688 = vmatpush.msra.mxu0 %v1361
      %1689 = vmatpush.msra.mxu0 %v1360
      %1690 = vmatpush.msra.mxu0 %v1359
      %1691 = vmatpush.msra.mxu0 %v1358
      %1692 = vmatpush.msra.mxu0 %v1357
      %1693 = vmatpush.msra.mxu0 %v1356
      %1694 = vmatpush.msra.mxu0 %v1355
      %1695 = vmatpush.msra.mxu0 %v1354
      %1696 = vmatpush.msra.mxu0 %v1353
      %1697 = vmatpush.msra.mxu0 %v1352
      %1698 = vmatpush.msra.mxu0 %v1351
      %1699 = vmatpush.msra.mxu0 %v1350
      %1700 = vmatpush.msra.mxu0 %v1349
      %1701 = vmatpush.msra.mxu0 %v1348
      %1702 = vmatmul.f32.gmra.mxu0 %v1030
      %v1703 = vpop.f32.mrf.mxu0
      %v1704 = vadd.f32 %v1591, %v1703
      %1705 = vmatmul.f32.gmra.mxu0 %v1039
      %v1706 = vpop.f32.mrf.mxu0
      %v1707 = vadd.f32 %v1594, %v1706
      %1708 = vmatmul.f32.gmra.mxu0 %v1048
      %v1709 = vpop.f32.mrf.mxu0
      %v1710 = vadd.f32 %v1597, %v1709
      %1711 = vmatmul.f32.gmra.mxu0 %v1057
      %v1712 = vpop.f32.mrf.mxu0
      %v1713 = vadd.f32 %v1600, %v1712
      %1714 = vmatmul.f32.gmra.mxu0 %v1066
      %v1715 = vpop.f32.mrf.mxu0
      %v1716 = vadd.f32 %v1603, %v1715
      %1717 = vmatmul.f32.gmra.mxu0 %v1075
      %v1718 = vpop.f32.mrf.mxu0
      %v1719 = vadd.f32 %v1606, %v1718
      %1720 = vmatmul.f32.gmra.mxu0 %v1084
      %v1721 = vpop.f32.mrf.mxu0
      %v1722 = vadd.f32 %v1609, %v1721
      %1723 = vmatmul.f32.gmra.mxu0 %v1093
      %v1724 = vpop.f32.mrf.mxu0
      %v1725 = vadd.f32 %v1612, %v1724
      %1726 = vmatmul.f32.gmra.mxu0 %v1102
      %v1727 = vpop.f32.mrf.mxu0
      %v1728 = vadd.f32 %v1615, %v1727
      %1729 = vmatmul.f32.gmra.mxu0 %v1111
      %v1730 = vpop.f32.mrf.mxu0
      %v1731 = vadd.f32 %v1618, %v1730
      %1732 = vmatmul.f32.gmra.mxu0 %v1120
      %v1733 = vpop.f32.mrf.mxu0
      %v1734 = vadd.f32 %v1621, %v1733
      %1735 = vmatmul.f32.gmra.mxu0 %v1129
      %v1736 = vpop.f32.mrf.mxu0
      %v1737 = vadd.f32 %v1624, %v1736
      %1738 = vmatmul.f32.gmra.mxu0 %v1138
      %v1739 = vpop.f32.mrf.mxu0
      %v1740 = vadd.f32 %v1627, %v1739
      %1741 = vmatmul.f32.gmra.mxu0 %v1147
      %v1742 = vpop.f32.mrf.mxu0
      %v1743 = vadd.f32 %v1630, %v1742
      %1744 = vmatmul.f32.gmra.mxu0 %v1156
      %v1745 = vpop.f32.mrf.mxu0
      %v1746 = vadd.f32 %v1633, %v1745
      %1747 = vmatmul.f32.gmra.mxu0 %v1165
      %v1748 = vpop.f32.mrf.mxu0
      %v1749 = vadd.f32 %v1636, %v1748
      %1750 = vmatmul.f32.gmra.mxu0 %v1174
      %v1751 = vpop.f32.mrf.mxu0
      %v1752 = vadd.f32 %v1639, %v1751
      %1753 = vmatmul.f32.gmra.mxu0 %v1183
      %v1754 = vpop.f32.mrf.mxu0
      %v1755 = vadd.f32 %v1642, %v1754
      %1756 = vmatmul.f32.gmra.mxu0 %v1192
      %v1757 = vpop.f32.mrf.mxu0
      %v1758 = vadd.f32 %v1645, %v1757
      %1759 = vmatmul.f32.gmra.mxu0 %v1201
      %v1760 = vpop.f32.mrf.mxu0
      %v1761 = vadd.f32 %v1648, %v1760
      %1762 = vmatmul.f32.gmra.mxu0 %v1210
      %v1763 = vpop.f32.mrf.mxu0
      %v1764 = vadd.f32 %v1651, %v1763
      %1765 = vmatmul.f32.gmra.mxu0 %v1219
      %v1766 = vpop.f32.mrf.mxu0
      %v1767 = vadd.f32 %v1654, %v1766
      %1768 = vmatmul.f32.gmra.mxu0 %v1228
      %v1769 = vpop.f32.mrf.mxu0
      %v1770 = vadd.f32 %v1657, %v1769
      %1771 = vmatmul.f32.gmra.mxu0 %v1237
      %v1772 = vpop.f32.mrf.mxu0
      %v1773 = vadd.f32 %v1660, %v1772
      %1774 = vmatmul.f32.gmra.mxu0 %v1246
      %v1775 = vpop.f32.mrf.mxu0
      %v1776 = vadd.f32 %v1663, %v1775
      %1777 = vmatmul.f32.gmra.mxu0 %v1255
      %v1778 = vpop.f32.mrf.mxu0
      %v1779 = vadd.f32 %v1666, %v1778
      %1780 = vmatmul.f32.gmra.mxu0 %v1264
      %v1781 = vpop.f32.mrf.mxu0
      %v1782 = vadd.f32 %v1669, %v1781
      %1783 = vmatmul.f32.gmra.mxu0 %v1273
      %v1784 = vpop.f32.mrf.mxu0
      %v1785 = vadd.f32 %v1672, %v1784
      %1786 = vmatmul.f32.gmra.mxu0 %v1282
      %v1787 = vpop.f32.mrf.mxu0
      %v1788 = vadd.f32 %v1675, %v1787
      %1789 = vmatmul.f32.gmra.mxu0 %v1291
      %v1790 = vpop.f32.mrf.mxu0
      %v1791 = vadd.f32 %v1678, %v1790
      %1792 = vmatmul.f32.gmra.mxu0 %v1300
      %v1793 = vpop.f32.mrf.mxu0
      %v1794 = vadd.f32 %v1681, %v1793
      %1795 = vmatmul.f32.gmra.mxu0 %v1309
      %v1796 = vpop.f32.mrf.mxu0
      %v1797 = vadd.f32 %v1684, %v1796
      %1798 = vdwg.mxu0
      %1799 = vmatpush.msra.mxu0 %v1379
      %1800 = vmatpush.msra.mxu0 %v1378
      %1801 = vmatpush.msra.mxu0 %v1377
      %1802 = vmatpush.msra.mxu0 %v1376
      %1803 = vmatpush.msra.mxu0 %v1375
      %1804 = vmatpush.msra.mxu0 %v1374
      %1805 = vmatpush.msra.mxu0 %v1373
      %1806 = vmatpush.msra.mxu0 %v1372
      %1807 = vmatpush.msra.mxu0 %v1371
      %1808 = vmatpush.msra.mxu0 %v1370
      %1809 = vmatpush.msra.mxu0 %v1369
      %1810 = vmatpush.msra.mxu0 %v1368
      %1811 = vmatpush.msra.mxu0 %v1367
      %1812 = vmatpush.msra.mxu0 %v1366
      %1813 = vmatpush.msra.mxu0 %v1365
      %1814 = vmatpush.msra.mxu0 %v1364
      %1815 = vmatmul.f32.gmra.mxu0 %v1031
      %v1816 = vpop.f32.mrf.mxu0
      %v1817 = vadd.f32 %v1704, %v1816
      %1818 = vmatmul.f32.gmra.mxu0 %v1040
      %v1819 = vpop.f32.mrf.mxu0
      %v1820 = vadd.f32 %v1707, %v1819
      %1821 = vmatmul.f32.gmra.mxu0 %v1049
      %v1822 = vpop.f32.mrf.mxu0
      %v1823 = vadd.f32 %v1710, %v1822
      %1824 = vmatmul.f32.gmra.mxu0 %v1058
      %v1825 = vpop.f32.mrf.mxu0
      %v1826 = vadd.f32 %v1713, %v1825
      %1827 = vmatmul.f32.gmra.mxu0 %v1067
      %v1828 = vpop.f32.mrf.mxu0
      %v1829 = vadd.f32 %v1716, %v1828
      %1830 = vmatmul.f32.gmra.mxu0 %v1076
      %v1831 = vpop.f32.mrf.mxu0
      %v1832 = vadd.f32 %v1719, %v1831
      %1833 = vmatmul.f32.gmra.mxu0 %v1085
      %v1834 = vpop.f32.mrf.mxu0
      %v1835 = vadd.f32 %v1722, %v1834
      %1836 = vmatmul.f32.gmra.mxu0 %v1094
      %v1837 = vpop.f32.mrf.mxu0
      %v1838 = vadd.f32 %v1725, %v1837
      %1839 = vmatmul.f32.gmra.mxu0 %v1103
      %v1840 = vpop.f32.mrf.mxu0
      %v1841 = vadd.f32 %v1728, %v1840
      %1842 = vmatmul.f32.gmra.mxu0 %v1112
      %v1843 = vpop.f32.mrf.mxu0
      %v1844 = vadd.f32 %v1731, %v1843
      %1845 = vmatmul.f32.gmra.mxu0 %v1121
      %v1846 = vpop.f32.mrf.mxu0
      %v1847 = vadd.f32 %v1734, %v1846
      %1848 = vmatmul.f32.gmra.mxu0 %v1130
      %v1849 = vpop.f32.mrf.mxu0
      %v1850 = vadd.f32 %v1737, %v1849
      %1851 = vmatmul.f32.gmra.mxu0 %v1139
      %v1852 = vpop.f32.mrf.mxu0
      %v1853 = vadd.f32 %v1740, %v1852
      %1854 = vmatmul.f32.gmra.mxu0 %v1148
      %v1855 = vpop.f32.mrf.mxu0
      %v1856 = vadd.f32 %v1743, %v1855
      %1857 = vmatmul.f32.gmra.mxu0 %v1157
      %v1858 = vpop.f32.mrf.mxu0
      %v1859 = vadd.f32 %v1746, %v1858
      %1860 = vmatmul.f32.gmra.mxu0 %v1166
      %v1861 = vpop.f32.mrf.mxu0
      %v1862 = vadd.f32 %v1749, %v1861
      %1863 = vmatmul.f32.gmra.mxu0 %v1175
      %v1864 = vpop.f32.mrf.mxu0
      %v1865 = vadd.f32 %v1752, %v1864
      %1866 = vmatmul.f32.gmra.mxu0 %v1184
      %v1867 = vpop.f32.mrf.mxu0
      %v1868 = vadd.f32 %v1755, %v1867
      %1869 = vmatmul.f32.gmra.mxu0 %v1193
      %v1870 = vpop.f32.mrf.mxu0
      %v1871 = vadd.f32 %v1758, %v1870
      %1872 = vmatmul.f32.gmra.mxu0 %v1202
      %v1873 = vpop.f32.mrf.mxu0
      %v1874 = vadd.f32 %v1761, %v1873
      %1875 = vmatmul.f32.gmra.mxu0 %v1211
      %v1876 = vpop.f32.mrf.mxu0
      %v1877 = vadd.f32 %v1764, %v1876
      %1878 = vmatmul.f32.gmra.mxu0 %v1220
      %v1879 = vpop.f32.mrf.mxu0
      %v1880 = vadd.f32 %v1767, %v1879
      %1881 = vmatmul.f32.gmra.mxu0 %v1229
      %v1882 = vpop.f32.mrf.mxu0
      %v1883 = vadd.f32 %v1770, %v1882
      %1884 = vmatmul.f32.gmra.mxu0 %v1238
      %v1885 = vpop.f32.mrf.mxu0
      %v1886 = vadd.f32 %v1773, %v1885
      %1887 = vmatmul.f32.gmra.mxu0 %v1247
      %v1888 = vpop.f32.mrf.mxu0
      %v1889 = vadd.f32 %v1776, %v1888
      %1890 = vmatmul.f32.gmra.mxu0 %v1256
      %v1891 = vpop.f32.mrf.mxu0
      %v1892 = vadd.f32 %v1779, %v1891
      %1893 = vmatmul.f32.gmra.mxu0 %v1265
      %v1894 = vpop.f32.mrf.mxu0
      %v1895 = vadd.f32 %v1782, %v1894
      %1896 = vmatmul.f32.gmra.mxu0 %v1274
      %v1897 = vpop.f32.mrf.mxu0
      %v1898 = vadd.f32 %v1785, %v1897
      %1899 = vmatmul.f32.gmra.mxu0 %v1283
      %v1900 = vpop.f32.mrf.mxu0
      %v1901 = vadd.f32 %v1788, %v1900
      %1902 = vmatmul.f32.gmra.mxu0 %v1292
      %v1903 = vpop.f32.mrf.mxu0
      %v1904 = vadd.f32 %v1791, %v1903
      %1905 = vmatmul.f32.gmra.mxu0 %v1301
      %v1906 = vpop.f32.mrf.mxu0
      %v1907 = vadd.f32 %v1794, %v1906
      %1908 = vmatmul.f32.gmra.mxu0 %v1310
      %v1909 = vpop.f32.mrf.mxu0
      %v1910 = vadd.f32 %v1797, %v1909
      %1911 = vdwg.mxu0
      %1912 = vmatpush.msra.mxu0 %v1395
      %1913 = vmatpush.msra.mxu0 %v1394
      %1914 = vmatpush.msra.mxu0 %v1393
      %1915 = vmatpush.msra.mxu0 %v1392
      %1916 = vmatpush.msra.mxu0 %v1391
      %1917 = vmatpush.msra.mxu0 %v1390
      %1918 = vmatpush.msra.mxu0 %v1389
      %1919 = vmatpush.msra.mxu0 %v1388
      %1920 = vmatpush.msra.mxu0 %v1387
      %1921 = vmatpush.msra.mxu0 %v1386
      %1922 = vmatpush.msra.mxu0 %v1385
      %1923 = vmatpush.msra.mxu0 %v1384
      %1924 = vmatpush.msra.mxu0 %v1383
      %1925 = vmatpush.msra.mxu0 %v1382
      %1926 = vmatpush.msra.mxu0 %v1381
      %1927 = vmatpush.msra.mxu0 %v1380
      %1928 = vmatmul.f32.gmra.mxu0 %v1032
      %v1929 = vpop.f32.mrf.mxu0
      %v1930 = vadd.f32 %v1817, %v1929
      %1931 = vmatmul.f32.gmra.mxu0 %v1041
      %v1932 = vpop.f32.mrf.mxu0
      %v1933 = vadd.f32 %v1820, %v1932
      %1934 = vmatmul.f32.gmra.mxu0 %v1050
      %v1935 = vpop.f32.mrf.mxu0
      %v1936 = vadd.f32 %v1823, %v1935
      %1937 = vmatmul.f32.gmra.mxu0 %v1059
      %v1938 = vpop.f32.mrf.mxu0
      %v1939 = vadd.f32 %v1826, %v1938
      %1940 = vmatmul.f32.gmra.mxu0 %v1068
      %v1941 = vpop.f32.mrf.mxu0
      %v1942 = vadd.f32 %v1829, %v1941
      %1943 = vmatmul.f32.gmra.mxu0 %v1077
      %v1944 = vpop.f32.mrf.mxu0
      %v1945 = vadd.f32 %v1832, %v1944
      %1946 = vmatmul.f32.gmra.mxu0 %v1086
      %v1947 = vpop.f32.mrf.mxu0
      %v1948 = vadd.f32 %v1835, %v1947
      %1949 = vmatmul.f32.gmra.mxu0 %v1095
      %v1950 = vpop.f32.mrf.mxu0
      %v1951 = vadd.f32 %v1838, %v1950
      %1952 = vmatmul.f32.gmra.mxu0 %v1104
      %v1953 = vpop.f32.mrf.mxu0
      %v1954 = vadd.f32 %v1841, %v1953
      %1955 = vmatmul.f32.gmra.mxu0 %v1113
      %v1956 = vpop.f32.mrf.mxu0
      %v1957 = vadd.f32 %v1844, %v1956
      %1958 = vmatmul.f32.gmra.mxu0 %v1122
      %v1959 = vpop.f32.mrf.mxu0
      %v1960 = vadd.f32 %v1847, %v1959
      %1961 = vmatmul.f32.gmra.mxu0 %v1131
      %v1962 = vpop.f32.mrf.mxu0
      %v1963 = vadd.f32 %v1850, %v1962
      %1964 = vmatmul.f32.gmra.mxu0 %v1140
      %v1965 = vpop.f32.mrf.mxu0
      %v1966 = vadd.f32 %v1853, %v1965
      %1967 = vmatmul.f32.gmra.mxu0 %v1149
      %v1968 = vpop.f32.mrf.mxu0
      %v1969 = vadd.f32 %v1856, %v1968
      %1970 = vmatmul.f32.gmra.mxu0 %v1158
      %v1971 = vpop.f32.mrf.mxu0
      %v1972 = vadd.f32 %v1859, %v1971
      %1973 = vmatmul.f32.gmra.mxu0 %v1167
      %v1974 = vpop.f32.mrf.mxu0
      %v1975 = vadd.f32 %v1862, %v1974
      %1976 = vmatmul.f32.gmra.mxu0 %v1176
      %v1977 = vpop.f32.mrf.mxu0
      %v1978 = vadd.f32 %v1865, %v1977
      %1979 = vmatmul.f32.gmra.mxu0 %v1185
      %v1980 = vpop.f32.mrf.mxu0
      %v1981 = vadd.f32 %v1868, %v1980
      %1982 = vmatmul.f32.gmra.mxu0 %v1194
      %v1983 = vpop.f32.mrf.mxu0
      %v1984 = vadd.f32 %v1871, %v1983
      %1985 = vmatmul.f32.gmra.mxu0 %v1203
      %v1986 = vpop.f32.mrf.mxu0
      %v1987 = vadd.f32 %v1874, %v1986
      %1988 = vmatmul.f32.gmra.mxu0 %v1212
      %v1989 = vpop.f32.mrf.mxu0
      %v1990 = vadd.f32 %v1877, %v1989
      %1991 = vmatmul.f32.gmra.mxu0 %v1221
      %v1992 = vpop.f32.mrf.mxu0
      %v1993 = vadd.f32 %v1880, %v1992
      %1994 = vmatmul.f32.gmra.mxu0 %v1230
      %v1995 = vpop.f32.mrf.mxu0
      %v1996 = vadd.f32 %v1883, %v1995
      %1997 = vmatmul.f32.gmra.mxu0 %v1239
      %v1998 = vpop.f32.mrf.mxu0
      %v1999 = vadd.f32 %v1886, %v1998
      %2000 = vmatmul.f32.gmra.mxu0 %v1248
      %v2001 = vpop.f32.mrf.mxu0
      %v2002 = vadd.f32 %v1889, %v2001
      %2003 = vmatmul.f32.gmra.mxu0 %v1257
      %v2004 = vpop.f32.mrf.mxu0
      %v2005 = vadd.f32 %v1892, %v2004
      %2006 = vmatmul.f32.gmra.mxu0 %v1266
      %v2007 = vpop.f32.mrf.mxu0
      %v2008 = vadd.f32 %v1895, %v2007
      %2009 = vmatmul.f32.gmra.mxu0 %v1275
      %v2010 = vpop.f32.mrf.mxu0
      %v2011 = vadd.f32 %v1898, %v2010
      %2012 = vmatmul.f32.gmra.mxu0 %v1284
      %v2013 = vpop.f32.mrf.mxu0
      %v2014 = vadd.f32 %v1901, %v2013
      %2015 = vmatmul.f32.gmra.mxu0 %v1293
      %v2016 = vpop.f32.mrf.mxu0
      %v2017 = vadd.f32 %v1904, %v2016
      %2018 = vmatmul.f32.gmra.mxu0 %v1302
      %v2019 = vpop.f32.mrf.mxu0
      %v2020 = vadd.f32 %v1907, %v2019
      %2021 = vmatmul.f32.gmra.mxu0 %v1311
      %v2022 = vpop.f32.mrf.mxu0
      %v2023 = vadd.f32 %v1910, %v2022
      %2024 = vdwg.mxu0
      %2025 = vmatpush.msra.mxu0 %v1411
      %2026 = vmatpush.msra.mxu0 %v1410
      %2027 = vmatpush.msra.mxu0 %v1409
      %2028 = vmatpush.msra.mxu0 %v1408
      %2029 = vmatpush.msra.mxu0 %v1407
      %2030 = vmatpush.msra.mxu0 %v1406
      %2031 = vmatpush.msra.mxu0 %v1405
      %2032 = vmatpush.msra.mxu0 %v1404
      %2033 = vmatpush.msra.mxu0 %v1403
      %2034 = vmatpush.msra.mxu0 %v1402
      %2035 = vmatpush.msra.mxu0 %v1401
      %2036 = vmatpush.msra.mxu0 %v1400
      %2037 = vmatpush.msra.mxu0 %v1399
      %2038 = vmatpush.msra.mxu0 %v1398
      %2039 = vmatpush.msra.mxu0 %v1397
      %2040 = vmatpush.msra.mxu0 %v1396
      %2041 = vmatmul.f32.gmra.mxu0 %v1033
      %v2042 = vpop.f32.mrf.mxu0
      %v2043 = vadd.f32 %v1930, %v2042
      %2044 = vmatmul.f32.gmra.mxu0 %v1042
      %v2045 = vpop.f32.mrf.mxu0
      %v2046 = vadd.f32 %v1933, %v2045
      %2047 = vmatmul.f32.gmra.mxu0 %v1051
      %v2048 = vpop.f32.mrf.mxu0
      %v2049 = vadd.f32 %v1936, %v2048
      %2050 = vmatmul.f32.gmra.mxu0 %v1060
      %v2051 = vpop.f32.mrf.mxu0
      %v2052 = vadd.f32 %v1939, %v2051
      %2053 = vmatmul.f32.gmra.mxu0 %v1069
      %v2054 = vpop.f32.mrf.mxu0
      %v2055 = vadd.f32 %v1942, %v2054
      %2056 = vmatmul.f32.gmra.mxu0 %v1078
      %v2057 = vpop.f32.mrf.mxu0
      %v2058 = vadd.f32 %v1945, %v2057
      %2059 = vmatmul.f32.gmra.mxu0 %v1087
      %v2060 = vpop.f32.mrf.mxu0
      %v2061 = vadd.f32 %v1948, %v2060
      %2062 = vmatmul.f32.gmra.mxu0 %v1096
      %v2063 = vpop.f32.mrf.mxu0
      %v2064 = vadd.f32 %v1951, %v2063
      %2065 = vmatmul.f32.gmra.mxu0 %v1105
      %v2066 = vpop.f32.mrf.mxu0
      %v2067 = vadd.f32 %v1954, %v2066
      %2068 = vmatmul.f32.gmra.mxu0 %v1114
      %v2069 = vpop.f32.mrf.mxu0
      %v2070 = vadd.f32 %v1957, %v2069
      %2071 = vmatmul.f32.gmra.mxu0 %v1123
      %v2072 = vpop.f32.mrf.mxu0
      %v2073 = vadd.f32 %v1960, %v2072
      %2074 = vmatmul.f32.gmra.mxu0 %v1132
      %v2075 = vpop.f32.mrf.mxu0
      %v2076 = vadd.f32 %v1963, %v2075
      %2077 = vmatmul.f32.gmra.mxu0 %v1141
      %v2078 = vpop.f32.mrf.mxu0
      %v2079 = vadd.f32 %v1966, %v2078
      %2080 = vmatmul.f32.gmra.mxu0 %v1150
      %v2081 = vpop.f32.mrf.mxu0
      %v2082 = vadd.f32 %v1969, %v2081
      %2083 = vmatmul.f32.gmra.mxu0 %v1159
      %v2084 = vpop.f32.mrf.mxu0
      %v2085 = vadd.f32 %v1972, %v2084
      %2086 = vmatmul.f32.gmra.mxu0 %v1168
      %v2087 = vpop.f32.mrf.mxu0
      %v2088 = vadd.f32 %v1975, %v2087
      %2089 = vmatmul.f32.gmra.mxu0 %v1177
      %v2090 = vpop.f32.mrf.mxu0
      %v2091 = vadd.f32 %v1978, %v2090
      %2092 = vmatmul.f32.gmra.mxu0 %v1186
      %v2093 = vpop.f32.mrf.mxu0
      %v2094 = vadd.f32 %v1981, %v2093
      %2095 = vmatmul.f32.gmra.mxu0 %v1195
      %v2096 = vpop.f32.mrf.mxu0
      %v2097 = vadd.f32 %v1984, %v2096
      %2098 = vmatmul.f32.gmra.mxu0 %v1204
      %v2099 = vpop.f32.mrf.mxu0
      %v2100 = vadd.f32 %v1987, %v2099
      %2101 = vmatmul.f32.gmra.mxu0 %v1213
      %v2102 = vpop.f32.mrf.mxu0
      %v2103 = vadd.f32 %v1990, %v2102
      %2104 = vmatmul.f32.gmra.mxu0 %v1222
      %v2105 = vpop.f32.mrf.mxu0
      %v2106 = vadd.f32 %v1993, %v2105
      %2107 = vmatmul.f32.gmra.mxu0 %v1231
      %v2108 = vpop.f32.mrf.mxu0
      %v2109 = vadd.f32 %v1996, %v2108
      %2110 = vmatmul.f32.gmra.mxu0 %v1240
      %v2111 = vpop.f32.mrf.mxu0
      %v2112 = vadd.f32 %v1999, %v2111
      %2113 = vmatmul.f32.gmra.mxu0 %v1249
      %v2114 = vpop.f32.mrf.mxu0
      %v2115 = vadd.f32 %v2002, %v2114
      %2116 = vmatmul.f32.gmra.mxu0 %v1258
      %v2117 = vpop.f32.mrf.mxu0
      %v2118 = vadd.f32 %v2005, %v2117
      %2119 = vmatmul.f32.gmra.mxu0 %v1267
      %v2120 = vpop.f32.mrf.mxu0
      %v2121 = vadd.f32 %v2008, %v2120
      %2122 = vmatmul.f32.gmra.mxu0 %v1276
      %v2123 = vpop.f32.mrf.mxu0
      %v2124 = vadd.f32 %v2011, %v2123
      %2125 = vmatmul.f32.gmra.mxu0 %v1285
      %v2126 = vpop.f32.mrf.mxu0
      %v2127 = vadd.f32 %v2014, %v2126
      %2128 = vmatmul.f32.gmra.mxu0 %v1294
      %v2129 = vpop.f32.mrf.mxu0
      %v2130 = vadd.f32 %v2017, %v2129
      %2131 = vmatmul.f32.gmra.mxu0 %v1303
      %v2132 = vpop.f32.mrf.mxu0
      %v2133 = vadd.f32 %v2020, %v2132
      %2134 = vmatmul.f32.gmra.mxu0 %v1312
      %v2135 = vpop.f32.mrf.mxu0
      %v2136 = vadd.f32 %v2023, %v2135
      %2137 = vdwg.mxu0
      %2138 = vmatpush.msra.mxu0 %v1427
      %2139 = vmatpush.msra.mxu0 %v1426
      %2140 = vmatpush.msra.mxu0 %v1425
      %2141 = vmatpush.msra.mxu0 %v1424
      %2142 = vmatpush.msra.mxu0 %v1423
      %2143 = vmatpush.msra.mxu0 %v1422
      %2144 = vmatpush.msra.mxu0 %v1421
      %2145 = vmatpush.msra.mxu0 %v1420
      %2146 = vmatpush.msra.mxu0 %v1419
      %2147 = vmatpush.msra.mxu0 %v1418
      %2148 = vmatpush.msra.mxu0 %v1417
      %2149 = vmatpush.msra.mxu0 %v1416
      %2150 = vmatpush.msra.mxu0 %v1415
      %2151 = vmatpush.msra.mxu0 %v1414
      %2152 = vmatpush.msra.mxu0 %v1413
      %2153 = vmatpush.msra.mxu0 %v1412
      %2154 = vmatmul.f32.gmra.mxu0 %v1034
      %v2155 = vpop.f32.mrf.mxu0
      %v2156 = vadd.f32 %v2043, %v2155
      %2157 = vmatmul.f32.gmra.mxu0 %v1043
      %v2158 = vpop.f32.mrf.mxu0
      %v2159 = vadd.f32 %v2046, %v2158
      %2160 = vmatmul.f32.gmra.mxu0 %v1052
      %v2161 = vpop.f32.mrf.mxu0
      %v2162 = vadd.f32 %v2049, %v2161
      %2163 = vmatmul.f32.gmra.mxu0 %v1061
      %v2164 = vpop.f32.mrf.mxu0
      %v2165 = vadd.f32 %v2052, %v2164
      %2166 = vmatmul.f32.gmra.mxu0 %v1070
      %v2167 = vpop.f32.mrf.mxu0
      %v2168 = vadd.f32 %v2055, %v2167
      %2169 = vmatmul.f32.gmra.mxu0 %v1079
      %v2170 = vpop.f32.mrf.mxu0
      %v2171 = vadd.f32 %v2058, %v2170
      %2172 = vmatmul.f32.gmra.mxu0 %v1088
      %v2173 = vpop.f32.mrf.mxu0
      %v2174 = vadd.f32 %v2061, %v2173
      %2175 = vmatmul.f32.gmra.mxu0 %v1097
      %v2176 = vpop.f32.mrf.mxu0
      %v2177 = vadd.f32 %v2064, %v2176
      %2178 = vmatmul.f32.gmra.mxu0 %v1106
      %v2179 = vpop.f32.mrf.mxu0
      %v2180 = vadd.f32 %v2067, %v2179
      %2181 = vmatmul.f32.gmra.mxu0 %v1115
      %v2182 = vpop.f32.mrf.mxu0
      %v2183 = vadd.f32 %v2070, %v2182
      %2184 = vmatmul.f32.gmra.mxu0 %v1124
      %v2185 = vpop.f32.mrf.mxu0
      %v2186 = vadd.f32 %v2073, %v2185
      %2187 = vmatmul.f32.gmra.mxu0 %v1133
      %v2188 = vpop.f32.mrf.mxu0
      %v2189 = vadd.f32 %v2076, %v2188
      %2190 = vmatmul.f32.gmra.mxu0 %v1142
      %v2191 = vpop.f32.mrf.mxu0
      %v2192 = vadd.f32 %v2079, %v2191
      %2193 = vmatmul.f32.gmra.mxu0 %v1151
      %v2194 = vpop.f32.mrf.mxu0
      %v2195 = vadd.f32 %v2082, %v2194
      %2196 = vmatmul.f32.gmra.mxu0 %v1160
      %v2197 = vpop.f32.mrf.mxu0
      %v2198 = vadd.f32 %v2085, %v2197
      %2199 = vmatmul.f32.gmra.mxu0 %v1169
      %v2200 = vpop.f32.mrf.mxu0
      %v2201 = vadd.f32 %v2088, %v2200
      %2202 = vmatmul.f32.gmra.mxu0 %v1178
      %v2203 = vpop.f32.mrf.mxu0
      %v2204 = vadd.f32 %v2091, %v2203
      %2205 = vmatmul.f32.gmra.mxu0 %v1187
      %v2206 = vpop.f32.mrf.mxu0
      %v2207 = vadd.f32 %v2094, %v2206
      %2208 = vmatmul.f32.gmra.mxu0 %v1196
      %v2209 = vpop.f32.mrf.mxu0
      %v2210 = vadd.f32 %v2097, %v2209
      %2211 = vmatmul.f32.gmra.mxu0 %v1205
      %v2212 = vpop.f32.mrf.mxu0
      %v2213 = vadd.f32 %v2100, %v2212
      %2214 = vmatmul.f32.gmra.mxu0 %v1214
      %v2215 = vpop.f32.mrf.mxu0
      %v2216 = vadd.f32 %v2103, %v2215
      %2217 = vmatmul.f32.gmra.mxu0 %v1223
      %v2218 = vpop.f32.mrf.mxu0
      %v2219 = vadd.f32 %v2106, %v2218
      %2220 = vmatmul.f32.gmra.mxu0 %v1232
      %v2221 = vpop.f32.mrf.mxu0
      %v2222 = vadd.f32 %v2109, %v2221
      %2223 = vmatmul.f32.gmra.mxu0 %v1241
      %v2224 = vpop.f32.mrf.mxu0
      %v2225 = vadd.f32 %v2112, %v2224
      %2226 = vmatmul.f32.gmra.mxu0 %v1250
      %v2227 = vpop.f32.mrf.mxu0
      %v2228 = vadd.f32 %v2115, %v2227
      %2229 = vmatmul.f32.gmra.mxu0 %v1259
      %v2230 = vpop.f32.mrf.mxu0
      %v2231 = vadd.f32 %v2118, %v2230
      %2232 = vmatmul.f32.gmra.mxu0 %v1268
      %v2233 = vpop.f32.mrf.mxu0
      %v2234 = vadd.f32 %v2121, %v2233
      %2235 = vmatmul.f32.gmra.mxu0 %v1277
      %v2236 = vpop.f32.mrf.mxu0
      %v2237 = vadd.f32 %v2124, %v2236
      %2238 = vmatmul.f32.gmra.mxu0 %v1286
      %v2239 = vpop.f32.mrf.mxu0
      %v2240 = vadd.f32 %v2127, %v2239
      %2241 = vmatmul.f32.gmra.mxu0 %v1295
      %v2242 = vpop.f32.mrf.mxu0
      %v2243 = vadd.f32 %v2130, %v2242
      %2244 = vmatmul.f32.gmra.mxu0 %v1304
      %v2245 = vpop.f32.mrf.mxu0
      %v2246 = vadd.f32 %v2133, %v2245
      %2247 = vmatmul.f32.gmra.mxu0 %v1313
      %v2248 = vpop.f32.mrf.mxu0
      %v2249 = vadd.f32 %v2136, %v2248
      %2250 = vdwg.mxu0
      %2251 = vmatpush.msra.mxu0 %v1443
      %2252 = vmatpush.msra.mxu0 %v1442
      %2253 = vmatpush.msra.mxu0 %v1441
      %2254 = vmatpush.msra.mxu0 %v1440
      %2255 = vmatpush.msra.mxu0 %v1439
      %2256 = vmatpush.msra.mxu0 %v1438
      %2257 = vmatpush.msra.mxu0 %v1437
      %2258 = vmatpush.msra.mxu0 %v1436
      %2259 = vmatpush.msra.mxu0 %v1435
      %2260 = vmatpush.msra.mxu0 %v1434
      %2261 = vmatpush.msra.mxu0 %v1433
      %2262 = vmatpush.msra.mxu0 %v1432
      %2263 = vmatpush.msra.mxu0 %v1431
      %2264 = vmatpush.msra.mxu0 %v1430
      %2265 = vmatpush.msra.mxu0 %v1429
      %2266 = vmatpush.msra.mxu0 %v1428
      %2267 = vmatmul.f32.gmra.mxu0 %v1035
      %v2268 = vpop.f32.mrf.mxu0
      %v2269 = vadd.f32 %v2156, %v2268
      %2270 = vmatmul.f32.gmra.mxu0 %v1044
      %v2271 = vpop.f32.mrf.mxu0
      %v2272 = vadd.f32 %v2159, %v2271
      %2273 = vmatmul.f32.gmra.mxu0 %v1053
      %v2274 = vpop.f32.mrf.mxu0
      %v2275 = vadd.f32 %v2162, %v2274
      %2276 = vmatmul.f32.gmra.mxu0 %v1062
      %v2277 = vpop.f32.mrf.mxu0
      %v2278 = vadd.f32 %v2165, %v2277
      %2279 = vmatmul.f32.gmra.mxu0 %v1071
      %v2280 = vpop.f32.mrf.mxu0
      %v2281 = vadd.f32 %v2168, %v2280
      %2282 = vmatmul.f32.gmra.mxu0 %v1080
      %v2283 = vpop.f32.mrf.mxu0
      %v2284 = vadd.f32 %v2171, %v2283
      %2285 = vmatmul.f32.gmra.mxu0 %v1089
      %v2286 = vpop.f32.mrf.mxu0
      %v2287 = vadd.f32 %v2174, %v2286
      %2288 = vmatmul.f32.gmra.mxu0 %v1098
      %v2289 = vpop.f32.mrf.mxu0
      %v2290 = vadd.f32 %v2177, %v2289
      %2291 = vmatmul.f32.gmra.mxu0 %v1107
      %v2292 = vpop.f32.mrf.mxu0
      %v2293 = vadd.f32 %v2180, %v2292
      %2294 = vmatmul.f32.gmra.mxu0 %v1116
      %v2295 = vpop.f32.mrf.mxu0
      %v2296 = vadd.f32 %v2183, %v2295
      %2297 = vmatmul.f32.gmra.mxu0 %v1125
      %v2298 = vpop.f32.mrf.mxu0
      %v2299 = vadd.f32 %v2186, %v2298
      %2300 = vmatmul.f32.gmra.mxu0 %v1134
      %v2301 = vpop.f32.mrf.mxu0
      %v2302 = vadd.f32 %v2189, %v2301
      %2303 = vmatmul.f32.gmra.mxu0 %v1143
      %v2304 = vpop.f32.mrf.mxu0
      %v2305 = vadd.f32 %v2192, %v2304
      %2306 = vmatmul.f32.gmra.mxu0 %v1152
      %v2307 = vpop.f32.mrf.mxu0
      %v2308 = vadd.f32 %v2195, %v2307
      %2309 = vmatmul.f32.gmra.mxu0 %v1161
      %v2310 = vpop.f32.mrf.mxu0
      %v2311 = vadd.f32 %v2198, %v2310
      %2312 = vmatmul.f32.gmra.mxu0 %v1170
      %v2313 = vpop.f32.mrf.mxu0
      %v2314 = vadd.f32 %v2201, %v2313
      %2315 = vmatmul.f32.gmra.mxu0 %v1179
      %v2316 = vpop.f32.mrf.mxu0
      %v2317 = vadd.f32 %v2204, %v2316
      %2318 = vmatmul.f32.gmra.mxu0 %v1188
      %v2319 = vpop.f32.mrf.mxu0
      %v2320 = vadd.f32 %v2207, %v2319
      %2321 = vmatmul.f32.gmra.mxu0 %v1197
      %v2322 = vpop.f32.mrf.mxu0
      %v2323 = vadd.f32 %v2210, %v2322
      %2324 = vmatmul.f32.gmra.mxu0 %v1206
      %v2325 = vpop.f32.mrf.mxu0
      %v2326 = vadd.f32 %v2213, %v2325
      %2327 = vmatmul.f32.gmra.mxu0 %v1215
      %v2328 = vpop.f32.mrf.mxu0
      %v2329 = vadd.f32 %v2216, %v2328
      %2330 = vmatmul.f32.gmra.mxu0 %v1224
      %v2331 = vpop.f32.mrf.mxu0
      %v2332 = vadd.f32 %v2219, %v2331
      %2333 = vmatmul.f32.gmra.mxu0 %v1233
      %v2334 = vpop.f32.mrf.mxu0
      %v2335 = vadd.f32 %v2222, %v2334
      %2336 = vmatmul.f32.gmra.mxu0 %v1242
      %v2337 = vpop.f32.mrf.mxu0
      %v2338 = vadd.f32 %v2225, %v2337
      %2339 = vmatmul.f32.gmra.mxu0 %v1251
      %v2340 = vpop.f32.mrf.mxu0
      %v2341 = vadd.f32 %v2228, %v2340
      %2342 = vmatmul.f32.gmra.mxu0 %v1260
      %v2343 = vpop.f32.mrf.mxu0
      %v2344 = vadd.f32 %v2231, %v2343
      %2345 = vmatmul.f32.gmra.mxu0 %v1269
      %v2346 = vpop.f32.mrf.mxu0
      %v2347 = vadd.f32 %v2234, %v2346
      %2348 = vmatmul.f32.gmra.mxu0 %v1278
      %v2349 = vpop.f32.mrf.mxu0
      %v2350 = vadd.f32 %v2237, %v2349
      %2351 = vmatmul.f32.gmra.mxu0 %v1287
      %v2352 = vpop.f32.mrf.mxu0
      %v2353 = vadd.f32 %v2240, %v2352
      %2354 = vmatmul.f32.gmra.mxu0 %v1296
      %v2355 = vpop.f32.mrf.mxu0
      %v2356 = vadd.f32 %v2243, %v2355
      %2357 = vmatmul.f32.gmra.mxu0 %v1305
      %v2358 = vpop.f32.mrf.mxu0
      %v2359 = vadd.f32 %v2246, %v2358
      %2360 = vmatmul.f32.gmra.mxu0 %v1314
      %v2361 = vpop.f32.mrf.mxu0
      %v2362 = vadd.f32 %v2249, %v2361
      %2363 = vdwg.mxu0
      %2364 = vmatpush.msra.mxu0 %v1459
      %2365 = vmatpush.msra.mxu0 %v1458
      %2366 = vmatpush.msra.mxu0 %v1457
      %2367 = vmatpush.msra.mxu0 %v1456
      %2368 = vmatpush.msra.mxu0 %v1455
      %2369 = vmatpush.msra.mxu0 %v1454
      %2370 = vmatpush.msra.mxu0 %v1453
      %2371 = vmatpush.msra.mxu0 %v1452
      %2372 = vmatpush.msra.mxu0 %v1451
      %2373 = vmatpush.msra.mxu0 %v1450
      %2374 = vmatpush.msra.mxu0 %v1449
      %2375 = vmatpush.msra.mxu0 %v1448
      %2376 = vmatpush.msra.mxu0 %v1447
      %2377 = vmatpush.msra.mxu0 %v1446
      %2378 = vmatpush.msra.mxu0 %v1445
      %2379 = vmatpush.msra.mxu0 %v1444
      %2380 = vmatmul.f32.gmra.mxu0 %v1036
      %v2381 = vpop.f32.mrf.mxu0
      %v2382 = vadd.f32 %v2269, %v2381
      %2383 = vmatmul.f32.gmra.mxu0 %v1045
      %v2384 = vpop.f32.mrf.mxu0
      %v2385 = vadd.f32 %v2272, %v2384
      %2386 = vmatmul.f32.gmra.mxu0 %v1054
      %v2387 = vpop.f32.mrf.mxu0
      %v2388 = vadd.f32 %v2275, %v2387
      %2389 = vmatmul.f32.gmra.mxu0 %v1063
      %v2390 = vpop.f32.mrf.mxu0
      %v2391 = vadd.f32 %v2278, %v2390
      %2392 = vmatmul.f32.gmra.mxu0 %v1072
      %v2393 = vpop.f32.mrf.mxu0
      %v2394 = vadd.f32 %v2281, %v2393
      %2395 = vmatmul.f32.gmra.mxu0 %v1081
      %v2396 = vpop.f32.mrf.mxu0
      %v2397 = vadd.f32 %v2284, %v2396
      %2398 = vmatmul.f32.gmra.mxu0 %v1090
      %v2399 = vpop.f32.mrf.mxu0
      %v2400 = vadd.f32 %v2287, %v2399
      %2401 = vmatmul.f32.gmra.mxu0 %v1099
      %v2402 = vpop.f32.mrf.mxu0
      %v2403 = vadd.f32 %v2290, %v2402
      %2404 = vmatmul.f32.gmra.mxu0 %v1108
      %v2405 = vpop.f32.mrf.mxu0
      %v2406 = vadd.f32 %v2293, %v2405
      %2407 = vmatmul.f32.gmra.mxu0 %v1117
      %v2408 = vpop.f32.mrf.mxu0
      %v2409 = vadd.f32 %v2296, %v2408
      %2410 = vmatmul.f32.gmra.mxu0 %v1126
      %v2411 = vpop.f32.mrf.mxu0
      %v2412 = vadd.f32 %v2299, %v2411
      %2413 = vmatmul.f32.gmra.mxu0 %v1135
      %v2414 = vpop.f32.mrf.mxu0
      %v2415 = vadd.f32 %v2302, %v2414
      %2416 = vmatmul.f32.gmra.mxu0 %v1144
      %v2417 = vpop.f32.mrf.mxu0
      %v2418 = vadd.f32 %v2305, %v2417
      %2419 = vmatmul.f32.gmra.mxu0 %v1153
      %v2420 = vpop.f32.mrf.mxu0
      %v2421 = vadd.f32 %v2308, %v2420
      %2422 = vmatmul.f32.gmra.mxu0 %v1162
      %v2423 = vpop.f32.mrf.mxu0
      %v2424 = vadd.f32 %v2311, %v2423
      %2425 = vmatmul.f32.gmra.mxu0 %v1171
      %v2426 = vpop.f32.mrf.mxu0
      %v2427 = vadd.f32 %v2314, %v2426
      %2428 = vmatmul.f32.gmra.mxu0 %v1180
      %v2429 = vpop.f32.mrf.mxu0
      %v2430 = vadd.f32 %v2317, %v2429
      %2431 = vmatmul.f32.gmra.mxu0 %v1189
      %v2432 = vpop.f32.mrf.mxu0
      %v2433 = vadd.f32 %v2320, %v2432
      %2434 = vmatmul.f32.gmra.mxu0 %v1198
      %v2435 = vpop.f32.mrf.mxu0
      %v2436 = vadd.f32 %v2323, %v2435
      %2437 = vmatmul.f32.gmra.mxu0 %v1207
      %v2438 = vpop.f32.mrf.mxu0
      %v2439 = vadd.f32 %v2326, %v2438
      %2440 = vmatmul.f32.gmra.mxu0 %v1216
      %v2441 = vpop.f32.mrf.mxu0
      %v2442 = vadd.f32 %v2329, %v2441
      %2443 = vmatmul.f32.gmra.mxu0 %v1225
      %v2444 = vpop.f32.mrf.mxu0
      %v2445 = vadd.f32 %v2332, %v2444
      %2446 = vmatmul.f32.gmra.mxu0 %v1234
      %v2447 = vpop.f32.mrf.mxu0
      %v2448 = vadd.f32 %v2335, %v2447
      %2449 = vmatmul.f32.gmra.mxu0 %v1243
      %v2450 = vpop.f32.mrf.mxu0
      %v2451 = vadd.f32 %v2338, %v2450
      %2452 = vmatmul.f32.gmra.mxu0 %v1252
      %v2453 = vpop.f32.mrf.mxu0
      %v2454 = vadd.f32 %v2341, %v2453
      %2455 = vmatmul.f32.gmra.mxu0 %v1261
      %v2456 = vpop.f32.mrf.mxu0
      %v2457 = vadd.f32 %v2344, %v2456
      %2458 = vmatmul.f32.gmra.mxu0 %v1270
      %v2459 = vpop.f32.mrf.mxu0
      %v2460 = vadd.f32 %v2347, %v2459
      %2461 = vmatmul.f32.gmra.mxu0 %v1279
      %v2462 = vpop.f32.mrf.mxu0
      %v2463 = vadd.f32 %v2350, %v2462
      %2464 = vmatmul.f32.gmra.mxu0 %v1288
      %v2465 = vpop.f32.mrf.mxu0
      %v2466 = vadd.f32 %v2353, %v2465
      %2467 = vmatmul.f32.gmra.mxu0 %v1297
      %v2468 = vpop.f32.mrf.mxu0
      %v2469 = vadd.f32 %v2356, %v2468
      %2470 = vmatmul.f32.gmra.mxu0 %v1306
      %v2471 = vpop.f32.mrf.mxu0
      %v2472 = vadd.f32 %v2359, %v2471
      %2473 = vmatmul.f32.gmra.mxu0 %v1315
      %v2474 = vpop.f32.mrf.mxu0
      %v2475 = vadd.f32 %v2362, %v2474
      %2476 = vdwg.mxu0
      %2477 = vst [vmem:[%s233] sm:$0xff] %v2382
      %2478 = vst [vmem:[%s233 + $0x8] sm:$0xff] %v2385
      %2479 = vst [vmem:[%s233 + $0x10] sm:$0xff] %v2388
      %2480 = vst [vmem:[%s233 + $0x18] sm:$0xff] %v2391
      %2481 = vst [vmem:[%s233 + $0x20] sm:$0xff] %v2394
      %2482 = vst [vmem:[%s233 + $0x28] sm:$0xff] %v2397
      %2483 = vst [vmem:[%s233 + $0x30] sm:$0xff] %v2400
      %2484 = vst [vmem:[%s233 + $0x38] sm:$0xff] %v2403
      %2485 = vst [vmem:[%s233 + $0x40] sm:$0xff] %v2406
      %2486 = vst [vmem:[%s233 + $0x48] sm:$0xff] %v2409
      %2487 = vst [vmem:[%s233 + $0x50] sm:$0xff] %v2412
      %2488 = vst [vmem:[%s233 + $0x58] sm:$0xff] %v2415
      %2489 = vst [vmem:[%s233 + $0x60] sm:$0xff] %v2418
      %2490 = vst [vmem:[%s233 + $0x68] sm:$0xff] %v2421
      %2491 = vst [vmem:[%s233 + $0x70] sm:$0xff] %v2424
      %2492 = vst [vmem:[%s233 + $0x78] sm:$0xff] %v2427
      %2493 = vst [vmem:[%s233 + $0x80] sm:$0xff] %v2430
      %2494 = vst [vmem:[%s233 + $0x88] sm:$0xff] %v2433
      %2495 = vst [vmem:[%s233 + $0x90] sm:$0xff] %v2436
      %2496 = vst [vmem:[%s233 + $0x98] sm:$0xff] %v2439
      %2497 = vst [vmem:[%s233 + $0xa0] sm:$0xff] %v2442
      %2498 = vst [vmem:[%s233 + $0xa8] sm:$0xff] %v2445
      %2499 = vst [vmem:[%s233 + $0xb0] sm:$0xff] %v2448
      %2500 = vst [vmem:[%s233 + $0xb8] sm:$0xff] %v2451
      %2501 = vst [vmem:[%s233 + $0xc0] sm:$0xff] %v2454
      %2502 = vst [vmem:[%s233 + $0xc8] sm:$0xff] %v2457
      %2503 = vst [vmem:[%s233 + $0xd0] sm:$0xff] %v2460
      %2504 = vst [vmem:[%s233 + $0xd8] sm:$0xff] %v2463
      %2505 = vst [vmem:[%s233 + $0xe0] sm:$0xff] %v2466
      %2506 = vst [vmem:[%s233 + $0xe8] sm:$0xff] %v2469
      %2507 = vst [vmem:[%s233 + $0xf0] sm:$0xff] %v2472
      %2508 = vst [vmem:[%s233 + $0xf8] sm:$0xff] %v2475
      %v2509 = vadd.f32 %v2382, %v2385
      %v2510 = vadd.f32 %v2509, %v2388
      %v2511 = vadd.f32 %v2510, %v2391
      %v2512 = vadd.f32 %v2511, %v2394
      %v2513 = vadd.f32 %v2512, %v2397
      %v2514 = vadd.f32 %v2513, %v2400
      %v2515 = vadd.f32 %v2514, %v2403
      %v2516 = vadd.f32 %v2515, %v2406
      %v2517 = vadd.f32 %v2516, %v2409
      %v2518 = vadd.f32 %v2517, %v2412
      %v2519 = vadd.f32 %v2518, %v2415
      %v2520 = vadd.f32 %v2519, %v2418
      %v2521 = vadd.f32 %v2520, %v2421
      %v2522 = vadd.f32 %v2521, %v2424
      %v2523 = vadd.f32 %v2522, %v2427
      %v2524 = vadd.f32 %v2523, %v2430
      %v2525 = vadd.f32 %v2524, %v2433
      %v2526 = vadd.f32 %v2525, %v2436
      %v2527 = vadd.f32 %v2526, %v2439
      %v2528 = vadd.f32 %v2527, %v2442
      %v2529 = vadd.f32 %v2528, %v2445
      %v2530 = vadd.f32 %v2529, %v2448
      %v2531 = vadd.f32 %v2530, %v2451
      %v2532 = vadd.f32 %v2531, %v2454
      %v2533 = vadd.f32 %v2532, %v2457
      %v2534 = vadd.f32 %v2533, %v2460
      %v2535 = vadd.f32 %v2534, %v2463
      %v2536 = vadd.f32 %v2535, %v2466
      %v2537 = vadd.f32 %v2536, %v2469
      %v2538 = vadd.f32 %v2537, %v2472
      %v2539 = vadd.f32 %v2538, %v2475
      %v2540 = vrot.slane %v2539, 4
      %v2541 = vadd.f32 %v2539, %v2540
      %v2542 = vrot.slane %v2541, 2
      %v2543 = vadd.f32 %v2541, %v2542
      %v2544 = vrot.slane %v2543, 1
      %v2545 = vadd.f32 %v2543, %v2544
      %v2546 = vmul.f32 %v2382, %v2382
      %v2547 = vmul.f32 %v2385, %v2385
      %v2548 = vmul.f32 %v2388, %v2388
      %v2549 = vmul.f32 %v2391, %v2391
      %v2550 = vmul.f32 %v2394, %v2394
      %v2551 = vmul.f32 %v2397, %v2397
      %v2552 = vmul.f32 %v2400, %v2400
      %v2553 = vmul.f32 %v2403, %v2403
      %v2554 = vmul.f32 %v2406, %v2406
      %v2555 = vmul.f32 %v2409, %v2409
      %v2556 = vmul.f32 %v2412, %v2412
      %v2557 = vmul.f32 %v2415, %v2415
      %v2558 = vmul.f32 %v2418, %v2418
      %v2559 = vmul.f32 %v2421, %v2421
      %v2560 = vmul.f32 %v2424, %v2424
      %v2561 = vmul.f32 %v2427, %v2427
      %v2562 = vmul.f32 %v2430, %v2430
      %v2563 = vmul.f32 %v2433, %v2433
      %v2564 = vmul.f32 %v2436, %v2436
      %v2565 = vmul.f32 %v2439, %v2439
      %v2566 = vmul.f32 %v2442, %v2442
      %v2567 = vmul.f32 %v2445, %v2445
      %v2568 = vmul.f32 %v2448, %v2448
      %v2569 = vmul.f32 %v2451, %v2451
      %v2570 = vmul.f32 %v2454, %v2454
      %v2571 = vmul.f32 %v2457, %v2457
      %v2572 = vmul.f32 %v2460, %v2460
      %v2573 = vmul.f32 %v2463, %v2463
      %v2574 = vmul.f32 %v2466, %v2466
      %v2575 = vmul.f32 %v2469, %v2469
      %v2576 = vmul.f32 %v2472, %v2472
      %v2577 = vmul.f32 %v2475, %v2475
      %v2578 = vadd.f32 %v2546, %v2547
      %v2579 = vadd.f32 %v2578, %v2548
      %v2580 = vadd.f32 %v2579, %v2549
      %v2581 = vadd.f32 %v2580, %v2550
      %v2582 = vadd.f32 %v2581, %v2551
      %v2583 = vadd.f32 %v2582, %v2552
      %v2584 = vadd.f32 %v2583, %v2553
      %v2585 = vadd.f32 %v2584, %v2554
      %v2586 = vadd.f32 %v2585, %v2555
      %v2587 = vadd.f32 %v2586, %v2556
      %v2588 = vadd.f32 %v2587, %v2557
      %v2589 = vadd.f32 %v2588, %v2558
      %v2590 = vadd.f32 %v2589, %v2559
      %v2591 = vadd.f32 %v2590, %v2560
      %v2592 = vadd.f32 %v2591, %v2561
      %v2593 = vadd.f32 %v2592, %v2562
      %v2594 = vadd.f32 %v2593, %v2563
      %v2595 = vadd.f32 %v2594, %v2564
      %v2596 = vadd.f32 %v2595, %v2565
      %v2597 = vadd.f32 %v2596, %v2566
      %v2598 = vadd.f32 %v2597, %v2567
      %v2599 = vadd.f32 %v2598, %v2568
      %v2600 = vadd.f32 %v2599, %v2569
      %v2601 = vadd.f32 %v2600, %v2570
      %v2602 = vadd.f32 %v2601, %v2571
      %v2603 = vadd.f32 %v2602, %v2572
      %v2604 = vadd.f32 %v2603, %v2573
      %v2605 = vadd.f32 %v2604, %v2574
      %v2606 = vadd.f32 %v2605, %v2575
      %v2607 = vadd.f32 %v2606, %v2576
      %v2608 = vadd.f32 %v2607, %v2577
      %v2609 = vrot.slane %v2608, 4
      %v2610 = vadd.f32 %v2608, %v2609
      %v2611 = vrot.slane %v2610, 2
      %v2612 = vadd.f32 %v2610, %v2611
      %v2613 = vrot.slane %v2612, 1
      %v2614 = vadd.f32 %v2612, %v2613
      %vm2615 = vcmask 1040384
      %v2616 = vsel %vm2615, %v2545, %v2614
      %2617 = vst [vmem:[%s238] sm:$0x3] %v2616
      %s2618 = smul.u32 32, %s17
      %p2619 = scmp.lt.s32.totalorder %s2618, 63
      %s2620 = scalar_select %p2619, %s2618, 63
      %s2621 = smul.addr %s2620, 8
      %s2622 = scalar_lea.vmem %s4, %s2621
      %p2623 = scmp.lt.s32.totalorder %s17, 1
      %s2624 = scalar_select %p2623, %s17, 1
      %s2625 = smul.addr %s2624, 2
      %s2626 = scalar_lea.vmem %s5, %s2625
      // Predicated region
      $region37: #{debottleneck_forward.5} parent=35 // pred_check
        %p2627 = pneg %p124
      $region38: #{debottleneck_forward.5} parent=35 // pred_check_branch
        %2629 = sbr.rel (%p2627) target = $region40
      $region39: #{debottleneck_forward.5} parent=35 // pred_region
        %s2630 = smul.u32 32, %s17
      $region40: #{debottleneck_forward.5} parent=35 // pred_fallthru
        _
      // Predicated region
      $region41: #{debottleneck_forward.5} parent=35 // pred_check
        %p2631 = pneg %p150
      $region42: #{debottleneck_forward.5} parent=35 // pred_check_branch
        %2633 = sbr.rel (%p2631) target = $region44
      $region43: #{debottleneck_forward.5} parent=35 // pred_region
        _
      $region44: #{debottleneck_forward.5} parent=35 // pred_fallthru
        _
    $region36: #{debottleneck_forward.5} parent=5 // pred_fallthru
      _
    %p2634 = scmp.le.s32.totalorder 2, %s12
    // Predicated region
    $region45: #{debottleneck_forward.5} parent=5 // pred_check
      %p2635 = pneg %p2634
    $region46: #{debottleneck_forward.5} parent=5 // pred_check_branch
      %2637 = sbr.rel (%p2635) target = $region48
    $region47: #{debottleneck_forward.5} parent=5 // pred_region
      %s2638 = ssub.s32 %s12, 2
      // Predicated region
      $region49: #{debottleneck_forward.5} parent=47 // pred_check
        %p2639 = pneg %p130
      $region50: #{debottleneck_forward.5} parent=47 // pred_check_branch
        %2641 = sbr.rel (%p2639) target = $region52
      $region51: #{debottleneck_forward.5} parent=47 // pred_region
        %s2642 = smul.u32 32, %s18
        %p2643 = scmp.lt.s32.totalorder %s2642, 63
        %s2644 = scalar_select %p2643, %s2642, 63
        %s2645 = smul.addr %s2644, 8
        %s2646 = scalar_lea.vmem %s4, %s2645
      $region52: #{debottleneck_forward.5} parent=47 // pred_fallthru
        _
      // Predicated region
      $region53: #{debottleneck_forward.5} parent=47 // pred_check
        %p2647 = pneg %p156
      $region54: #{debottleneck_forward.5} parent=47 // pred_check_branch
        %2649 = sbr.rel (%p2647) target = $region56
      $region55: #{debottleneck_forward.5} parent=47 // pred_region
        %p2650 = scmp.lt.s32.totalorder %s18, 1
        %s2651 = scalar_select %p2650, %s18, 1
        %s2652 = smul.addr %s2651, 2
        %s2653 = scalar_lea.vmem %s5, %s2652
      $region56: #{debottleneck_forward.5} parent=47 // pred_fallthru
        _
    $region48: #{debottleneck_forward.5} parent=5 // pred_fallthru
      _
  $region6: #{debottleneck_forward.5} parent=0 // loop_footer
    %s16 = sadd.s32 1, %s12
  $region7: #{debottleneck_forward.5} parent=0 // loop_footer_branch
    %11 = sbr.rel target = $region3
  $region8: #{debottleneck_forward.5} parent=0 // loop_exit
    _

</llo_original>
